<compile_context>
chip_gen: v5e
topology: v5e:2x2
jax: 0.10.0
libtpu: 0.0.40
codegen_flags: <defaults>
</compile_context>

<pallas_src>
import functools
import math

import jax
import jax.numpy as jnp
from jax.experimental import pallas as pl
from jax.experimental.pallas import tpu as pltpu


def _layer_norm(x, gamma, beta, eps=1e-5):
    # LayerNorm over the last axis, biased variance (matches torch.nn.LayerNorm).
    mean = jnp.mean(x, axis=-1, keepdims=True)
    var = jnp.mean((x - mean) ** 2, axis=-1, keepdims=True)
    return (x - mean) * jax.lax.rsqrt(var + eps) * gamma + beta


def _encoder_block_kernel(
    xq_ref, xkv_ref,
    wq_ref, bq_ref, wk_ref, bk_ref, wv_ref, bv_ref, wo_ref, bo_ref,
    g1_ref, be1_ref,
    w1_ref, b1_ref, w2_ref, b2_ref,
    g2_ref, be2_ref,
    o_ref,
    *, n_heads, d_k, d_v, exact_softmax,
):
    xq = xq_ref[0]    # (TILE_S, D)  query / residual rows, compute dtype
    xkv = xkv_ref[0]  # (S, D)       full sequence for K/V, compute dtype
    cd = xq.dtype
    tq, D = xq.shape

    # --- Fused Q/K/V projections (wide-N matmuls, f32 accumulation) -----------
    q = jnp.dot(xq, wq_ref[...], preferred_element_type=jnp.float32) + bq_ref[...]
    k = jnp.dot(xkv, wk_ref[...], preferred_element_type=jnp.float32) + bk_ref[...]
    v = jnp.dot(xkv, wv_ref[...], preferred_element_type=jnp.float32) + bv_ref[...]

    # Fold the 1/sqrt(d_k) scale into q (smaller tensor than the scores).
    q = q * (1.0 / math.sqrt(d_k))
    q = q.astype(cd)
    k = k.astype(cd)
    v = v.astype(cd)

    # Contract last dims => q @ k^T without materializing a transpose.
    dn_trans_b = (((1,), (1,)), ((), ()))

    # --- Multi-head attention with W_O folded into the head loop --------------
    mha_acc = jnp.zeros((tq, D), jnp.float32)
    for h in range(n_heads):  # static unroll: n_heads is small & compile-time
        qh = q[:, h * d_k:(h + 1) * d_k]                    # (TILE_S, d_k)
        kh = k[:, h * d_k:(h + 1) * d_k]                    # (S, d_k)
        vh = v[:, h * d_v:(h + 1) * d_v]                    # (S, d_v)

        s = jax.lax.dot_general(qh, kh, dn_trans_b,
                                preferred_element_type=jnp.float32)  # (TILE_S, S)
        s = s - jnp.max(s, axis=-1, keepdims=True)
        e = jnp.exp(s)
        l = jnp.sum(e, axis=-1, keepdims=True)
        if exact_softmax:
            p = e / l
        else:
            # EUP approx reciprocal: frees VPU divide slots on the bf16 path.
            p = e * pl.reciprocal(l, approx=True)

        oh = jnp.dot(p.astype(cd), vh,
                     preferred_element_type=jnp.float32)     # (TILE_S, d_v)
        # Accumulate (oh @ wo_h) directly into a single (TILE_S, D) buffer:
        # no concat, no head_outs list.
        mha_acc = mha_acc + jnp.dot(
            oh.astype(cd), wo_ref[h * d_v:(h + 1) * d_v, :],
            preferred_element_type=jnp.float32)

    mha = mha_acc + bo_ref[...]

    # --- Residual + LayerNorm 1 (f32) -----------------------------------------
    h1 = _layer_norm(mha + xq.astype(jnp.float32), g1_ref[...], be1_ref[...])

    # --- FeedForward (intermediate is only (TILE_S, d_ff)) ---------------------
    ff = jnp.dot(h1.astype(cd), w1_ref[...],
                 preferred_element_type=jnp.float32) + b1_ref[...]
    ff = jnp.maximum(ff, 0.0)
    ff = jnp.dot(ff.astype(cd), w2_ref[...],
                 preferred_element_type=jnp.float32) + b2_ref[...]

    # --- Residual + LayerNorm 2 (f32) ------------------------------------------
    out = _layer_norm(ff + h1, g2_ref[...], be2_ref[...])
    o_ref[0] = out.astype(o_ref.dtype)


def encoder_block(x, params, *, n_heads, d_k, d_v,
                  compute_dtype=jnp.bfloat16, tile_s=None):
    """x: (B, S, d_model) float32; params: dict of 2-D float32 arrays."""
    B, S, D = x.shape
    if tile_s is None:
        tile_s = S if S <= 256 else 256
    assert S % tile_s == 0, "S must be divisible by tile_s"
    num_s_tiles = S // tile_s

    cd = jnp.dtype(compute_dtype)
    f32 = jnp.float32

    # Matmul operands (activations + weight matrices) go in the compute dtype
    # (bf16 halves HBM->VMEM bytes and hits MXU bf16 peak); biases / LayerNorm
    # params stay f32 since they feed f32 adds after f32-accumulated matmuls.
    xc = x.astype(cd)
    param_list = [
        params["wq"].astype(cd), params["bq"].astype(f32),
        params["wk"].astype(cd), params["bk"].astype(f32),
        params["wv"].astype(cd), params["bv"].astype(f32),
        params["wo"].astype(cd), params["bo"].astype(f32),
        params["g1"].astype(f32), params["be1"].astype(f32),
        params["w1"].astype(cd), params["b1"].astype(f32),
        params["w2"].astype(cd), params["b2"].astype(f32),
        params["g2"].astype(f32), params["be2"].astype(f32),
    ]
    d_ff = params["w1"].shape[1]
    H = n_heads

    kernel = functools.partial(
        _encoder_block_kernel, n_heads=n_heads, d_k=d_k, d_v=d_v,
        exact_softmax=(cd == jnp.float32))

    # Advisory cost estimate so XLA schedules surrounding ops sensibly.
    flops = (2 * B * S * D * H * (2 * d_k + d_v)      # q/k/v projections
             + 2 * B * H * S * S * (d_k + d_v)        # scores + p@v
             + 2 * B * S * H * d_v * D                # output projection
             + 4 * B * S * D * d_ff)                  # FFN
    transcendentals = B * H * S * S                   # exp in softmax
    bytes_accessed = (xc.size * xc.dtype.itemsize
                      + B * S * D * x.dtype.itemsize
                      + sum(int(p.size) * p.dtype.itemsize for p in param_list))
    cost = pl.CostEstimate(flops=int(flops),
                           transcendentals=int(transcendentals),
                           bytes_accessed=int(bytes_accessed))

    x_q_spec = pl.BlockSpec((1, tile_s, D), lambda b, s: (b, s, 0))   # query/residual tile
    x_kv_spec = pl.BlockSpec((1, S, D), lambda b, s: (b, 0, 0))       # full-seq K/V source
    out_spec = pl.BlockSpec((1, tile_s, D), lambda b, s: (b, s, 0))

    def build(param_pipeline_mode):
        in_specs = [x_q_spec, x_kv_spec]
        for p in param_list:
            if param_pipeline_mode is None:
                in_specs.append(pl.BlockSpec(p.shape, lambda b, s: (0, 0)))
            else:
                in_specs.append(pl.BlockSpec(p.shape, lambda b, s: (0, 0),
                                             pipeline_mode=param_pipeline_mode))
        return pl.pallas_call(
            kernel,
            out_shape=jax.ShapeDtypeStruct((B, S, D), x.dtype),
            grid_spec=pltpu.PrefetchScalarGridSpec(
                num_scalar_prefetch=0,
                grid=(B, num_s_tiles),
                in_specs=in_specs,
                out_specs=out_spec,
            ),
            compiler_params=pltpu.CompilerParams(
                dimension_semantics=("parallel", "parallel"),
                vmem_limit_bytes=48 * 1024 * 1024),
            cost_estimate=cost,
        )

    try:
        # Weights are grid-invariant: single-buffer them to halve their VMEM footprint.
        return build(pl.Buffered(1))(xc, xc, *param_list)
    except Exception:
        # TODO(synk): pl.Buffered(1) single-buffering not supported on this jax version;
        # fall back to default double-buffered parameter specs.
        return build(None)(xc, xc, *param_list)


def encoder_block_reference(x, params, *, n_heads, d_k, d_v):
    """Pure-JAX reference with identical math for validation."""
    def ln(y, g, b, eps=1e-5):
        m = jnp.mean(y, axis=-1, keepdims=True)
        v = jnp.mean((y - m) ** 2, axis=-1, keepdims=True)
        return (y - m) * jax.lax.rsqrt(v + eps) * g + b

    q = x @ params["wq"] + params["bq"]
    k = x @ params["wk"] + params["bk"]
    v = x @ params["wv"] + params["bv"]
    B, S, _ = x.shape
    q = q.reshape(B, S, n_heads, d_k).transpose(0, 2, 1, 3)
    k = k.reshape(B, S, n_heads, d_k).transpose(0, 2, 1, 3)
    v = v.reshape(B, S, n_heads, d_v).transpose(0, 2, 1, 3)
    scores = jnp.einsum("bhqd,bhkd->bhqk", q, k) / math.sqrt(d_k)
    p = jax.nn.softmax(scores, axis=-1)
    o = jnp.einsum("bhqk,bhkd->bhqd", p, v).transpose(0, 2, 1, 3).reshape(B, S, -1)
    mha = o @ params["wo"] + params["bo"]
    h1 = ln(mha + x, params["g1"], params["be1"])
    ff = jnp.maximum(h1 @ params["w1"] + params["b1"], 0.0) @ params["w2"] + params["b2"]
    return ln(ff + h1, params["g2"], params["be2"])


def init_params(key, d_model, d_k, d_v, n_heads, d_ff):
    ks = jax.random.split(key, 8)
    s = 0.05
    return {
        "wq": s * jax.random.normal(ks[0], (d_model, n_heads * d_k), jnp.float32),
        "bq": jnp.zeros((1, n_heads * d_k), jnp.float32),
        "wk": s * jax.random.normal(ks[1], (d_model, n_heads * d_k), jnp.float32),
        "bk": jnp.zeros((1, n_heads * d_k), jnp.float32),
        "wv": s * jax.random.normal(ks[2], (d_model, n_heads * d_v), jnp.float32),
        "bv": jnp.zeros((1, n_heads * d_v), jnp.float32),
        "wo": s * jax.random.normal(ks[3], (n_heads * d_v, d_model), jnp.float32),
        "bo": 0.01 * jax.random.normal(ks[4], (1, d_model), jnp.float32),
        "g1": jnp.ones((1, d_model), jnp.float32),
        "be1": jnp.zeros((1, d_model), jnp.float32),
        "w1": s * jax.random.normal(ks[5], (d_model, d_ff), jnp.float32),
        "b1": 0.01 * jax.random.normal(ks[6], (1, d_ff), jnp.float32),
        "w2": s * jax.random.normal(ks[7], (d_ff, d_model), jnp.float32),
        "b2": jnp.zeros((1, d_model), jnp.float32),
        "g2": jnp.ones((1, d_model), jnp.float32),
        "be2": jnp.zeros((1, d_model), jnp.float32),
    }


if __name__ == "__main__":
    # Small shapes consistent with the module's forward contract.
    B, S = 2, 16
    d_model, d_k, d_v, n_heads, d_ff = 32, 16, 16, 4, 64

    key = jax.random.PRNGKey(0)
    kx, kp = jax.random.split(key)
    x = jax.random.normal(kx, (B, S, d_model), jnp.float32)
    params = init_params(kp, d_model, d_k, d_v, n_heads, d_ff)

    ref = encoder_block_reference(x, params, n_heads=n_heads, d_k=d_k, d_v=d_v)

    # Exact-precision path (f32 compute), exercising the seq-tile grid axis.
    out_f32 = jax.block_until_ready(
        encoder_block(x, params, n_heads=n_heads, d_k=d_k, d_v=d_v,
                      compute_dtype=jnp.float32, tile_s=8))
    assert out_f32.shape == (B, S, d_model)
    err32 = float(jnp.max(jnp.abs(out_f32 - ref)))
    assert jnp.allclose(out_f32, ref, atol=1e-4, rtol=1e-4), err32

    # Performance path: bf16 MXU inputs, f32 accumulation, approx softmax reciprocal.
    out_bf16 = jax.block_until_ready(
        encoder_block(x, params, n_heads=n_heads, d_k=d_k, d_v=d_v,
                      compute_dtype=jnp.bfloat16, tile_s=8))
    errbf = float(jnp.max(jnp.abs(out_bf16 - ref)))
    assert jnp.allclose(out_bf16, ref, atol=5e-2, rtol=5e-2), errbf

    print("KERNEL_OK")
</pallas_src>

<mosaic_0001>
module attributes {stable_mosaic.version = 11 : i64} {
  func.func @_encoder_block_kernel(%arg0: i32, %arg1: i32, %arg2: memref<1x8x32xf32, #tpu.memory_space<vmem>>, %arg3: memref<1x16x32xf32, #tpu.memory_space<vmem>>, %arg4: memref<32x64xf32, #tpu.memory_space<vmem>>, %arg5: memref<1x64xf32, #tpu.memory_space<vmem>>, %arg6: memref<32x64xf32, #tpu.memory_space<vmem>>, %arg7: memref<1x64xf32, #tpu.memory_space<vmem>>, %arg8: memref<32x64xf32, #tpu.memory_space<vmem>>, %arg9: memref<1x64xf32, #tpu.memory_space<vmem>>, %arg10: memref<64x32xf32, #tpu.memory_space<vmem>>, %arg11: memref<1x32xf32, #tpu.memory_space<vmem>>, %arg12: memref<1x32xf32, #tpu.memory_space<vmem>>, %arg13: memref<1x32xf32, #tpu.memory_space<vmem>>, %arg14: memref<32x64xf32, #tpu.memory_space<vmem>>, %arg15: memref<1x64xf32, #tpu.memory_space<vmem>>, %arg16: memref<64x32xf32, #tpu.memory_space<vmem>>, %arg17: memref<1x32xf32, #tpu.memory_space<vmem>>, %arg18: memref<1x32xf32, #tpu.memory_space<vmem>>, %arg19: memref<1x32xf32, #tpu.memory_space<vmem>>, %arg20: memref<1x8x32xf32, #tpu.memory_space<vmem>>) attributes {dimension_semantics = [#tpu.dimension_semantics<parallel>, #tpu.dimension_semantics<parallel>], iteration_bounds = array<i64: 2, 2>, scalar_prefetch = 0 : i64, scratch_operands = 0 : i64, tpu.core_type = #tpu.core_type<tc>, window_params = [{transform_indices = @transform_0, window_bounds = array<i64: 1, 8, 32>}, {transform_indices = @transform_1, window_bounds = array<i64: 1, 16, 32>}, {pipeline_mode = #tpu.pipeline_mode<synchronous>, transform_indices = @transform_2, window_bounds = array<i64: 32, 64>}, {pipeline_mode = #tpu.pipeline_mode<synchronous>, transform_indices = @transform_3, window_bounds = array<i64: 1, 64>}, {pipeline_mode = #tpu.pipeline_mode<synchronous>, transform_indices = @transform_4, window_bounds = array<i64: 32, 64>}, {pipeline_mode = #tpu.pipeline_mode<synchronous>, transform_indices = @transform_5, window_bounds = array<i64: 1, 64>}, {pipeline_mode = #tpu.pipeline_mode<synchronous>, transform_indices = @transform_6, window_bounds = array<i64: 32, 64>}, {pipeline_mode = #tpu.pipeline_mode<synchronous>, transform_indices = @transform_7, window_bounds = array<i64: 1, 64>}, {pipeline_mode = #tpu.pipeline_mode<synchronous>, transform_indices = @transform_8, window_bounds = array<i64: 64, 32>}, {pipeline_mode = #tpu.pipeline_mode<synchronous>, transform_indices = @transform_9, window_bounds = array<i64: 1, 32>}, {pipeline_mode = #tpu.pipeline_mode<synchronous>, transform_indices = @transform_10, window_bounds = array<i64: 1, 32>}, {pipeline_mode = #tpu.pipeline_mode<synchronous>, transform_indices = @transform_11, window_bounds = array<i64: 1, 32>}, {pipeline_mode = #tpu.pipeline_mode<synchronous>, transform_indices = @transform_12, window_bounds = array<i64: 32, 64>}, {pipeline_mode = #tpu.pipeline_mode<synchronous>, transform_indices = @transform_13, window_bounds = array<i64: 1, 64>}, {pipeline_mode = #tpu.pipeline_mode<synchronous>, transform_indices = @transform_14, window_bounds = array<i64: 64, 32>}, {pipeline_mode = #tpu.pipeline_mode<synchronous>, transform_indices = @transform_15, window_bounds = array<i64: 1, 32>}, {pipeline_mode = #tpu.pipeline_mode<synchronous>, transform_indices = @transform_16, window_bounds = array<i64: 1, 32>}, {pipeline_mode = #tpu.pipeline_mode<synchronous>, transform_indices = @transform_17, window_bounds = array<i64: 1, 32>}, {transform_indices = @transform_18, window_bounds = array<i64: 1, 8, 32>}]} {
    %c0 = arith.constant 0 : index
    %c0_0 = arith.constant 0 : index
    %c0_1 = arith.constant 0 : index
    %0 = vector.load %arg2[%c0, %c0_0, %c0_1] : memref<1x8x32xf32, #tpu.memory_space<vmem>>, vector<1x8x32xf32>
    %1 = vector.shape_cast %0 : vector<1x8x32xf32> to vector<8x32xf32>
    %c0_2 = arith.constant 0 : index
    %c0_3 = arith.constant 0 : index
    %c0_4 = arith.constant 0 : index
    %2 = vector.load %arg3[%c0_2, %c0_3, %c0_4] : memref<1x16x32xf32, #tpu.memory_space<vmem>>, vector<1x16x32xf32>
    %3 = vector.shape_cast %2 : vector<1x16x32xf32> to vector<16x32xf32>
    %c0_5 = arith.constant 0 : index
    %c0_6 = arith.constant 0 : index
    %4 = vector.load %arg4[%c0_5, %c0_6] : memref<32x64xf32, #tpu.memory_space<vmem>>, vector<32x64xf32>
    %cst = arith.constant dense<0.000000e+00> : vector<8x64xf32>
    %5 = tpu.matmul %1, %4, %cst {dimension_numbers = #tpu.dot_dimension_numbers<[1], [0], [0], [1], [0, 0, 1, 1], [], []>} : vector<8x32xf32>, vector<32x64xf32>, vector<8x64xf32> -> vector<8x64xf32>
    %c0_7 = arith.constant 0 : index
    %c0_8 = arith.constant 0 : index
    %6 = vector.load %arg5[%c0_7, %c0_8] : memref<1x64xf32, #tpu.memory_space<vmem>>, vector<1x64xf32>
    %7 = vector.broadcast %6 : vector<1x64xf32> to vector<8x64xf32>
    %8 = arith.addf %5, %7 : vector<8x64xf32>
    %c0_9 = arith.constant 0 : index
    %c0_10 = arith.constant 0 : index
    %9 = vector.load %arg6[%c0_9, %c0_10] : memref<32x64xf32, #tpu.memory_space<vmem>>, vector<32x64xf32>
    %cst_11 = arith.constant dense<0.000000e+00> : vector<16x64xf32>
    %10 = tpu.matmul %3, %9, %cst_11 {dimension_numbers = #tpu.dot_dimension_numbers<[1], [0], [0], [1], [0, 0, 1, 1], [], []>} : vector<16x32xf32>, vector<32x64xf32>, vector<16x64xf32> -> vector<16x64xf32>
    %c0_12 = arith.constant 0 : index
    %c0_13 = arith.constant 0 : index
    %11 = vector.load %arg7[%c0_12, %c0_13] : memref<1x64xf32, #tpu.memory_space<vmem>>, vector<1x64xf32>
    %12 = vector.broadcast %11 : vector<1x64xf32> to vector<16x64xf32>
    %13 = arith.addf %10, %12 : vector<16x64xf32>
    %c0_14 = arith.constant 0 : index
    %c0_15 = arith.constant 0 : index
    %14 = vector.load %arg8[%c0_14, %c0_15] : memref<32x64xf32, #tpu.memory_space<vmem>>, vector<32x64xf32>
    %cst_16 = arith.constant dense<0.000000e+00> : vector<16x64xf32>
    %15 = tpu.matmul %3, %14, %cst_16 {dimension_numbers = #tpu.dot_dimension_numbers<[1], [0], [0], [1], [0, 0, 1, 1], [], []>} : vector<16x32xf32>, vector<32x64xf32>, vector<16x64xf32> -> vector<16x64xf32>
    %c0_17 = arith.constant 0 : index
    %c0_18 = arith.constant 0 : index
    %16 = vector.load %arg9[%c0_17, %c0_18] : memref<1x64xf32, #tpu.memory_space<vmem>>, vector<1x64xf32>
    %17 = vector.broadcast %16 : vector<1x64xf32> to vector<16x64xf32>
    %18 = arith.addf %15, %17 : vector<16x64xf32>
    %cst_19 = arith.constant 2.500000e-01 : f32
    %19 = vector.broadcast %cst_19 : f32 to vector<8x64xf32>
    %20 = arith.mulf %8, %19 : vector<8x64xf32>
    %cst_20 = arith.constant 0.000000e+00 : f32
    %21 = vector.broadcast %cst_20 : f32 to vector<8x32xf32>
    %22 = vector.extract_strided_slice %20 {offsets = [0, 0], sizes = [8, 16], strides = [1, 1]} : vector<8x64xf32> to vector<8x16xf32>
    %23 = vector.extract_strided_slice %13 {offsets = [0, 0], sizes = [16, 16], strides = [1, 1]} : vector<16x64xf32> to vector<16x16xf32>
    %24 = vector.extract_strided_slice %18 {offsets = [0, 0], sizes = [16, 16], strides = [1, 1]} : vector<16x64xf32> to vector<16x16xf32>
    %cst_21 = arith.constant dense<0.000000e+00> : vector<8x16xf32>
    %25 = tpu.matmul %22, %23, %cst_21 {dimension_numbers = #tpu.dot_dimension_numbers<[1], [1], [0], [0], [0, 0, 1, 0], [], []>} : vector<8x16xf32>, vector<16x16xf32>, vector<8x16xf32> -> vector<8x16xf32>
    %cst_22 = arith.constant dense<0xFF800000> : vector<8xf32>
    %26 = vector.multi_reduction <maximumf>, %25, %cst_22 [1] : vector<8x16xf32> to vector<8xf32>
    %27 = vector.shape_cast %26 : vector<8xf32> to vector<8x1xf32>
    %28 = vector.broadcast %27 : vector<8x1xf32> to vector<8x16xf32>
    %29 = arith.subf %25, %28 : vector<8x16xf32>
    %30 = math.exp %29 : vector<8x16xf32>
    %cst_23 = arith.constant dense<0.000000e+00> : vector<8xf32>
    %31 = vector.multi_reduction <add>, %30, %cst_23 [1] : vector<8x16xf32> to vector<8xf32>
    %32 = vector.shape_cast %31 : vector<8xf32> to vector<8x1xf32>
    %33 = vector.broadcast %32 : vector<8x1xf32> to vector<8x16xf32>
    %34 = arith.divf %30, %33 : vector<8x16xf32>
    %cst_24 = arith.constant dense<0.000000e+00> : vector<8x16xf32>
    %35 = tpu.matmul %34, %24, %cst_24 {dimension_numbers = #tpu.dot_dimension_numbers<[1], [0], [0], [1], [0, 0, 1, 1], [], []>} : vector<8x16xf32>, vector<16x16xf32>, vector<8x16xf32> -> vector<8x16xf32>
    %c0_25 = arith.constant 0 : index
    %c0_26 = arith.constant 0 : index
    %36 = vector.load %arg10[%c0_25, %c0_26] : memref<64x32xf32, #tpu.memory_space<vmem>>, vector<16x32xf32>
    %cst_27 = arith.constant dense<0.000000e+00> : vector<8x32xf32>
    %37 = tpu.matmul %35, %36, %cst_27 {dimension_numbers = #tpu.dot_dimension_numbers<[1], [0], [0], [1], [0, 0, 1, 1], [], []>} : vector<8x16xf32>, vector<16x32xf32>, vector<8x32xf32> -> vector<8x32xf32>
    %38 = arith.addf %21, %37 : vector<8x32xf32>
    %39 = vector.extract_strided_slice %20 {offsets = [0, 16], sizes = [8, 16], strides = [1, 1]} : vector<8x64xf32> to vector<8x16xf32>
    %40 = vector.extract_strided_slice %13 {offsets = [0, 16], sizes = [16, 16], strides = [1, 1]} : vector<16x64xf32> to vector<16x16xf32>
    %41 = vector.extract_strided_slice %18 {offsets = [0, 16], sizes = [16, 16], strides = [1, 1]} : vector<16x64xf32> to vector<16x16xf32>
    %cst_28 = arith.constant dense<0.000000e+00> : vector<8x16xf32>
    %42 = tpu.matmul %39, %40, %cst_28 {dimension_numbers = #tpu.dot_dimension_numbers<[1], [1], [0], [0], [0, 0, 1, 0], [], []>} : vector<8x16xf32>, vector<16x16xf32>, vector<8x16xf32> -> vector<8x16xf32>
    %cst_29 = arith.constant dense<0xFF800000> : vector<8xf32>
    %43 = vector.multi_reduction <maximumf>, %42, %cst_29 [1] : vector<8x16xf32> to vector<8xf32>
    %44 = vector.shape_cast %43 : vector<8xf32> to vector<8x1xf32>
    %45 = vector.broadcast %44 : vector<8x1xf32> to vector<8x16xf32>
    %46 = arith.subf %42, %45 : vector<8x16xf32>
    %47 = math.exp %46 : vector<8x16xf32>
    %cst_30 = arith.constant dense<0.000000e+00> : vector<8xf32>
    %48 = vector.multi_reduction <add>, %47, %cst_30 [1] : vector<8x16xf32> to vector<8xf32>
    %49 = vector.shape_cast %48 : vector<8xf32> to vector<8x1xf32>
    %50 = vector.broadcast %49 : vector<8x1xf32> to vector<8x16xf32>
    %51 = arith.divf %47, %50 : vector<8x16xf32>
    %cst_31 = arith.constant dense<0.000000e+00> : vector<8x16xf32>
    %52 = tpu.matmul %51, %41, %cst_31 {dimension_numbers = #tpu.dot_dimension_numbers<[1], [0], [0], [1], [0, 0, 1, 1], [], []>} : vector<8x16xf32>, vector<16x16xf32>, vector<8x16xf32> -> vector<8x16xf32>
    %c16 = arith.constant 16 : index
    %c0_32 = arith.constant 0 : index
    %53 = vector.load %arg10[%c16, %c0_32] : memref<64x32xf32, #tpu.memory_space<vmem>>, vector<16x32xf32>
    %cst_33 = arith.constant dense<0.000000e+00> : vector<8x32xf32>
    %54 = tpu.matmul %52, %53, %cst_33 {dimension_numbers = #tpu.dot_dimension_numbers<[1], [0], [0], [1], [0, 0, 1, 1], [], []>} : vector<8x16xf32>, vector<16x32xf32>, vector<8x32xf32> -> vector<8x32xf32>
    %55 = arith.addf %38, %54 : vector<8x32xf32>
    %56 = vector.extract_strided_slice %20 {offsets = [0, 32], sizes = [8, 16], strides = [1, 1]} : vector<8x64xf32> to vector<8x16xf32>
    %57 = vector.extract_strided_slice %13 {offsets = [0, 32], sizes = [16, 16], strides = [1, 1]} : vector<16x64xf32> to vector<16x16xf32>
    %58 = vector.extract_strided_slice %18 {offsets = [0, 32], sizes = [16, 16], strides = [1, 1]} : vector<16x64xf32> to vector<16x16xf32>
    %cst_34 = arith.constant dense<0.000000e+00> : vector<8x16xf32>
    %59 = tpu.matmul %56, %57, %cst_34 {dimension_numbers = #tpu.dot_dimension_numbers<[1], [1], [0], [0], [0, 0, 1, 0], [], []>} : vector<8x16xf32>, vector<16x16xf32>, vector<8x16xf32> -> vector<8x16xf32>
    %cst_35 = arith.constant dense<0xFF800000> : vector<8xf32>
    %60 = vector.multi_reduction <maximumf>, %59, %cst_35 [1] : vector<8x16xf32> to vector<8xf32>
    %61 = vector.shape_cast %60 : vector<8xf32> to vector<8x1xf32>
    %62 = vector.broadcast %61 : vector<8x1xf32> to vector<8x16xf32>
    %63 = arith.subf %59, %62 : vector<8x16xf32>
    %64 = math.exp %63 : vector<8x16xf32>
    %cst_36 = arith.constant dense<0.000000e+00> : vector<8xf32>
    %65 = vector.multi_reduction <add>, %64, %cst_36 [1] : vector<8x16xf32> to vector<8xf32>
    %66 = vector.shape_cast %65 : vector<8xf32> to vector<8x1xf32>
    %67 = vector.broadcast %66 : vector<8x1xf32> to vector<8x16xf32>
    %68 = arith.divf %64, %67 : vector<8x16xf32>
    %cst_37 = arith.constant dense<0.000000e+00> : vector<8x16xf32>
    %69 = tpu.matmul %68, %58, %cst_37 {dimension_numbers = #tpu.dot_dimension_numbers<[1], [0], [0], [1], [0, 0, 1, 1], [], []>} : vector<8x16xf32>, vector<16x16xf32>, vector<8x16xf32> -> vector<8x16xf32>
    %c32 = arith.constant 32 : index
    %c0_38 = arith.constant 0 : index
    %70 = vector.load %arg10[%c32, %c0_38] : memref<64x32xf32, #tpu.memory_space<vmem>>, vector<16x32xf32>
    %cst_39 = arith.constant dense<0.000000e+00> : vector<8x32xf32>
    %71 = tpu.matmul %69, %70, %cst_39 {dimension_numbers = #tpu.dot_dimension_numbers<[1], [0], [0], [1], [0, 0, 1, 1], [], []>} : vector<8x16xf32>, vector<16x32xf32>, vector<8x32xf32> -> vector<8x32xf32>
    %72 = arith.addf %55, %71 : vector<8x32xf32>
    %73 = vector.extract_strided_slice %20 {offsets = [0, 48], sizes = [8, 16], strides = [1, 1]} : vector<8x64xf32> to vector<8x16xf32>
    %74 = vector.extract_strided_slice %13 {offsets = [0, 48], sizes = [16, 16], strides = [1, 1]} : vector<16x64xf32> to vector<16x16xf32>
    %75 = vector.extract_strided_slice %18 {offsets = [0, 48], sizes = [16, 16], strides = [1, 1]} : vector<16x64xf32> to vector<16x16xf32>
    %cst_40 = arith.constant dense<0.000000e+00> : vector<8x16xf32>
    %76 = tpu.matmul %73, %74, %cst_40 {dimension_numbers = #tpu.dot_dimension_numbers<[1], [1], [0], [0], [0, 0, 1, 0], [], []>} : vector<8x16xf32>, vector<16x16xf32>, vector<8x16xf32> -> vector<8x16xf32>
    %cst_41 = arith.constant dense<0xFF800000> : vector<8xf32>
    %77 = vector.multi_reduction <maximumf>, %76, %cst_41 [1] : vector<8x16xf32> to vector<8xf32>
    %78 = vector.shape_cast %77 : vector<8xf32> to vector<8x1xf32>
    %79 = vector.broadcast %78 : vector<8x1xf32> to vector<8x16xf32>
    %80 = arith.subf %76, %79 : vector<8x16xf32>
    %81 = math.exp %80 : vector<8x16xf32>
    %cst_42 = arith.constant dense<0.000000e+00> : vector<8xf32>
    %82 = vector.multi_reduction <add>, %81, %cst_42 [1] : vector<8x16xf32> to vector<8xf32>
    %83 = vector.shape_cast %82 : vector<8xf32> to vector<8x1xf32>
    %84 = vector.broadcast %83 : vector<8x1xf32> to vector<8x16xf32>
    %85 = arith.divf %81, %84 : vector<8x16xf32>
    %cst_43 = arith.constant dense<0.000000e+00> : vector<8x16xf32>
    %86 = tpu.matmul %85, %75, %cst_43 {dimension_numbers = #tpu.dot_dimension_numbers<[1], [0], [0], [1], [0, 0, 1, 1], [], []>} : vector<8x16xf32>, vector<16x16xf32>, vector<8x16xf32> -> vector<8x16xf32>
    %c48 = arith.constant 48 : index
    %c0_44 = arith.constant 0 : index
    %87 = vector.load %arg10[%c48, %c0_44] : memref<64x32xf32, #tpu.memory_space<vmem>>, vector<16x32xf32>
    %cst_45 = arith.constant dense<0.000000e+00> : vector<8x32xf32>
    %88 = tpu.matmul %86, %87, %cst_45 {dimension_numbers = #tpu.dot_dimension_numbers<[1], [0], [0], [1], [0, 0, 1, 1], [], []>} : vector<8x16xf32>, vector<16x32xf32>, vector<8x32xf32> -> vector<8x32xf32>
    %89 = arith.addf %72, %88 : vector<8x32xf32>
    %c0_46 = arith.constant 0 : index
    %c0_47 = arith.constant 0 : index
    %90 = vector.load %arg11[%c0_46, %c0_47] : memref<1x32xf32, #tpu.memory_space<vmem>>, vector<1x32xf32>
    %91 = vector.broadcast %90 : vector<1x32xf32> to vector<8x32xf32>
    %92 = arith.addf %89, %91 : vector<8x32xf32>
    %93 = arith.addf %92, %1 : vector<8x32xf32>
    %c0_48 = arith.constant 0 : index
    %c0_49 = arith.constant 0 : index
    %94 = vector.load %arg12[%c0_48, %c0_49] : memref<1x32xf32, #tpu.memory_space<vmem>>, vector<1x32xf32>
    %c0_50 = arith.constant 0 : index
    %c0_51 = arith.constant 0 : index
    %95 = vector.load %arg13[%c0_50, %c0_51] : memref<1x32xf32, #tpu.memory_space<vmem>>, vector<1x32xf32>
    %cst_52 = arith.constant dense<0.000000e+00> : vector<8xf32>
    %96 = vector.multi_reduction <add>, %93, %cst_52 [1] : vector<8x32xf32> to vector<8xf32>
    %97 = vector.shape_cast %96 : vector<8xf32> to vector<8x1xf32>
    %cst_53 = arith.constant 3.200000e+01 : f32
    %98 = vector.broadcast %cst_53 : f32 to vector<8x1xf32>
    %99 = arith.divf %97, %98 : vector<8x1xf32>
    %100 = vector.broadcast %99 : vector<8x1xf32> to vector<8x32xf32>
    %101 = arith.subf %93, %100 : vector<8x32xf32>
    %102 = arith.mulf %101, %101 : vector<8x32xf32>
    %cst_54 = arith.constant dense<0.000000e+00> : vector<8xf32>
    %103 = vector.multi_reduction <add>, %102, %cst_54 [1] : vector<8x32xf32> to vector<8xf32>
    %104 = vector.shape_cast %103 : vector<8xf32> to vector<8x1xf32>
    %cst_55 = arith.constant 3.200000e+01 : f32
    %105 = vector.broadcast %cst_55 : f32 to vector<8x1xf32>
    %106 = arith.divf %104, %105 : vector<8x1xf32>
    %107 = vector.broadcast %99 : vector<8x1xf32> to vector<8x32xf32>
    %108 = arith.subf %93, %107 : vector<8x32xf32>
    %cst_56 = arith.constant 9.99999974E-6 : f32
    %109 = vector.broadcast %cst_56 : f32 to vector<8x1xf32>
    %110 = arith.addf %106, %109 : vector<8x1xf32>
    %111 = math.rsqrt %110 : vector<8x1xf32>
    %112 = vector.broadcast %111 : vector<8x1xf32> to vector<8x32xf32>
    %113 = arith.mulf %108, %112 : vector<8x32xf32>
    %114 = vector.broadcast %94 : vector<1x32xf32> to vector<8x32xf32>
    %115 = arith.mulf %113, %114 : vector<8x32xf32>
    %116 = vector.broadcast %95 : vector<1x32xf32> to vector<8x32xf32>
    %117 = arith.addf %115, %116 : vector<8x32xf32>
    %c0_57 = arith.constant 0 : index
    %c0_58 = arith.constant 0 : index
    %118 = vector.load %arg14[%c0_57, %c0_58] : memref<32x64xf32, #tpu.memory_space<vmem>>, vector<32x64xf32>
    %cst_59 = arith.constant dense<0.000000e+00> : vector<8x64xf32>
    %119 = tpu.matmul %117, %118, %cst_59 {dimension_numbers = #tpu.dot_dimension_numbers<[1], [0], [0], [1], [0, 0, 1, 1], [], []>} : vector<8x32xf32>, vector<32x64xf32>, vector<8x64xf32> -> vector<8x64xf32>
    %c0_60 = arith.constant 0 : index
    %c0_61 = arith.constant 0 : index
    %120 = vector.load %arg15[%c0_60, %c0_61] : memref<1x64xf32, #tpu.memory_space<vmem>>, vector<1x64xf32>
    %121 = vector.broadcast %120 : vector<1x64xf32> to vector<8x64xf32>
    %122 = arith.addf %119, %121 : vector<8x64xf32>
    %cst_62 = arith.constant 0.000000e+00 : f32
    %123 = vector.broadcast %cst_62 : f32 to vector<8x64xf32>
    %124 = arith.maximumf %122, %123 : vector<8x64xf32>
    %c0_63 = arith.constant 0 : index
    %c0_64 = arith.constant 0 : index
    %125 = vector.load %arg16[%c0_63, %c0_64] : memref<64x32xf32, #tpu.memory_space<vmem>>, vector<64x32xf32>
    %cst_65 = arith.constant dense<0.000000e+00> : vector<8x32xf32>
    %126 = tpu.matmul %124, %125, %cst_65 {dimension_numbers = #tpu.dot_dimension_numbers<[1], [0], [0], [1], [0, 0, 1, 1], [], []>} : vector<8x64xf32>, vector<64x32xf32>, vector<8x32xf32> -> vector<8x32xf32>
    %c0_66 = arith.constant 0 : index
    %c0_67 = arith.constant 0 : index
    %127 = vector.load %arg17[%c0_66, %c0_67] : memref<1x32xf32, #tpu.memory_space<vmem>>, vector<1x32xf32>
    %128 = vector.broadcast %127 : vector<1x32xf32> to vector<8x32xf32>
    %129 = arith.addf %126, %128 : vector<8x32xf32>
    %130 = arith.addf %129, %117 : vector<8x32xf32>
    %c0_68 = arith.constant 0 : index
    %c0_69 = arith.constant 0 : index
    %131 = vector.load %arg18[%c0_68, %c0_69] : memref<1x32xf32, #tpu.memory_space<vmem>>, vector<1x32xf32>
    %c0_70 = arith.constant 0 : index
    %c0_71 = arith.constant 0 : index
    %132 = vector.load %arg19[%c0_70, %c0_71] : memref<1x32xf32, #tpu.memory_space<vmem>>, vector<1x32xf32>
    %cst_72 = arith.constant dense<0.000000e+00> : vector<8xf32>
    %133 = vector.multi_reduction <add>, %130, %cst_72 [1] : vector<8x32xf32> to vector<8xf32>
    %134 = vector.shape_cast %133 : vector<8xf32> to vector<8x1xf32>
    %cst_73 = arith.constant 3.200000e+01 : f32
    %135 = vector.broadcast %cst_73 : f32 to vector<8x1xf32>
    %136 = arith.divf %134, %135 : vector<8x1xf32>
    %137 = vector.broadcast %136 : vector<8x1xf32> to vector<8x32xf32>
    %138 = arith.subf %130, %137 : vector<8x32xf32>
    %139 = arith.mulf %138, %138 : vector<8x32xf32>
    %cst_74 = arith.constant dense<0.000000e+00> : vector<8xf32>
    %140 = vector.multi_reduction <add>, %139, %cst_74 [1] : vector<8x32xf32> to vector<8xf32>
    %141 = vector.shape_cast %140 : vector<8xf32> to vector<8x1xf32>
    %cst_75 = arith.constant 3.200000e+01 : f32
    %142 = vector.broadcast %cst_75 : f32 to vector<8x1xf32>
    %143 = arith.divf %141, %142 : vector<8x1xf32>
    %144 = vector.broadcast %136 : vector<8x1xf32> to vector<8x32xf32>
    %145 = arith.subf %130, %144 : vector<8x32xf32>
    %cst_76 = arith.constant 9.99999974E-6 : f32
    %146 = vector.broadcast %cst_76 : f32 to vector<8x1xf32>
    %147 = arith.addf %143, %146 : vector<8x1xf32>
    %148 = math.rsqrt %147 : vector<8x1xf32>
    %149 = vector.broadcast %148 : vector<8x1xf32> to vector<8x32xf32>
    %150 = arith.mulf %145, %149 : vector<8x32xf32>
    %151 = vector.broadcast %131 : vector<1x32xf32> to vector<8x32xf32>
    %152 = arith.mulf %150, %151 : vector<8x32xf32>
    %153 = vector.broadcast %132 : vector<1x32xf32> to vector<8x32xf32>
    %154 = arith.addf %152, %153 : vector<8x32xf32>
    %c0_77 = arith.constant 0 : index
    %c0_78 = arith.constant 0 : index
    %c0_79 = arith.constant 0 : index
    %155 = vector.load %arg20[%c0_77, %c0_78, %c0_79] : memref<1x8x32xf32, #tpu.memory_space<vmem>>, vector<1x8x32xf32>
    %156 = vector.shape_cast %155 : vector<1x8x32xf32> to vector<8x32xf32>
    %157 = vector.shape_cast %154 : vector<8x32xf32> to vector<1x8x32xf32>
    tpu.vector_store %arg20[%c0_77, %c0_78, %c0_79], %157 {strides = array<i32>} : memref<1x8x32xf32, #tpu.memory_space<vmem>>, vector<1x8x32xf32>,
    return
  }
  func.func @transform_0(%arg0: i32, %arg1: i32) -> (i32, i32, i32) {
    %c0_i32 = arith.constant 0 : i32
    %c0_i32_0 = arith.constant 0 : i32
    return %arg0, %arg1, %c0_i32 : i32, i32, i32
  }
  func.func @transform_1(%arg0: i32, %arg1: i32) -> (i32, i32, i32) {
    %c0_i32 = arith.constant 0 : i32
    %c0_i32_0 = arith.constant 0 : i32
    %c0_i32_1 = arith.constant 0 : i32
    return %arg0, %c0_i32, %c0_i32_0 : i32, i32, i32
  }
  func.func @transform_2(%arg0: i32, %arg1: i32) -> (i32, i32) {
    %c0_i32 = arith.constant 0 : i32
    %c0_i32_0 = arith.constant 0 : i32
    %c0_i32_1 = arith.constant 0 : i32
    return %c0_i32, %c0_i32_0 : i32, i32
  }
  func.func @transform_3(%arg0: i32, %arg1: i32) -> (i32, i32) {
    %c0_i32 = arith.constant 0 : i32
    %c0_i32_0 = arith.constant 0 : i32
    %c0_i32_1 = arith.constant 0 : i32
    return %c0_i32, %c0_i32_0 : i32, i32
  }
  func.func @transform_4(%arg0: i32, %arg1: i32) -> (i32, i32) {
    %c0_i32 = arith.constant 0 : i32
    %c0_i32_0 = arith.constant 0 : i32
    %c0_i32_1 = arith.constant 0 : i32
    return %c0_i32, %c0_i32_0 : i32, i32
  }
  func.func @transform_5(%arg0: i32, %arg1: i32) -> (i32, i32) {
    %c0_i32 = arith.constant 0 : i32
    %c0_i32_0 = arith.constant 0 : i32
    %c0_i32_1 = arith.constant 0 : i32
    return %c0_i32, %c0_i32_0 : i32, i32
  }
  func.func @transform_6(%arg0: i32, %arg1: i32) -> (i32, i32) {
    %c0_i32 = arith.constant 0 : i32
    %c0_i32_0 = arith.constant 0 : i32
    %c0_i32_1 = arith.constant 0 : i32
    return %c0_i32, %c0_i32_0 : i32, i32
  }
  func.func @transform_7(%arg0: i32, %arg1: i32) -> (i32, i32) {
    %c0_i32 = arith.constant 0 : i32
    %c0_i32_0 = arith.constant 0 : i32
    %c0_i32_1 = arith.constant 0 : i32
    return %c0_i32, %c0_i32_0 : i32, i32
  }
  func.func @transform_8(%arg0: i32, %arg1: i32) -> (i32, i32) {
    %c0_i32 = arith.constant 0 : i32
    %c0_i32_0 = arith.constant 0 : i32
    %c0_i32_1 = arith.constant 0 : i32
    return %c0_i32, %c0_i32_0 : i32, i32
  }
  func.func @transform_9(%arg0: i32, %arg1: i32) -> (i32, i32) {
    %c0_i32 = arith.constant 0 : i32
    %c0_i32_0 = arith.constant 0 : i32
    %c0_i32_1 = arith.constant 0 : i32
    return %c0_i32, %c0_i32_0 : i32, i32
  }
  func.func @transform_10(%arg0: i32, %arg1: i32) -> (i32, i32) {
    %c0_i32 = arith.constant 0 : i32
    %c0_i32_0 = arith.constant 0 : i32
    %c0_i32_1 = arith.constant 0 : i32
    return %c0_i32, %c0_i32_0 : i32, i32
  }
  func.func @transform_11(%arg0: i32, %arg1: i32) -> (i32, i32) {
    %c0_i32 = arith.constant 0 : i32
    %c0_i32_0 = arith.constant 0 : i32
    %c0_i32_1 = arith.constant 0 : i32
    return %c0_i32, %c0_i32_0 : i32, i32
  }
  func.func @transform_12(%arg0: i32, %arg1: i32) -> (i32, i32) {
    %c0_i32 = arith.constant 0 : i32
    %c0_i32_0 = arith.constant 0 : i32
    %c0_i32_1 = arith.constant 0 : i32
    return %c0_i32, %c0_i32_0 : i32, i32
  }
  func.func @transform_13(%arg0: i32, %arg1: i32) -> (i32, i32) {
    %c0_i32 = arith.constant 0 : i32
    %c0_i32_0 = arith.constant 0 : i32
    %c0_i32_1 = arith.constant 0 : i32
    return %c0_i32, %c0_i32_0 : i32, i32
  }
  func.func @transform_14(%arg0: i32, %arg1: i32) -> (i32, i32) {
    %c0_i32 = arith.constant 0 : i32
    %c0_i32_0 = arith.constant 0 : i32
    %c0_i32_1 = arith.constant 0 : i32
    return %c0_i32, %c0_i32_0 : i32, i32
  }
  func.func @transform_15(%arg0: i32, %arg1: i32) -> (i32, i32) {
    %c0_i32 = arith.constant 0 : i32
    %c0_i32_0 = arith.constant 0 : i32
    %c0_i32_1 = arith.constant 0 : i32
    return %c0_i32, %c0_i32_0 : i32, i32
  }
  func.func @transform_16(%arg0: i32, %arg1: i32) -> (i32, i32) {
    %c0_i32 = arith.constant 0 : i32
    %c0_i32_0 = arith.constant 0 : i32
    %c0_i32_1 = arith.constant 0 : i32
    return %c0_i32, %c0_i32_0 : i32, i32
  }
  func.func @transform_17(%arg0: i32, %arg1: i32) -> (i32, i32) {
    %c0_i32 = arith.constant 0 : i32
    %c0_i32_0 = arith.constant 0 : i32
    %c0_i32_1 = arith.constant 0 : i32
    return %c0_i32, %c0_i32_0 : i32, i32
  }
  func.func @transform_18(%arg0: i32, %arg1: i32) -> (i32, i32, i32) {
    %c0_i32 = arith.constant 0 : i32
    %c0_i32_0 = arith.constant 0 : i32
    return %arg0, %arg1, %c0_i32 : i32, i32, i32
  }
}

module attributes {stable_mosaic.version = 11 : i64} {
  func.func @_encoder_block_kernel(%arg0: i32, %arg1: i32, %arg2: memref<1x8x32xf32, #tpu.memory_space<vmem>>, %arg3: memref<1x16x32xf32, #tpu.memory_space<vmem>>, %arg4: memref<32x64xf32, #tpu.memory_space<vmem>>, %arg5: memref<1x64xf32, #tpu.memory_space<vmem>>, %arg6: memref<32x64xf32, #tpu.memory_space<vmem>>, %arg7: memref<1x64xf32, #tpu.memory_space<vmem>>, %arg8: memref<32x64xf32, #tpu.memory_space<vmem>>, %arg9: memref<1x64xf32, #tpu.memory_space<vmem>>, %arg10: memref<64x32xf32, #tpu.memory_space<vmem>>, %arg11: memref<1x32xf32, #tpu.memory_space<vmem>>, %arg12: memref<1x32xf32, #tpu.memory_space<vmem>>, %arg13: memref<1x32xf32, #tpu.memory_space<vmem>>, %arg14: memref<32x64xf32, #tpu.memory_space<vmem>>, %arg15: memref<1x64xf32, #tpu.memory_space<vmem>>, %arg16: memref<64x32xf32, #tpu.memory_space<vmem>>, %arg17: memref<1x32xf32, #tpu.memory_space<vmem>>, %arg18: memref<1x32xf32, #tpu.memory_space<vmem>>, %arg19: memref<1x32xf32, #tpu.memory_space<vmem>>, %arg20: memref<1x8x32xf32, #tpu.memory_space<vmem>>) attributes {dimension_semantics = [#tpu.dimension_semantics<parallel>, #tpu.dimension_semantics<parallel>], iteration_bounds = array<i64: 2, 2>, scalar_prefetch = 0 : i64, scratch_operands = 0 : i64, tpu.core_type = #tpu.core_type<tc>, window_params = [{transform_indices = @transform_0, window_bounds = array<i64: 1, 8, 32>}, {transform_indices = @transform_1, window_bounds = array<i64: 1, 16, 32>}, {pipeline_mode = #tpu.pipeline_mode<synchronous>, transform_indices = @transform_2, window_bounds = array<i64: 32, 64>}, {pipeline_mode = #tpu.pipeline_mode<synchronous>, transform_indices = @transform_3, window_bounds = array<i64: 1, 64>}, {pipeline_mode = #tpu.pipeline_mode<synchronous>, transform_indices = @transform_4, window_bounds = array<i64: 32, 64>}, {pipeline_mode = #tpu.pipeline_mode<synchronous>, transform_indices = @transform_5, window_bounds = array<i64: 1, 64>}, {pipeline_mode = #tpu.pipeline_mode<synchronous>, transform_indices = @transform_6, window_bounds = array<i64: 32, 64>}, {pipeline_mode = #tpu.pipeline_mode<synchronous>, transform_indices = @transform_7, window_bounds = array<i64: 1, 64>}, {pipeline_mode = #tpu.pipeline_mode<synchronous>, transform_indices = @transform_8, window_bounds = array<i64: 64, 32>}, {pipeline_mode = #tpu.pipeline_mode<synchronous>, transform_indices = @transform_9, window_bounds = array<i64: 1, 32>}, {pipeline_mode = #tpu.pipeline_mode<synchronous>, transform_indices = @transform_10, window_bounds = array<i64: 1, 32>}, {pipeline_mode = #tpu.pipeline_mode<synchronous>, transform_indices = @transform_11, window_bounds = array<i64: 1, 32>}, {pipeline_mode = #tpu.pipeline_mode<synchronous>, transform_indices = @transform_12, window_bounds = array<i64: 32, 64>}, {pipeline_mode = #tpu.pipeline_mode<synchronous>, transform_indices = @transform_13, window_bounds = array<i64: 1, 64>}, {pipeline_mode = #tpu.pipeline_mode<synchronous>, transform_indices = @transform_14, window_bounds = array<i64: 64, 32>}, {pipeline_mode = #tpu.pipeline_mode<synchronous>, transform_indices = @transform_15, window_bounds = array<i64: 1, 32>}, {pipeline_mode = #tpu.pipeline_mode<synchronous>, transform_indices = @transform_16, window_bounds = array<i64: 1, 32>}, {pipeline_mode = #tpu.pipeline_mode<synchronous>, transform_indices = @transform_17, window_bounds = array<i64: 1, 32>}, {transform_indices = @transform_18, window_bounds = array<i64: 1, 8, 32>}]} {
    %c0 = arith.constant 0 : index
    %c0_0 = arith.constant 0 : index
    %c0_1 = arith.constant 0 : index
    %0 = vector.load %arg2[%c0, %c0_0, %c0_1] : memref<1x8x32xf32, #tpu.memory_space<vmem>>, vector<1x8x32xf32>
    %1 = vector.shape_cast %0 : vector<1x8x32xf32> to vector<8x32xf32>
    %c0_2 = arith.constant 0 : index
    %c0_3 = arith.constant 0 : index
    %c0_4 = arith.constant 0 : index
    %2 = vector.load %arg3[%c0_2, %c0_3, %c0_4] : memref<1x16x32xf32, #tpu.memory_space<vmem>>, vector<1x16x32xf32>
    %3 = vector.shape_cast %2 : vector<1x16x32xf32> to vector<16x32xf32>
    %c0_5 = arith.constant 0 : index
    %c0_6 = arith.constant 0 : index
    %4 = vector.load %arg4[%c0_5, %c0_6] : memref<32x64xf32, #tpu.memory_space<vmem>>, vector<32x64xf32>
    %cst = arith.constant dense<0.000000e+00> : vector<8x64xf32>
    %5 = tpu.matmul %1, %4, %cst {dimension_numbers = #tpu.dot_dimension_numbers<[1], [0], [0], [1], [0, 0, 1, 1], [], []>} : vector<8x32xf32>, vector<32x64xf32>, vector<8x64xf32> -> vector<8x64xf32>
    %c0_7 = arith.constant 0 : index
    %c0_8 = arith.constant 0 : index
    %6 = vector.load %arg5[%c0_7, %c0_8] : memref<1x64xf32, #tpu.memory_space<vmem>>, vector<1x64xf32>
    %7 = vector.broadcast %6 : vector<1x64xf32> to vector<8x64xf32>
    %8 = arith.addf %5, %7 : vector<8x64xf32>
    %c0_9 = arith.constant 0 : index
    %c0_10 = arith.constant 0 : index
    %9 = vector.load %arg6[%c0_9, %c0_10] : memref<32x64xf32, #tpu.memory_space<vmem>>, vector<32x64xf32>
    %cst_11 = arith.constant dense<0.000000e+00> : vector<16x64xf32>
    %10 = tpu.matmul %3, %9, %cst_11 {dimension_numbers = #tpu.dot_dimension_numbers<[1], [0], [0], [1], [0, 0, 1, 1], [], []>} : vector<16x32xf32>, vector<32x64xf32>, vector<16x64xf32> -> vector<16x64xf32>
    %c0_12 = arith.constant 0 : index
    %c0_13 = arith.constant 0 : index
    %11 = vector.load %arg7[%c0_12, %c0_13] : memref<1x64xf32, #tpu.memory_space<vmem>>, vector<1x64xf32>
    %12 = vector.broadcast %11 : vector<1x64xf32> to vector<16x64xf32>
    %13 = arith.addf %10, %12 : vector<16x64xf32>
    %c0_14 = arith.constant 0 : index
    %c0_15 = arith.constant 0 : index
    %14 = vector.load %arg8[%c0_14, %c0_15] : memref<32x64xf32, #tpu.memory_space<vmem>>, vector<32x64xf32>
    %cst_16 = arith.constant dense<0.000000e+00> : vector<16x64xf32>
    %15 = tpu.matmul %3, %14, %cst_16 {dimension_numbers = #tpu.dot_dimension_numbers<[1], [0], [0], [1], [0, 0, 1, 1], [], []>} : vector<16x32xf32>, vector<32x64xf32>, vector<16x64xf32> -> vector<16x64xf32>
    %c0_17 = arith.constant 0 : index
    %c0_18 = arith.constant 0 : index
    %16 = vector.load %arg9[%c0_17, %c0_18] : memref<1x64xf32, #tpu.memory_space<vmem>>, vector<1x64xf32>
    %17 = vector.broadcast %16 : vector<1x64xf32> to vector<16x64xf32>
    %18 = arith.addf %15, %17 : vector<16x64xf32>
    %cst_19 = arith.constant 2.500000e-01 : f32
    %19 = vector.broadcast %cst_19 : f32 to vector<8x64xf32>
    %20 = arith.mulf %8, %19 : vector<8x64xf32>
    %cst_20 = arith.constant 0.000000e+00 : f32
    %21 = vector.broadcast %cst_20 : f32 to vector<8x32xf32>
    %22 = vector.extract_strided_slice %20 {offsets = [0, 0], sizes = [8, 16], strides = [1, 1]} : vector<8x64xf32> to vector<8x16xf32>
    %23 = vector.extract_strided_slice %13 {offsets = [0, 0], sizes = [16, 16], strides = [1, 1]} : vector<16x64xf32> to vector<16x16xf32>
    %24 = vector.extract_strided_slice %18 {offsets = [0, 0], sizes = [16, 16], strides = [1, 1]} : vector<16x64xf32> to vector<16x16xf32>
    %cst_21 = arith.constant dense<0.000000e+00> : vector<8x16xf32>
    %25 = tpu.matmul %22, %23, %cst_21 {dimension_numbers = #tpu.dot_dimension_numbers<[1], [1], [0], [0], [0, 0, 1, 0], [], []>} : vector<8x16xf32>, vector<16x16xf32>, vector<8x16xf32> -> vector<8x16xf32>
    %cst_22 = arith.constant dense<0xFF800000> : vector<8xf32>
    %26 = vector.multi_reduction <maximumf>, %25, %cst_22 [1] : vector<8x16xf32> to vector<8xf32>
    %27 = vector.shape_cast %26 : vector<8xf32> to vector<8x1xf32>
    %28 = vector.broadcast %27 : vector<8x1xf32> to vector<8x16xf32>
    %29 = arith.subf %25, %28 : vector<8x16xf32>
    %30 = math.exp %29 : vector<8x16xf32>
    %cst_23 = arith.constant dense<0.000000e+00> : vector<8xf32>
    %31 = vector.multi_reduction <add>, %30, %cst_23 [1] : vector<8x16xf32> to vector<8xf32>
    %32 = vector.shape_cast %31 : vector<8xf32> to vector<8x1xf32>
    %33 = vector.broadcast %32 : vector<8x1xf32> to vector<8x16xf32>
    %34 = arith.divf %30, %33 : vector<8x16xf32>
    %cst_24 = arith.constant dense<0.000000e+00> : vector<8x16xf32>
    %35 = tpu.matmul %34, %24, %cst_24 {dimension_numbers = #tpu.dot_dimension_numbers<[1], [0], [0], [1], [0, 0, 1, 1], [], []>} : vector<8x16xf32>, vector<16x16xf32>, vector<8x16xf32> -> vector<8x16xf32>
    %c0_25 = arith.constant 0 : index
    %c0_26 = arith.constant 0 : index
    %36 = vector.load %arg10[%c0_25, %c0_26] : memref<64x32xf32, #tpu.memory_space<vmem>>, vector<16x32xf32>
    %cst_27 = arith.constant dense<0.000000e+00> : vector<8x32xf32>
    %37 = tpu.matmul %35, %36, %cst_27 {dimension_numbers = #tpu.dot_dimension_numbers<[1], [0], [0], [1], [0, 0, 1, 1], [], []>} : vector<8x16xf32>, vector<16x32xf32>, vector<8x32xf32> -> vector<8x32xf32>
    %38 = arith.addf %21, %37 : vector<8x32xf32>
    %39 = vector.extract_strided_slice %20 {offsets = [0, 16], sizes = [8, 16], strides = [1, 1]} : vector<8x64xf32> to vector<8x16xf32>
    %40 = vector.extract_strided_slice %13 {offsets = [0, 16], sizes = [16, 16], strides = [1, 1]} : vector<16x64xf32> to vector<16x16xf32>
    %41 = vector.extract_strided_slice %18 {offsets = [0, 16], sizes = [16, 16], strides = [1, 1]} : vector<16x64xf32> to vector<16x16xf32>
    %cst_28 = arith.constant dense<0.000000e+00> : vector<8x16xf32>
    %42 = tpu.matmul %39, %40, %cst_28 {dimension_numbers = #tpu.dot_dimension_numbers<[1], [1], [0], [0], [0, 0, 1, 0], [], []>} : vector<8x16xf32>, vector<16x16xf32>, vector<8x16xf32> -> vector<8x16xf32>
    %cst_29 = arith.constant dense<0xFF800000> : vector<8xf32>
    %43 = vector.multi_reduction <maximumf>, %42, %cst_29 [1] : vector<8x16xf32> to vector<8xf32>
    %44 = vector.shape_cast %43 : vector<8xf32> to vector<8x1xf32>
    %45 = vector.broadcast %44 : vector<8x1xf32> to vector<8x16xf32>
    %46 = arith.subf %42, %45 : vector<8x16xf32>
    %47 = math.exp %46 : vector<8x16xf32>
    %cst_30 = arith.constant dense<0.000000e+00> : vector<8xf32>
    %48 = vector.multi_reduction <add>, %47, %cst_30 [1] : vector<8x16xf32> to vector<8xf32>
    %49 = vector.shape_cast %48 : vector<8xf32> to vector<8x1xf32>
    %50 = vector.broadcast %49 : vector<8x1xf32> to vector<8x16xf32>
    %51 = arith.divf %47, %50 : vector<8x16xf32>
    %cst_31 = arith.constant dense<0.000000e+00> : vector<8x16xf32>
    %52 = tpu.matmul %51, %41, %cst_31 {dimension_numbers = #tpu.dot_dimension_numbers<[1], [0], [0], [1], [0, 0, 1, 1], [], []>} : vector<8x16xf32>, vector<16x16xf32>, vector<8x16xf32> -> vector<8x16xf32>
    %c16 = arith.constant 16 : index
    %c0_32 = arith.constant 0 : index
    %53 = vector.load %arg10[%c16, %c0_32] : memref<64x32xf32, #tpu.memory_space<vmem>>, vector<16x32xf32>
    %cst_33 = arith.constant dense<0.000000e+00> : vector<8x32xf32>
    %54 = tpu.matmul %52, %53, %cst_33 {dimension_numbers = #tpu.dot_dimension_numbers<[1], [0], [0], [1], [0, 0, 1, 1], [], []>} : vector<8x16xf32>, vector<16x32xf32>, vector<8x32xf32> -> vector<8x32xf32>
    %55 = arith.addf %38, %54 : vector<8x32xf32>
    %56 = vector.extract_strided_slice %20 {offsets = [0, 32], sizes = [8, 16], strides = [1, 1]} : vector<8x64xf32> to vector<8x16xf32>
    %57 = vector.extract_strided_slice %13 {offsets = [0, 32], sizes = [16, 16], strides = [1, 1]} : vector<16x64xf32> to vector<16x16xf32>
    %58 = vector.extract_strided_slice %18 {offsets = [0, 32], sizes = [16, 16], strides = [1, 1]} : vector<16x64xf32> to vector<16x16xf32>
    %cst_34 = arith.constant dense<0.000000e+00> : vector<8x16xf32>
    %59 = tpu.matmul %56, %57, %cst_34 {dimension_numbers = #tpu.dot_dimension_numbers<[1], [1], [0], [0], [0, 0, 1, 0], [], []>} : vector<8x16xf32>, vector<16x16xf32>, vector<8x16xf32> -> vector<8x16xf32>
    %cst_35 = arith.constant dense<0xFF800000> : vector<8xf32>
    %60 = vector.multi_reduction <maximumf>, %59, %cst_35 [1] : vector<8x16xf32> to vector<8xf32>
    %61 = vector.shape_cast %60 : vector<8xf32> to vector<8x1xf32>
    %62 = vector.broadcast %61 : vector<8x1xf32> to vector<8x16xf32>
    %63 = arith.subf %59, %62 : vector<8x16xf32>
    %64 = math.exp %63 : vector<8x16xf32>
    %cst_36 = arith.constant dense<0.000000e+00> : vector<8xf32>
    %65 = vector.multi_reduction <add>, %64, %cst_36 [1] : vector<8x16xf32> to vector<8xf32>
    %66 = vector.shape_cast %65 : vector<8xf32> to vector<8x1xf32>
    %67 = vector.broadcast %66 : vector<8x1xf32> to vector<8x16xf32>
    %68 = arith.divf %64, %67 : vector<8x16xf32>
    %cst_37 = arith.constant dense<0.000000e+00> : vector<8x16xf32>
    %69 = tpu.matmul %68, %58, %cst_37 {dimension_numbers = #tpu.dot_dimension_numbers<[1], [0], [0], [1], [0, 0, 1, 1], [], []>} : vector<8x16xf32>, vector<16x16xf32>, vector<8x16xf32> -> vector<8x16xf32>
    %c32 = arith.constant 32 : index
    %c0_38 = arith.constant 0 : index
    %70 = vector.load %arg10[%c32, %c0_38] : memref<64x32xf32, #tpu.memory_space<vmem>>, vector<16x32xf32>
    %cst_39 = arith.constant dense<0.000000e+00> : vector<8x32xf32>
    %71 = tpu.matmul %69, %70, %cst_39 {dimension_numbers = #tpu.dot_dimension_numbers<[1], [0], [0], [1], [0, 0, 1, 1], [], []>} : vector<8x16xf32>, vector<16x32xf32>, vector<8x32xf32> -> vector<8x32xf32>
    %72 = arith.addf %55, %71 : vector<8x32xf32>
    %73 = vector.extract_strided_slice %20 {offsets = [0, 48], sizes = [8, 16], strides = [1, 1]} : vector<8x64xf32> to vector<8x16xf32>
    %74 = vector.extract_strided_slice %13 {offsets = [0, 48], sizes = [16, 16], strides = [1, 1]} : vector<16x64xf32> to vector<16x16xf32>
    %75 = vector.extract_strided_slice %18 {offsets = [0, 48], sizes = [16, 16], strides = [1, 1]} : vector<16x64xf32> to vector<16x16xf32>
    %cst_40 = arith.constant dense<0.000000e+00> : vector<8x16xf32>
    %76 = tpu.matmul %73, %74, %cst_40 {dimension_numbers = #tpu.dot_dimension_numbers<[1], [1], [0], [0], [0, 0, 1, 0], [], []>} : vector<8x16xf32>, vector<16x16xf32>, vector<8x16xf32> -> vector<8x16xf32>
    %cst_41 = arith.constant dense<0xFF800000> : vector<8xf32>
    %77 = vector.multi_reduction <maximumf>, %76, %cst_41 [1] : vector<8x16xf32> to vector<8xf32>
    %78 = vector.shape_cast %77 : vector<8xf32> to vector<8x1xf32>
    %79 = vector.broadcast %78 : vector<8x1xf32> to vector<8x16xf32>
    %80 = arith.subf %76, %79 : vector<8x16xf32>
    %81 = math.exp %80 : vector<8x16xf32>
    %cst_42 = arith.constant dense<0.000000e+00> : vector<8xf32>
    %82 = vector.multi_reduction <add>, %81, %cst_42 [1] : vector<8x16xf32> to vector<8xf32>
    %83 = vector.shape_cast %82 : vector<8xf32> to vector<8x1xf32>
    %84 = vector.broadcast %83 : vector<8x1xf32> to vector<8x16xf32>
    %85 = arith.divf %81, %84 : vector<8x16xf32>
    %cst_43 = arith.constant dense<0.000000e+00> : vector<8x16xf32>
    %86 = tpu.matmul %85, %75, %cst_43 {dimension_numbers = #tpu.dot_dimension_numbers<[1], [0], [0], [1], [0, 0, 1, 1], [], []>} : vector<8x16xf32>, vector<16x16xf32>, vector<8x16xf32> -> vector<8x16xf32>
    %c48 = arith.constant 48 : index
    %c0_44 = arith.constant 0 : index
    %87 = vector.load %arg10[%c48, %c0_44] : memref<64x32xf32, #tpu.memory_space<vmem>>, vector<16x32xf32>
    %cst_45 = arith.constant dense<0.000000e+00> : vector<8x32xf32>
    %88 = tpu.matmul %86, %87, %cst_45 {dimension_numbers = #tpu.dot_dimension_numbers<[1], [0], [0], [1], [0, 0, 1, 1], [], []>} : vector<8x16xf32>, vector<16x32xf32>, vector<8x32xf32> -> vector<8x32xf32>
    %89 = arith.addf %72, %88 : vector<8x32xf32>
    %c0_46 = arith.constant 0 : index
    %c0_47 = arith.constant 0 : index
    %90 = vector.load %arg11[%c0_46, %c0_47] : memref<1x32xf32, #tpu.memory_space<vmem>>, vector<1x32xf32>
    %91 = vector.broadcast %90 : vector<1x32xf32> to vector<8x32xf32>
    %92 = arith.addf %89, %91 : vector<8x32xf32>
    %93 = arith.addf %92, %1 : vector<8x32xf32>
    %c0_48 = arith.constant 0 : index
    %c0_49 = arith.constant 0 : index
    %94 = vector.load %arg12[%c0_48, %c0_49] : memref<1x32xf32, #tpu.memory_space<vmem>>, vector<1x32xf32>
    %c0_50 = arith.constant 0 : index
    %c0_51 = arith.constant 0 : index
    %95 = vector.load %arg13[%c0_50, %c0_51] : memref<1x32xf32, #tpu.memory_space<vmem>>, vector<1x32xf32>
    %cst_52 = arith.constant dense<0.000000e+00> : vector<8xf32>
    %96 = vector.multi_reduction <add>, %93, %cst_52 [1] : vector<8x32xf32> to vector<8xf32>
    %97 = vector.shape_cast %96 : vector<8xf32> to vector<8x1xf32>
    %cst_53 = arith.constant 3.200000e+01 : f32
    %98 = vector.broadcast %cst_53 : f32 to vector<8x1xf32>
    %99 = arith.divf %97, %98 : vector<8x1xf32>
    %100 = vector.broadcast %99 : vector<8x1xf32> to vector<8x32xf32>
    %101 = arith.subf %93, %100 : vector<8x32xf32>
    %102 = arith.mulf %101, %101 : vector<8x32xf32>
    %cst_54 = arith.constant dense<0.000000e+00> : vector<8xf32>
    %103 = vector.multi_reduction <add>, %102, %cst_54 [1] : vector<8x32xf32> to vector<8xf32>
    %104 = vector.shape_cast %103 : vector<8xf32> to vector<8x1xf32>
    %cst_55 = arith.constant 3.200000e+01 : f32
    %105 = vector.broadcast %cst_55 : f32 to vector<8x1xf32>
    %106 = arith.divf %104, %105 : vector<8x1xf32>
    %107 = vector.broadcast %99 : vector<8x1xf32> to vector<8x32xf32>
    %108 = arith.subf %93, %107 : vector<8x32xf32>
    %cst_56 = arith.constant 9.99999974E-6 : f32
    %109 = vector.broadcast %cst_56 : f32 to vector<8x1xf32>
    %110 = arith.addf %106, %109 : vector<8x1xf32>
    %111 = math.rsqrt %110 : vector<8x1xf32>
    %112 = vector.broadcast %111 : vector<8x1xf32> to vector<8x32xf32>
    %113 = arith.mulf %108, %112 : vector<8x32xf32>
    %114 = vector.broadcast %94 : vector<1x32xf32> to vector<8x32xf32>
    %115 = arith.mulf %113, %114 : vector<8x32xf32>
    %116 = vector.broadcast %95 : vector<1x32xf32> to vector<8x32xf32>
    %117 = arith.addf %115, %116 : vector<8x32xf32>
    %c0_57 = arith.constant 0 : index
    %c0_58 = arith.constant 0 : index
    %118 = vector.load %arg14[%c0_57, %c0_58] : memref<32x64xf32, #tpu.memory_space<vmem>>, vector<32x64xf32>
    %cst_59 = arith.constant dense<0.000000e+00> : vector<8x64xf32>
    %119 = tpu.matmul %117, %118, %cst_59 {dimension_numbers = #tpu.dot_dimension_numbers<[1], [0], [0], [1], [0, 0, 1, 1], [], []>} : vector<8x32xf32>, vector<32x64xf32>, vector<8x64xf32> -> vector<8x64xf32>
    %c0_60 = arith.constant 0 : index
    %c0_61 = arith.constant 0 : index
    %120 = vector.load %arg15[%c0_60, %c0_61] : memref<1x64xf32, #tpu.memory_space<vmem>>, vector<1x64xf32>
    %121 = vector.broadcast %120 : vector<1x64xf32> to vector<8x64xf32>
    %122 = arith.addf %119, %121 : vector<8x64xf32>
    %cst_62 = arith.constant 0.000000e+00 : f32
    %123 = vector.broadcast %cst_62 : f32 to vector<8x64xf32>
    %124 = arith.maximumf %122, %123 : vector<8x64xf32>
    %c0_63 = arith.constant 0 : index
    %c0_64 = arith.constant 0 : index
    %125 = vector.load %arg16[%c0_63, %c0_64] : memref<64x32xf32, #tpu.memory_space<vmem>>, vector<64x32xf32>
    %cst_65 = arith.constant dense<0.000000e+00> : vector<8x32xf32>
    %126 = tpu.matmul %124, %125, %cst_65 {dimension_numbers = #tpu.dot_dimension_numbers<[1], [0], [0], [1], [0, 0, 1, 1], [], []>} : vector<8x64xf32>, vector<64x32xf32>, vector<8x32xf32> -> vector<8x32xf32>
    %c0_66 = arith.constant 0 : index
    %c0_67 = arith.constant 0 : index
    %127 = vector.load %arg17[%c0_66, %c0_67] : memref<1x32xf32, #tpu.memory_space<vmem>>, vector<1x32xf32>
    %128 = vector.broadcast %127 : vector<1x32xf32> to vector<8x32xf32>
    %129 = arith.addf %126, %128 : vector<8x32xf32>
    %130 = arith.addf %129, %117 : vector<8x32xf32>
    %c0_68 = arith.constant 0 : index
    %c0_69 = arith.constant 0 : index
    %131 = vector.load %arg18[%c0_68, %c0_69] : memref<1x32xf32, #tpu.memory_space<vmem>>, vector<1x32xf32>
    %c0_70 = arith.constant 0 : index
    %c0_71 = arith.constant 0 : index
    %132 = vector.load %arg19[%c0_70, %c0_71] : memref<1x32xf32, #tpu.memory_space<vmem>>, vector<1x32xf32>
    %cst_72 = arith.constant dense<0.000000e+00> : vector<8xf32>
    %133 = vector.multi_reduction <add>, %130, %cst_72 [1] : vector<8x32xf32> to vector<8xf32>
    %134 = vector.shape_cast %133 : vector<8xf32> to vector<8x1xf32>
    %cst_73 = arith.constant 3.200000e+01 : f32
    %135 = vector.broadcast %cst_73 : f32 to vector<8x1xf32>
    %136 = arith.divf %134, %135 : vector<8x1xf32>
    %137 = vector.broadcast %136 : vector<8x1xf32> to vector<8x32xf32>
    %138 = arith.subf %130, %137 : vector<8x32xf32>
    %139 = arith.mulf %138, %138 : vector<8x32xf32>
    %cst_74 = arith.constant dense<0.000000e+00> : vector<8xf32>
    %140 = vector.multi_reduction <add>, %139, %cst_74 [1] : vector<8x32xf32> to vector<8xf32>
    %141 = vector.shape_cast %140 : vector<8xf32> to vector<8x1xf32>
    %cst_75 = arith.constant 3.200000e+01 : f32
    %142 = vector.broadcast %cst_75 : f32 to vector<8x1xf32>
    %143 = arith.divf %141, %142 : vector<8x1xf32>
    %144 = vector.broadcast %136 : vector<8x1xf32> to vector<8x32xf32>
    %145 = arith.subf %130, %144 : vector<8x32xf32>
    %cst_76 = arith.constant 9.99999974E-6 : f32
    %146 = vector.broadcast %cst_76 : f32 to vector<8x1xf32>
    %147 = arith.addf %143, %146 : vector<8x1xf32>
    %148 = math.rsqrt %147 : vector<8x1xf32>
    %149 = vector.broadcast %148 : vector<8x1xf32> to vector<8x32xf32>
    %150 = arith.mulf %145, %149 : vector<8x32xf32>
    %151 = vector.broadcast %131 : vector<1x32xf32> to vector<8x32xf32>
    %152 = arith.mulf %150, %151 : vector<8x32xf32>
    %153 = vector.broadcast %132 : vector<1x32xf32> to vector<8x32xf32>
    %154 = arith.addf %152, %153 : vector<8x32xf32>
    %c0_77 = arith.constant 0 : index
    %c0_78 = arith.constant 0 : index
    %c0_79 = arith.constant 0 : index
    %155 = vector.load %arg20[%c0_77, %c0_78, %c0_79] : memref<1x8x32xf32, #tpu.memory_space<vmem>>, vector<1x8x32xf32>
    %156 = vector.shape_cast %155 : vector<1x8x32xf32> to vector<8x32xf32>
    %157 = vector.shape_cast %154 : vector<8x32xf32> to vector<1x8x32xf32>
    tpu.vector_store %arg20[%c0_77, %c0_78, %c0_79], %157 {strides = array<i32>} : memref<1x8x32xf32, #tpu.memory_space<vmem>>, vector<1x8x32xf32>,
    return
  }
  func.func @transform_0(%arg0: i32, %arg1: i32) -> (i32, i32, i32) {
    %c0_i32 = arith.constant 0 : i32
    %c0_i32_0 = arith.constant 0 : i32
    return %arg0, %arg1, %c0_i32 : i32, i32, i32
  }
  func.func @transform_1(%arg0: i32, %arg1: i32) -> (i32, i32, i32) {
    %c0_i32 = arith.constant 0 : i32
    %c0_i32_0 = arith.constant 0 : i32
    %c0_i32_1 = arith.constant 0 : i32
    return %arg0, %c0_i32, %c0_i32_0 : i32, i32, i32
  }
  func.func @transform_2(%arg0: i32, %arg1: i32) -> (i32, i32) {
    %c0_i32 = arith.constant 0 : i32
    %c0_i32_0 = arith.constant 0 : i32
    %c0_i32_1 = arith.constant 0 : i32
    return %c0_i32, %c0_i32_0 : i32, i32
  }
  func.func @transform_3(%arg0: i32, %arg1: i32) -> (i32, i32) {
    %c0_i32 = arith.constant 0 : i32
    %c0_i32_0 = arith.constant 0 : i32
    %c0_i32_1 = arith.constant 0 : i32
    return %c0_i32, %c0_i32_0 : i32, i32
  }
  func.func @transform_4(%arg0: i32, %arg1: i32) -> (i32, i32) {
    %c0_i32 = arith.constant 0 : i32
    %c0_i32_0 = arith.constant 0 : i32
    %c0_i32_1 = arith.constant 0 : i32
    return %c0_i32, %c0_i32_0 : i32, i32
  }
  func.func @transform_5(%arg0: i32, %arg1: i32) -> (i32, i32) {
    %c0_i32 = arith.constant 0 : i32
    %c0_i32_0 = arith.constant 0 : i32
    %c0_i32_1 = arith.constant 0 : i32
    return %c0_i32, %c0_i32_0 : i32, i32
  }
  func.func @transform_6(%arg0: i32, %arg1: i32) -> (i32, i32) {
    %c0_i32 = arith.constant 0 : i32
    %c0_i32_0 = arith.constant 0 : i32
    %c0_i32_1 = arith.constant 0 : i32
    return %c0_i32, %c0_i32_0 : i32, i32
  }
  func.func @transform_7(%arg0: i32, %arg1: i32) -> (i32, i32) {
    %c0_i32 = arith.constant 0 : i32
    %c0_i32_0 = arith.constant 0 : i32
    %c0_i32_1 = arith.constant 0 : i32
    return %c0_i32, %c0_i32_0 : i32, i32
  }
  func.func @transform_8(%arg0: i32, %arg1: i32) -> (i32, i32) {
    %c0_i32 = arith.constant 0 : i32
    %c0_i32_0 = arith.constant 0 : i32
    %c0_i32_1 = arith.constant 0 : i32
    return %c0_i32, %c0_i32_0 : i32, i32
  }
  func.func @transform_9(%arg0: i32, %arg1: i32) -> (i32, i32) {
    %c0_i32 = arith.constant 0 : i32
    %c0_i32_0 = arith.constant 0 : i32
    %c0_i32_1 = arith.constant 0 : i32
    return %c0_i32, %c0_i32_0 : i32, i32
  }
  func.func @transform_10(%arg0: i32, %arg1: i32) -> (i32, i32) {
    %c0_i32 = arith.constant 0 : i32
    %c0_i32_0 = arith.constant 0 : i32
    %c0_i32_1 = arith.constant 0 : i32
    return %c0_i32, %c0_i32_0 : i32, i32
  }
  func.func @transform_11(%arg0: i32, %arg1: i32) -> (i32, i32) {
    %c0_i32 = arith.constant 0 : i32
    %c0_i32_0 = arith.constant 0 : i32
    %c0_i32_1 = arith.constant 0 : i32
    return %c0_i32, %c0_i32_0 : i32, i32
  }
  func.func @transform_12(%arg0: i32, %arg1: i32) -> (i32, i32) {
    %c0_i32 = arith.constant 0 : i32
    %c0_i32_0 = arith.constant 0 : i32
    %c0_i32_1 = arith.constant 0 : i32
    return %c0_i32, %c0_i32_0 : i32, i32
  }
  func.func @transform_13(%arg0: i32, %arg1: i32) -> (i32, i32) {
    %c0_i32 = arith.constant 0 : i32
    %c0_i32_0 = arith.constant 0 : i32
    %c0_i32_1 = arith.constant 0 : i32
    return %c0_i32, %c0_i32_0 : i32, i32
  }
  func.func @transform_14(%arg0: i32, %arg1: i32) -> (i32, i32) {
    %c0_i32 = arith.constant 0 : i32
    %c0_i32_0 = arith.constant 0 : i32
    %c0_i32_1 = arith.constant 0 : i32
    return %c0_i32, %c0_i32_0 : i32, i32
  }
  func.func @transform_15(%arg0: i32, %arg1: i32) -> (i32, i32) {
    %c0_i32 = arith.constant 0 : i32
    %c0_i32_0 = arith.constant 0 : i32
    %c0_i32_1 = arith.constant 0 : i32
    return %c0_i32, %c0_i32_0 : i32, i32
  }
  func.func @transform_16(%arg0: i32, %arg1: i32) -> (i32, i32) {
    %c0_i32 = arith.constant 0 : i32
    %c0_i32_0 = arith.constant 0 : i32
    %c0_i32_1 = arith.constant 0 : i32
    return %c0_i32, %c0_i32_0 : i32, i32
  }
  func.func @transform_17(%arg0: i32, %arg1: i32) -> (i32, i32) {
    %c0_i32 = arith.constant 0 : i32
    %c0_i32_0 = arith.constant 0 : i32
    %c0_i32_1 = arith.constant 0 : i32
    return %c0_i32, %c0_i32_0 : i32, i32
  }
  func.func @transform_18(%arg0: i32, %arg1: i32) -> (i32, i32, i32) {
    %c0_i32 = arith.constant 0 : i32
    %c0_i32_0 = arith.constant 0 : i32
    return %arg0, %arg1, %c0_i32 : i32, i32, i32
  }
}

</mosaic_0001>

<llo_original>
// kernel: tpu_custom_call.1
$region0: #{tpu_custom_call.1}
  #allocation0 [shape = 'u32[]', space=smem, size = 0x4, offset = 0x4, fixed_abs, tag = 'smem constant byte address 0x4 - core index']
  #allocation1 [shape = 'u32[72,128]{1,0:T(1,128)}', space=vmem, size = 0x9000, scoped, tag = 'internal scratch']
  %s0 = inlined_call_operand.vmem [shape: f32[2,16,32], index: 0, kind: input, shape index: {}]
  %s1 = inlined_call_operand.vmem [shape: f32[2,16,32], index: 1, kind: input, shape index: {}]
  %s2 = inlined_call_operand.vmem [shape: f32[32,64], index: 2, kind: input, shape index: {}]
  %s3 = inlined_call_operand.vmem [shape: f32[1,64], index: 3, kind: input, shape index: {}]
  %s4 = inlined_call_operand.vmem [shape: f32[32,64], index: 4, kind: input, shape index: {}]
  %s5 = inlined_call_operand.vmem [shape: f32[1,64], index: 5, kind: input, shape index: {}]
  %s6 = inlined_call_operand.vmem [shape: f32[32,64], index: 6, kind: input, shape index: {}]
  %s7 = inlined_call_operand.vmem [shape: f32[1,64], index: 7, kind: input, shape index: {}]
  %s8 = inlined_call_operand.vmem [shape: f32[64,32], index: 8, kind: input, shape index: {}]
  %s9 = inlined_call_operand.vmem [shape: f32[1,32], index: 9, kind: input, shape index: {}]
  %s10 = inlined_call_operand.vmem [shape: f32[1,32], index: 10, kind: input, shape index: {}]
  %s11 = inlined_call_operand.vmem [shape: f32[1,32], index: 11, kind: input, shape index: {}]
  %s12 = inlined_call_operand.vmem [shape: f32[32,64], index: 12, kind: input, shape index: {}]
  %s13 = inlined_call_operand.vmem [shape: f32[1,64], index: 13, kind: input, shape index: {}]
  %s14 = inlined_call_operand.vmem [shape: f32[64,32], index: 14, kind: input, shape index: {}]
  %s15 = inlined_call_operand.vmem [shape: f32[1,32], index: 15, kind: input, shape index: {}]
  %s16 = inlined_call_operand.vmem [shape: f32[1,32], index: 16, kind: input, shape index: {}]
  %s17 = inlined_call_operand.vmem [shape: f32[1,32], index: 17, kind: input, shape index: {}]
  %s18 = inlined_call_operand.hbm [shape: f32[2,16,32], index: 18, kind: output, shape index: {}]
  %s19 = sld [smem:[#allocation0]]
  $region105: #{tpu_custom_call.1} parent=0
    _
  %s21 = ssub.s32 1, %s19
  %s22 = scalar_select 0, %s21, %s19
  $region1: #{tpu_custom_call.1} parent=0
    #allocation2 [shape = 'u8[8192]{0}', space=vmem, size = 0x2000, scoped, tag = 'output window, operand 0']
    #allocation3 [shape = 's32[2]{0}', space=sflag, size = 0x8, scoped, tag = 'scoped memory for tpu_custom_call.1']
    %23 = vsyncpa [#allocation3], 0
    %s24 = scalar_lea.sflag [#allocation3], 1
    %25 = vsyncpa %s24, 0
    loop: start=0, step=1, limit=6
    $region2: #{tpu_custom_call.1} parent=1 // loop_pre_header
      _
    $region3: #{tpu_custom_call.1} parent=1 // loop_header
      %s27 = sphi 0, %s31
      %p28 = scmp.ge.s32.totalorder %s27, 6
      %s34 = sphi 0, %s46
      %s35 = sphi 0, %s42
      %s36 = sphi 0, %s34
      %s37 = sphi 0, %s35
      %s38 = sphi 0, %s36
      %s39 = sphi 0, %s37
      %s51 = sphi 0, %s53
      %s54 = sphi 0, %s51
      %s55 = sphi 0, %s54
      %s71 = sphi 0, %s55
      %s77 = sphi 0, %s79
      %s80 = sphi 0, %s77
      %s81 = sphi 0, %s80
      %s97 = sphi 0, %s81
      %s101 = sphi 0, %s101
      %s103 = sphi 0, %s101
      %s104 = sphi 0, %s103
      %s118 = sphi 0, %s104
      %s122 = sphi 0, %s122
      %s124 = sphi 0, %s122
      %s125 = sphi 0, %s124
      %s139 = sphi 0, %s125
      %s143 = sphi 0, %s143
      %s145 = sphi 0, %s143
      %s146 = sphi 0, %s145
      %s160 = sphi 0, %s146
      %s164 = sphi 0, %s164
      %s166 = sphi 0, %s164
      %s167 = sphi 0, %s166
      %s181 = sphi 0, %s167
      %s185 = sphi 0, %s185
      %s187 = sphi 0, %s185
      %s188 = sphi 0, %s187
      %s202 = sphi 0, %s188
      %s206 = sphi 0, %s206
      %s208 = sphi 0, %s206
      %s209 = sphi 0, %s208
      %s223 = sphi 0, %s209
      %s227 = sphi 0, %s227
      %s229 = sphi 0, %s227
      %s230 = sphi 0, %s229
      %s244 = sphi 0, %s230
      %s248 = sphi 0, %s248
      %s250 = sphi 0, %s248
      %s251 = sphi 0, %s250
      %s265 = sphi 0, %s251
      %s269 = sphi 0, %s269
      %s271 = sphi 0, %s269
      %s272 = sphi 0, %s271
      %s286 = sphi 0, %s272
      %s290 = sphi 0, %s290
      %s292 = sphi 0, %s290
      %s293 = sphi 0, %s292
      %s307 = sphi 0, %s293
      %s311 = sphi 0, %s311
      %s313 = sphi 0, %s311
      %s314 = sphi 0, %s313
      %s328 = sphi 0, %s314
      %s332 = sphi 0, %s332
      %s334 = sphi 0, %s332
      %s335 = sphi 0, %s334
      %s349 = sphi 0, %s335
      %s353 = sphi 0, %s353
      %s355 = sphi 0, %s353
      %s356 = sphi 0, %s355
      %s370 = sphi 0, %s356
      %s374 = sphi 0, %s374
      %s376 = sphi 0, %s374
      %s377 = sphi 0, %s376
      %s391 = sphi 0, %s377
      %s395 = sphi 0, %s395
      %s397 = sphi 0, %s395
      %s398 = sphi 0, %s397
      %s412 = sphi 0, %s398
      %s416 = sphi 0, %s416
      %s418 = sphi 0, %s416
      %s419 = sphi 0, %s418
      %s433 = sphi 0, %s419
      %s441 = sphi 0, %s443
      %s444 = sphi 0, %s441
      %s445 = sphi 0, %s444
      %s461 = sphi 0, %s445
    $region4: #{tpu_custom_call.1} parent=1 // loop_header_branch
      %30 = sbr.rel (%p28) target = $region8
    $region5: #{tpu_custom_call.1} parent=1 // loop_body
      %s32 = ssub.s32 %s27, 1
      %s33 = ssub.s32 %s27, 2
      %s40 = sadd.s32 1, %s35
      %p41 = scmp.ge.s32.totalorder %s40, 2
      %s42 = scalar_select %p41, 0, %s40
      %s43 = sadd.s32 1, %s34
      %s44 = scalar_select %p41, %s43, %s34
      %p45 = scmp.ge.s32.totalorder %s44, 2
      %s46 = scalar_select %p45, 0, %s44
      %s47 = ssub.s32 %s34, %s46
      %s48 = ssub.s32 %s35, %s42
      %s49 = sor.u32 %s47, %s48
      %p50 = scmp.eq.s32.totalorder %s49, 0
      %s52 = sadd.s32 %s51, 1
      %s53 = scalar_select %p50, %s51, %s52
      %p56 = pneg %p50
      %p57 = scmp.eq.s32.totalorder %s27, 3
      %p58 = por %p56, %p57
      %p59 = scmp.ne.s32.totalorder %s51, %s54
      %p60 = scmp.eq.s32.totalorder %s27, 0
      %p61 = por %p59, %p60
      %p62 = scmp.ne.s32.totalorder %s51, %s54
      %p63 = scmp.eq.s32.totalorder %s32, 3
      %p64 = por %p62, %p63
      %p65 = scmp.ne.s32.totalorder %s54, %s55
      %p66 = scmp.eq.s32.totalorder %s32, 0
      %p67 = por %p65, %p66
      %p68 = scmp.ne.s32.totalorder %s54, %s55
      %p69 = scmp.eq.s32.totalorder %s33, 3
      %p70 = por %p68, %p69
      %p72 = scmp.ne.s32.totalorder %s55, %s71
      %p73 = scmp.eq.s32.totalorder %s33, 0
      %p74 = por %p72, %p73
      %s75 = ssub.s32 %s34, %s46
      %p76 = scmp.eq.s32.totalorder %s75, 0
      %s78 = sadd.s32 %s77, 1
      %s79 = scalar_select %p76, %s77, %s78
      %p82 = pneg %p76
      %p83 = scmp.eq.s32.totalorder %s27, 3
      %p84 = por %p82, %p83
      %p85 = scmp.ne.s32.totalorder %s77, %s80
      %p86 = scmp.eq.s32.totalorder %s27, 0
      %p87 = por %p85, %p86
      %p88 = scmp.ne.s32.totalorder %s77, %s80
      %p89 = scmp.eq.s32.totalorder %s32, 3
      %p90 = por %p88, %p89
      %p91 = scmp.ne.s32.totalorder %s80, %s81
      %p92 = scmp.eq.s32.totalorder %s32, 0
      %p93 = por %p91, %p92
      %p94 = scmp.ne.s32.totalorder %s80, %s81
      %p95 = scmp.eq.s32.totalorder %s33, 3
      %p96 = por %p94, %p95
      %p98 = scmp.ne.s32.totalorder %s81, %s97
      %p99 = scmp.eq.s32.totalorder %s33, 0
      %p100 = por %p98, %p99
      %s102 = sadd.s32 %s101, 1
      %p105 = scmp.eq.s32.totalorder %s27, 3
      %p106 = scmp.ne.s32.totalorder %s101, %s103
      %p107 = scmp.eq.s32.totalorder %s27, 0
      %p108 = por %p106, %p107
      %p109 = scmp.ne.s32.totalorder %s101, %s103
      %p110 = scmp.eq.s32.totalorder %s32, 3
      %p111 = por %p109, %p110
      %p112 = scmp.ne.s32.totalorder %s103, %s104
      %p113 = scmp.eq.s32.totalorder %s32, 0
      %p114 = por %p112, %p113
      %p115 = scmp.ne.s32.totalorder %s103, %s104
      %p116 = scmp.eq.s32.totalorder %s33, 3
      %p117 = por %p115, %p116
      %p119 = scmp.ne.s32.totalorder %s104, %s118
      %p120 = scmp.eq.s32.totalorder %s33, 0
      %p121 = por %p119, %p120
      %s123 = sadd.s32 %s122, 1
      %p126 = scmp.eq.s32.totalorder %s27, 3
      %p127 = scmp.ne.s32.totalorder %s122, %s124
      %p128 = scmp.eq.s32.totalorder %s27, 0
      %p129 = por %p127, %p128
      %p130 = scmp.ne.s32.totalorder %s122, %s124
      %p131 = scmp.eq.s32.totalorder %s32, 3
      %p132 = por %p130, %p131
      %p133 = scmp.ne.s32.totalorder %s124, %s125
      %p134 = scmp.eq.s32.totalorder %s32, 0
      %p135 = por %p133, %p134
      %p136 = scmp.ne.s32.totalorder %s124, %s125
      %p137 = scmp.eq.s32.totalorder %s33, 3
      %p138 = por %p136, %p137
      %p140 = scmp.ne.s32.totalorder %s125, %s139
      %p141 = scmp.eq.s32.totalorder %s33, 0
      %p142 = por %p140, %p141
      %s144 = sadd.s32 %s143, 1
      %p147 = scmp.eq.s32.totalorder %s27, 3
      %p148 = scmp.ne.s32.totalorder %s143, %s145
      %p149 = scmp.eq.s32.totalorder %s27, 0
      %p150 = por %p148, %p149
      %p151 = scmp.ne.s32.totalorder %s143, %s145
      %p152 = scmp.eq.s32.totalorder %s32, 3
      %p153 = por %p151, %p152
      %p154 = scmp.ne.s32.totalorder %s145, %s146
      %p155 = scmp.eq.s32.totalorder %s32, 0
      %p156 = por %p154, %p155
      %p157 = scmp.ne.s32.totalorder %s145, %s146
      %p158 = scmp.eq.s32.totalorder %s33, 3
      %p159 = por %p157, %p158
      %p161 = scmp.ne.s32.totalorder %s146, %s160
      %p162 = scmp.eq.s32.totalorder %s33, 0
      %p163 = por %p161, %p162
      %s165 = sadd.s32 %s164, 1
      %p168 = scmp.eq.s32.totalorder %s27, 3
      %p169 = scmp.ne.s32.totalorder %s164, %s166
      %p170 = scmp.eq.s32.totalorder %s27, 0
      %p171 = por %p169, %p170
      %p172 = scmp.ne.s32.totalorder %s164, %s166
      %p173 = scmp.eq.s32.totalorder %s32, 3
      %p174 = por %p172, %p173
      %p175 = scmp.ne.s32.totalorder %s166, %s167
      %p176 = scmp.eq.s32.totalorder %s32, 0
      %p177 = por %p175, %p176
      %p178 = scmp.ne.s32.totalorder %s166, %s167
      %p179 = scmp.eq.s32.totalorder %s33, 3
      %p180 = por %p178, %p179
      %p182 = scmp.ne.s32.totalorder %s167, %s181
      %p183 = scmp.eq.s32.totalorder %s33, 0
      %p184 = por %p182, %p183
      %s186 = sadd.s32 %s185, 1
      %p189 = scmp.eq.s32.totalorder %s27, 3
      %p190 = scmp.ne.s32.totalorder %s185, %s187
      %p191 = scmp.eq.s32.totalorder %s27, 0
      %p192 = por %p190, %p191
      %p193 = scmp.ne.s32.totalorder %s185, %s187
      %p194 = scmp.eq.s32.totalorder %s32, 3
      %p195 = por %p193, %p194
      %p196 = scmp.ne.s32.totalorder %s187, %s188
      %p197 = scmp.eq.s32.totalorder %s32, 0
      %p198 = por %p196, %p197
      %p199 = scmp.ne.s32.totalorder %s187, %s188
      %p200 = scmp.eq.s32.totalorder %s33, 3
      %p201 = por %p199, %p200
      %p203 = scmp.ne.s32.totalorder %s188, %s202
      %p204 = scmp.eq.s32.totalorder %s33, 0
      %p205 = por %p203, %p204
      %s207 = sadd.s32 %s206, 1
      %p210 = scmp.eq.s32.totalorder %s27, 3
      %p211 = scmp.ne.s32.totalorder %s206, %s208
      %p212 = scmp.eq.s32.totalorder %s27, 0
      %p213 = por %p211, %p212
      %p214 = scmp.ne.s32.totalorder %s206, %s208
      %p215 = scmp.eq.s32.totalorder %s32, 3
      %p216 = por %p214, %p215
      %p217 = scmp.ne.s32.totalorder %s208, %s209
      %p218 = scmp.eq.s32.totalorder %s32, 0
      %p219 = por %p217, %p218
      %p220 = scmp.ne.s32.totalorder %s208, %s209
      %p221 = scmp.eq.s32.totalorder %s33, 3
      %p222 = por %p220, %p221
      %p224 = scmp.ne.s32.totalorder %s209, %s223
      %p225 = scmp.eq.s32.totalorder %s33, 0
      %p226 = por %p224, %p225
      %s228 = sadd.s32 %s227, 1
      %p231 = scmp.eq.s32.totalorder %s27, 3
      %p232 = scmp.ne.s32.totalorder %s227, %s229
      %p233 = scmp.eq.s32.totalorder %s27, 0
      %p234 = por %p232, %p233
      %p235 = scmp.ne.s32.totalorder %s227, %s229
      %p236 = scmp.eq.s32.totalorder %s32, 3
      %p237 = por %p235, %p236
      %p238 = scmp.ne.s32.totalorder %s229, %s230
      %p239 = scmp.eq.s32.totalorder %s32, 0
      %p240 = por %p238, %p239
      %p241 = scmp.ne.s32.totalorder %s229, %s230
      %p242 = scmp.eq.s32.totalorder %s33, 3
      %p243 = por %p241, %p242
      %p245 = scmp.ne.s32.totalorder %s230, %s244
      %p246 = scmp.eq.s32.totalorder %s33, 0
      %p247 = por %p245, %p246
      %s249 = sadd.s32 %s248, 1
      %p252 = scmp.eq.s32.totalorder %s27, 3
      %p253 = scmp.ne.s32.totalorder %s248, %s250
      %p254 = scmp.eq.s32.totalorder %s27, 0
      %p255 = por %p253, %p254
      %p256 = scmp.ne.s32.totalorder %s248, %s250
      %p257 = scmp.eq.s32.totalorder %s32, 3
      %p258 = por %p256, %p257
      %p259 = scmp.ne.s32.totalorder %s250, %s251
      %p260 = scmp.eq.s32.totalorder %s32, 0
      %p261 = por %p259, %p260
      %p262 = scmp.ne.s32.totalorder %s250, %s251
      %p263 = scmp.eq.s32.totalorder %s33, 3
      %p264 = por %p262, %p263
      %p266 = scmp.ne.s32.totalorder %s251, %s265
      %p267 = scmp.eq.s32.totalorder %s33, 0
      %p268 = por %p266, %p267
      %s270 = sadd.s32 %s269, 1
      %p273 = scmp.eq.s32.totalorder %s27, 3
      %p274 = scmp.ne.s32.totalorder %s269, %s271
      %p275 = scmp.eq.s32.totalorder %s27, 0
      %p276 = por %p274, %p275
      %p277 = scmp.ne.s32.totalorder %s269, %s271
      %p278 = scmp.eq.s32.totalorder %s32, 3
      %p279 = por %p277, %p278
      %p280 = scmp.ne.s32.totalorder %s271, %s272
      %p281 = scmp.eq.s32.totalorder %s32, 0
      %p282 = por %p280, %p281
      %p283 = scmp.ne.s32.totalorder %s271, %s272
      %p284 = scmp.eq.s32.totalorder %s33, 3
      %p285 = por %p283, %p284
      %p287 = scmp.ne.s32.totalorder %s272, %s286
      %p288 = scmp.eq.s32.totalorder %s33, 0
      %p289 = por %p287, %p288
      %s291 = sadd.s32 %s290, 1
      %p294 = scmp.eq.s32.totalorder %s27, 3
      %p295 = scmp.ne.s32.totalorder %s290, %s292
      %p296 = scmp.eq.s32.totalorder %s27, 0
      %p297 = por %p295, %p296
      %p298 = scmp.ne.s32.totalorder %s290, %s292
      %p299 = scmp.eq.s32.totalorder %s32, 3
      %p300 = por %p298, %p299
      %p301 = scmp.ne.s32.totalorder %s292, %s293
      %p302 = scmp.eq.s32.totalorder %s32, 0
      %p303 = por %p301, %p302
      %p304 = scmp.ne.s32.totalorder %s292, %s293
      %p305 = scmp.eq.s32.totalorder %s33, 3
      %p306 = por %p304, %p305
      %p308 = scmp.ne.s32.totalorder %s293, %s307
      %p309 = scmp.eq.s32.totalorder %s33, 0
      %p310 = por %p308, %p309
      %s312 = sadd.s32 %s311, 1
      %p315 = scmp.eq.s32.totalorder %s27, 3
      %p316 = scmp.ne.s32.totalorder %s311, %s313
      %p317 = scmp.eq.s32.totalorder %s27, 0
      %p318 = por %p316, %p317
      %p319 = scmp.ne.s32.totalorder %s311, %s313
      %p320 = scmp.eq.s32.totalorder %s32, 3
      %p321 = por %p319, %p320
      %p322 = scmp.ne.s32.totalorder %s313, %s314
      %p323 = scmp.eq.s32.totalorder %s32, 0
      %p324 = por %p322, %p323
      %p325 = scmp.ne.s32.totalorder %s313, %s314
      %p326 = scmp.eq.s32.totalorder %s33, 3
      %p327 = por %p325, %p326
      %p329 = scmp.ne.s32.totalorder %s314, %s328
      %p330 = scmp.eq.s32.totalorder %s33, 0
      %p331 = por %p329, %p330
      %s333 = sadd.s32 %s332, 1
      %p336 = scmp.eq.s32.totalorder %s27, 3
      %p337 = scmp.ne.s32.totalorder %s332, %s334
      %p338 = scmp.eq.s32.totalorder %s27, 0
      %p339 = por %p337, %p338
      %p340 = scmp.ne.s32.totalorder %s332, %s334
      %p341 = scmp.eq.s32.totalorder %s32, 3
      %p342 = por %p340, %p341
      %p343 = scmp.ne.s32.totalorder %s334, %s335
      %p344 = scmp.eq.s32.totalorder %s32, 0
      %p345 = por %p343, %p344
      %p346 = scmp.ne.s32.totalorder %s334, %s335
      %p347 = scmp.eq.s32.totalorder %s33, 3
      %p348 = por %p346, %p347
      %p350 = scmp.ne.s32.totalorder %s335, %s349
      %p351 = scmp.eq.s32.totalorder %s33, 0
      %p352 = por %p350, %p351
      %s354 = sadd.s32 %s353, 1
      %p357 = scmp.eq.s32.totalorder %s27, 3
      %p358 = scmp.ne.s32.totalorder %s353, %s355
      %p359 = scmp.eq.s32.totalorder %s27, 0
      %p360 = por %p358, %p359
      %p361 = scmp.ne.s32.totalorder %s353, %s355
      %p362 = scmp.eq.s32.totalorder %s32, 3
      %p363 = por %p361, %p362
      %p364 = scmp.ne.s32.totalorder %s355, %s356
      %p365 = scmp.eq.s32.totalorder %s32, 0
      %p366 = por %p364, %p365
      %p367 = scmp.ne.s32.totalorder %s355, %s356
      %p368 = scmp.eq.s32.totalorder %s33, 3
      %p369 = por %p367, %p368
      %p371 = scmp.ne.s32.totalorder %s356, %s370
      %p372 = scmp.eq.s32.totalorder %s33, 0
      %p373 = por %p371, %p372
      %s375 = sadd.s32 %s374, 1
      %p378 = scmp.eq.s32.totalorder %s27, 3
      %p379 = scmp.ne.s32.totalorder %s374, %s376
      %p380 = scmp.eq.s32.totalorder %s27, 0
      %p381 = por %p379, %p380
      %p382 = scmp.ne.s32.totalorder %s374, %s376
      %p383 = scmp.eq.s32.totalorder %s32, 3
      %p384 = por %p382, %p383
      %p385 = scmp.ne.s32.totalorder %s376, %s377
      %p386 = scmp.eq.s32.totalorder %s32, 0
      %p387 = por %p385, %p386
      %p388 = scmp.ne.s32.totalorder %s376, %s377
      %p389 = scmp.eq.s32.totalorder %s33, 3
      %p390 = por %p388, %p389
      %p392 = scmp.ne.s32.totalorder %s377, %s391
      %p393 = scmp.eq.s32.totalorder %s33, 0
      %p394 = por %p392, %p393
      %s396 = sadd.s32 %s395, 1
      %p399 = scmp.eq.s32.totalorder %s27, 3
      %p400 = scmp.ne.s32.totalorder %s395, %s397
      %p401 = scmp.eq.s32.totalorder %s27, 0
      %p402 = por %p400, %p401
      %p403 = scmp.ne.s32.totalorder %s395, %s397
      %p404 = scmp.eq.s32.totalorder %s32, 3
      %p405 = por %p403, %p404
      %p406 = scmp.ne.s32.totalorder %s397, %s398
      %p407 = scmp.eq.s32.totalorder %s32, 0
      %p408 = por %p406, %p407
      %p409 = scmp.ne.s32.totalorder %s397, %s398
      %p410 = scmp.eq.s32.totalorder %s33, 3
      %p411 = por %p409, %p410
      %p413 = scmp.ne.s32.totalorder %s398, %s412
      %p414 = scmp.eq.s32.totalorder %s33, 0
      %p415 = por %p413, %p414
      %s417 = sadd.s32 %s416, 1
      %p420 = scmp.eq.s32.totalorder %s27, 3
      %p421 = scmp.ne.s32.totalorder %s416, %s418
      %p422 = scmp.eq.s32.totalorder %s27, 0
      %p423 = por %p421, %p422
      %p424 = scmp.ne.s32.totalorder %s416, %s418
      %p425 = scmp.eq.s32.totalorder %s32, 3
      %p426 = por %p424, %p425
      %p427 = scmp.ne.s32.totalorder %s418, %s419
      %p428 = scmp.eq.s32.totalorder %s32, 0
      %p429 = por %p427, %p428
      %p430 = scmp.ne.s32.totalorder %s418, %s419
      %p431 = scmp.eq.s32.totalorder %s33, 3
      %p432 = por %p430, %p431
      %p434 = scmp.ne.s32.totalorder %s419, %s433
      %p435 = scmp.eq.s32.totalorder %s33, 0
      %p436 = por %p434, %p435
      %s437 = ssub.s32 %s34, %s46
      %s438 = ssub.s32 %s35, %s42
      %s439 = sor.u32 %s437, %s438
      %p440 = scmp.eq.s32.totalorder %s439, 0
      %s442 = sadd.s32 %s441, 1
      %s443 = scalar_select %p440, %s441, %s442
      %p446 = pneg %p440
      %p447 = scmp.eq.s32.totalorder %s27, 3
      %p448 = por %p446, %p447
      %p449 = scmp.ne.s32.totalorder %s441, %s444
      %p450 = scmp.eq.s32.totalorder %s27, 0
      %p451 = por %p449, %p450
      %p452 = scmp.ne.s32.totalorder %s441, %s444
      %p453 = scmp.eq.s32.totalorder %s32, 3
      %p454 = por %p452, %p453
      %p455 = scmp.ne.s32.totalorder %s444, %s445
      %p456 = scmp.eq.s32.totalorder %s32, 0
      %p457 = por %p455, %p456
      %p458 = scmp.ne.s32.totalorder %s444, %s445
      %p459 = scmp.eq.s32.totalorder %s33, 3
      %p460 = por %p458, %p459
      %p462 = scmp.ne.s32.totalorder %s445, %s461
      %p463 = scmp.eq.s32.totalorder %s33, 0
      %p464 = por %p462, %p463
      %p465 = scmp.le.s32.totalorder 1, %s27
      %p466 = scmp.lt.s32.totalorder %s27, 5
      %p467 = pnand %p465, %p466
      %p468 = pneg %p467
      // Predicated region
      $region9: #{tpu_custom_call.1} parent=5 // pred_check
        _
      $region10: #{tpu_custom_call.1} parent=5 // pred_check_branch
        %470 = sbr.rel (%p467) target = $region12
      $region11: #{tpu_custom_call.1} parent=5 // pred_region
        %s471 = ssub.s32 %s27, 1
        // Predicated region
        $region13: #{tpu_custom_call.1} parent=11 // pred_check
          %p472 = pneg %p114
        $region14: #{tpu_custom_call.1} parent=11 // pred_check_branch
          %474 = sbr.rel (%p472) target = $region16
        $region15: #{tpu_custom_call.1} parent=11 // pred_region
          _
        $region16: #{tpu_custom_call.1} parent=11 // pred_fallthru
          _
        // Predicated region
        $region17: #{tpu_custom_call.1} parent=11 // pred_check
          %p475 = pneg %p135
        $region18: #{tpu_custom_call.1} parent=11 // pred_check_branch
          %477 = sbr.rel (%p475) target = $region20
        $region19: #{tpu_custom_call.1} parent=11 // pred_region
          _
        $region20: #{tpu_custom_call.1} parent=11 // pred_fallthru
          _
        // Predicated region
        $region21: #{tpu_custom_call.1} parent=11 // pred_check
          %p478 = pneg %p156
        $region22: #{tpu_custom_call.1} parent=11 // pred_check_branch
          %480 = sbr.rel (%p478) target = $region24
        $region23: #{tpu_custom_call.1} parent=11 // pred_region
          _
        $region24: #{tpu_custom_call.1} parent=11 // pred_fallthru
          _
        // Predicated region
        $region25: #{tpu_custom_call.1} parent=11 // pred_check
          %p481 = pneg %p177
        $region26: #{tpu_custom_call.1} parent=11 // pred_check_branch
          %483 = sbr.rel (%p481) target = $region28
        $region27: #{tpu_custom_call.1} parent=11 // pred_region
          _
        $region28: #{tpu_custom_call.1} parent=11 // pred_fallthru
          _
        // Predicated region
        $region29: #{tpu_custom_call.1} parent=11 // pred_check
          %p484 = pneg %p198
        $region30: #{tpu_custom_call.1} parent=11 // pred_check_branch
          %486 = sbr.rel (%p484) target = $region32
        $region31: #{tpu_custom_call.1} parent=11 // pred_region
          _
        $region32: #{tpu_custom_call.1} parent=11 // pred_fallthru
          _
        // Predicated region
        $region33: #{tpu_custom_call.1} parent=11 // pred_check
          %p487 = pneg %p219
        $region34: #{tpu_custom_call.1} parent=11 // pred_check_branch
          %489 = sbr.rel (%p487) target = $region36
        $region35: #{tpu_custom_call.1} parent=11 // pred_region
          _
        $region36: #{tpu_custom_call.1} parent=11 // pred_fallthru
          _
        // Predicated region
        $region37: #{tpu_custom_call.1} parent=11 // pred_check
          %p490 = pneg %p240
        $region38: #{tpu_custom_call.1} parent=11 // pred_check_branch
          %492 = sbr.rel (%p490) target = $region40
        $region39: #{tpu_custom_call.1} parent=11 // pred_region
          _
        $region40: #{tpu_custom_call.1} parent=11 // pred_fallthru
          _
        // Predicated region
        $region41: #{tpu_custom_call.1} parent=11 // pred_check
          %p493 = pneg %p261
        $region42: #{tpu_custom_call.1} parent=11 // pred_check_branch
          %495 = sbr.rel (%p493) target = $region44
        $region43: #{tpu_custom_call.1} parent=11 // pred_region
          _
        $region44: #{tpu_custom_call.1} parent=11 // pred_fallthru
          _
        // Predicated region
        $region45: #{tpu_custom_call.1} parent=11 // pred_check
          %p496 = pneg %p282
        $region46: #{tpu_custom_call.1} parent=11 // pred_check_branch
          %498 = sbr.rel (%p496) target = $region48
        $region47: #{tpu_custom_call.1} parent=11 // pred_region
          _
        $region48: #{tpu_custom_call.1} parent=11 // pred_fallthru
          _
        // Predicated region
        $region49: #{tpu_custom_call.1} parent=11 // pred_check
          %p499 = pneg %p303
        $region50: #{tpu_custom_call.1} parent=11 // pred_check_branch
          %501 = sbr.rel (%p499) target = $region52
        $region51: #{tpu_custom_call.1} parent=11 // pred_region
          _
        $region52: #{tpu_custom_call.1} parent=11 // pred_fallthru
          _
        // Predicated region
        $region53: #{tpu_custom_call.1} parent=11 // pred_check
          %p502 = pneg %p324
        $region54: #{tpu_custom_call.1} parent=11 // pred_check_branch
          %504 = sbr.rel (%p502) target = $region56
        $region55: #{tpu_custom_call.1} parent=11 // pred_region
          _
        $region56: #{tpu_custom_call.1} parent=11 // pred_fallthru
          _
        // Predicated region
        $region57: #{tpu_custom_call.1} parent=11 // pred_check
          %p505 = pneg %p345
        $region58: #{tpu_custom_call.1} parent=11 // pred_check_branch
          %507 = sbr.rel (%p505) target = $region60
        $region59: #{tpu_custom_call.1} parent=11 // pred_region
          _
        $region60: #{tpu_custom_call.1} parent=11 // pred_fallthru
          _
        // Predicated region
        $region61: #{tpu_custom_call.1} parent=11 // pred_check
          %p508 = pneg %p366
        $region62: #{tpu_custom_call.1} parent=11 // pred_check_branch
          %510 = sbr.rel (%p508) target = $region64
        $region63: #{tpu_custom_call.1} parent=11 // pred_region
          _
        $region64: #{tpu_custom_call.1} parent=11 // pred_fallthru
          _
        // Predicated region
        $region65: #{tpu_custom_call.1} parent=11 // pred_check
          %p511 = pneg %p387
        $region66: #{tpu_custom_call.1} parent=11 // pred_check_branch
          %513 = sbr.rel (%p511) target = $region68
        $region67: #{tpu_custom_call.1} parent=11 // pred_region
          _
        $region68: #{tpu_custom_call.1} parent=11 // pred_fallthru
          _
        // Predicated region
        $region69: #{tpu_custom_call.1} parent=11 // pred_check
          %p514 = pneg %p408
        $region70: #{tpu_custom_call.1} parent=11 // pred_check_branch
          %516 = sbr.rel (%p514) target = $region72
        $region71: #{tpu_custom_call.1} parent=11 // pred_region
          _
        $region72: #{tpu_custom_call.1} parent=11 // pred_fallthru
          _
        // Predicated region
        $region73: #{tpu_custom_call.1} parent=11 // pred_check
          %p517 = pneg %p429
        $region74: #{tpu_custom_call.1} parent=11 // pred_check_branch
          %519 = sbr.rel (%p517) target = $region76
        $region75: #{tpu_custom_call.1} parent=11 // pred_region
          _
        $region76: #{tpu_custom_call.1} parent=11 // pred_fallthru
          _
      $region12: #{tpu_custom_call.1} parent=5 // pred_fallthru
        _
      %p520 = scmp.lt.s32.totalorder %s27, 4
      // Predicated region
      $region77: #{tpu_custom_call.1} parent=5 // pred_check
        %p521 = pneg %p520
      $region78: #{tpu_custom_call.1} parent=5 // pred_check_branch
        %523 = sbr.rel (%p521) target = $region80
      $region79: #{tpu_custom_call.1} parent=5 // pred_region
        // Predicated region
        $region81: #{tpu_custom_call.1} parent=79 // pred_check
          %p524 = pneg %p61
        $region82: #{tpu_custom_call.1} parent=79 // pred_check_branch
          %526 = sbr.rel (%p524) target = $region84
        $region83: #{tpu_custom_call.1} parent=79 // pred_region
          %p527 = scmp.lt.s32.totalorder %s34, 1
          %s528 = scalar_select %p527, %s34, 1
          %p529 = scmp.lt.s32.totalorder %s35, 1
          %s530 = scalar_select %p529, %s35, 1
          %s531 = smul.addr %s528, 2
          %s532 = sadd.s32 %s530, %s531
          %s533 = smul.addr %s532, 8
          %s534 = scalar_lea.vmem %s0, %s533
        $region84: #{tpu_custom_call.1} parent=79 // pred_fallthru
          _
        // Predicated region
        $region85: #{tpu_custom_call.1} parent=79 // pred_check
          %p535 = pneg %p87
        $region86: #{tpu_custom_call.1} parent=79 // pred_check_branch
          %537 = sbr.rel (%p535) target = $region88
        $region87: #{tpu_custom_call.1} parent=79 // pred_region
          %p538 = scmp.lt.s32.totalorder %s34, 1
          %s539 = scalar_select %p538, %s34, 1
          %s540 = smul.addr %s539, 2
          %s541 = smul.addr %s540, 8
          %s542 = scalar_lea.vmem %s1, %s541
        $region88: #{tpu_custom_call.1} parent=79 // pred_fallthru
          _
      $region80: #{tpu_custom_call.1} parent=5 // pred_fallthru
        _
      %p543 = scmp.le.s32.totalorder 1, %s27
      %p544 = scmp.lt.s32.totalorder %s27, 5
      %p545 = pnand %p543, %p544
      %p546 = pneg %p545
      // Predicated region
      $region89: #{tpu_custom_call.1} parent=5 // pred_check
        _
      $region90: #{tpu_custom_call.1} parent=5 // pred_check_branch
        %548 = sbr.rel (%p545) target = $region92
      $region91: #{tpu_custom_call.1} parent=5 // pred_region
        %s549 = ssub.s32 %s27, 1
        %p550 = scmp.lt.s32.totalorder %s36, 1
        %s551 = scalar_select %p550, %s36, 1
        %p552 = scmp.lt.s32.totalorder %s37, 1
        %s553 = scalar_select %p552, %s37, 1
        %s554 = smul.addr %s551, 2
        %s555 = sadd.s32 %s553, %s554
        %s556 = smul.addr %s555, 8
        %s557 = scalar_lea.vmem %s0, %s556
        %p558 = pneg %p67
        %p559 = pneg %p64
        %p560 = scmp.lt.s32.totalorder %s36, 1
        %s561 = scalar_select %p560, %s36, 1
        %s562 = smul.addr %s561, 2
        %s563 = smul.addr %s562, 8
        %s564 = scalar_lea.vmem %s1, %s563
        %p565 = pneg %p93
        %p566 = pneg %p90
        %p567 = pneg %p114
        %p568 = pneg %p111
        %p569 = pneg %p135
        %p570 = pneg %p132
        %p571 = pneg %p156
        %p572 = pneg %p153
        %p573 = pneg %p177
        %p574 = pneg %p174
        %p575 = pneg %p198
        %p576 = pneg %p195
        %p577 = pneg %p219
        %p578 = pneg %p216
        %p579 = pneg %p240
        %p580 = pneg %p237
        %p581 = pneg %p261
        %p582 = pneg %p258
        %p583 = pneg %p282
        %p584 = pneg %p279
        %p585 = pneg %p303
        %p586 = pneg %p300
        %p587 = pneg %p324
        %p588 = pneg %p321
        %p589 = pneg %p345
        %p590 = pneg %p342
        %p591 = pneg %p366
        %p592 = pneg %p363
        %p593 = pneg %p387
        %p594 = pneg %p384
        %p595 = pneg %p408
        %p596 = pneg %p405
        %p597 = pneg %p429
        %p598 = pneg %p426
        %p599 = pneg %p457
        %p600 = pneg %p454
        %s601 = sand.u32 %s444, 1
        %s602 = scalar_lea.sflag [#allocation3], %s601
        %s603 = sand.u32 %s444, 1
        %s604 = smul.addr %s603, 8
        %s605 = scalar_lea.vmem [#allocation2], %s604
        %p606 = scmp.lt.s32.totalorder %s36, 1
        %s607 = scalar_select %p606, %s36, 1
        %p608 = scmp.lt.s32.totalorder %s37, 1
        %s609 = scalar_select %p608, %s37, 1
        %s610 = smul.addr %s607, 2
        %s611 = sadd.s32 %s609, %s610
        %s612 = smul.addr %s611, 8
        %s613 = scalar_lea.vmem %s0, %s612
        %p614 = scmp.lt.s32.totalorder %s36, 1
        %s615 = scalar_select %p614, %s36, 1
        %s616 = smul.addr %s615, 2
        %s617 = smul.addr %s616, 8
        %s618 = scalar_lea.vmem %s1, %s617
        %v619 = vld [vmem:[%s613] sm:$0xff]
        %v620 = vld [vmem:[%s618] sm:$0xff]
        %v621 = vld [vmem:[%s618 + $0x8] sm:$0xff]
        %v622 = vld [vmem:[%s2] sm:$0xff]
        %v623 = vld [vmem:[%s2 + $0x8] sm:$0xff]
        %v624 = vld [vmem:[%s2 + $0x10] sm:$0xff]
        %v625 = vld [vmem:[%s2 + $0x18] sm:$0xff]
        %v626 = vld [vmem:[%s3] sm:$0x1]
        %v628 = vperm.slane %v626, 0
        %vm630 = vcmask 261120
        %v632 = vsel %vm630, %v619, 0
        %634 = vmatpush.msra.mxu0 0.0
        %635 = vmatpush.msra.mxu0 0.0
        %636 = vmatpush.msra.mxu0 0.0
        %637 = vmatpush.msra.mxu0 0.0
        %638 = vmatpush.msra.mxu0 0.0
        %639 = vmatpush.msra.mxu0 0.0
        %640 = vmatpush.msra.mxu0 0.0
        %641 = vmatpush.msra.mxu0 0.0
        %642 = vmatpush.msra.mxu0 0.0
        %643 = vmatpush.msra.mxu0 0.0
        %644 = vmatpush.msra.mxu0 0.0
        %645 = vmatpush.msra.mxu0 0.0
        %646 = vmatpush.msra.mxu0 %v625
        %647 = vmatpush.msra.mxu0 %v624
        %648 = vmatpush.msra.mxu0 %v623
        %649 = vmatpush.msra.mxu0 %v622
        %650 = vmatmul.f32.gmra.mxu0 %v632
        %v651 = vpop.f32.mrf.mxu0
        %v652 = vadd.f32 %v628, %v651
        %653 = vdwg.mxu0
        %v654 = vld [vmem:[%s4] sm:$0xff]
        %v655 = vld [vmem:[%s4 + $0x8] sm:$0xff]
        %v656 = vld [vmem:[%s4 + $0x10] sm:$0xff]
        %v657 = vld [vmem:[%s4 + $0x18] sm:$0xff]
        %v658 = vld [vmem:[%s5] sm:$0x1]
        %v660 = vperm.slane %v658, 0
        %v663 = vsel %vm630, %v620, 0
        %v666 = vsel %vm630, %v621, 0
        %668 = vmatpush.msra.mxu0 0.0
        %669 = vmatpush.msra.mxu0 0.0
        %670 = vmatpush.msra.mxu0 0.0
        %671 = vmatpush.msra.mxu0 0.0
        %672 = vmatpush.msra.mxu0 0.0
        %673 = vmatpush.msra.mxu0 0.0
        %674 = vmatpush.msra.mxu0 0.0
        %675 = vmatpush.msra.mxu0 0.0
        %676 = vmatpush.msra.mxu0 0.0
        %677 = vmatpush.msra.mxu0 0.0
        %678 = vmatpush.msra.mxu0 0.0
        %679 = vmatpush.msra.mxu0 0.0
        %680 = vmatpush.msra.mxu0 %v657
        %681 = vmatpush.msra.mxu0 %v656
        %682 = vmatpush.msra.mxu0 %v655
        %683 = vmatpush.msra.mxu0 %v654
        %684 = vmatmul.f32.gmra.mxu0 %v663
        %v685 = vpop.f32.mrf.mxu0
        %v686 = vadd.f32 %v660, %v685
        %687 = vmatmul.f32.gmra.mxu0 %v666
        %v688 = vpop.f32.mrf.mxu0
        %v689 = vadd.f32 %v660, %v688
        %690 = vdwg.mxu0
        %v691 = vld [vmem:[%s6] sm:$0xff]
        %v692 = vld [vmem:[%s6 + $0x8] sm:$0xff]
        %v693 = vld [vmem:[%s6 + $0x10] sm:$0xff]
        %v694 = vld [vmem:[%s6 + $0x18] sm:$0xff]
        %v695 = vld [vmem:[%s7] sm:$0x1]
        %v697 = vperm.slane %v695, 0
        %699 = vmatpush.msra.mxu0 0.0
        %700 = vmatpush.msra.mxu0 0.0
        %701 = vmatpush.msra.mxu0 0.0
        %702 = vmatpush.msra.mxu0 0.0
        %703 = vmatpush.msra.mxu0 0.0
        %704 = vmatpush.msra.mxu0 0.0
        %705 = vmatpush.msra.mxu0 0.0
        %706 = vmatpush.msra.mxu0 0.0
        %707 = vmatpush.msra.mxu0 0.0
        %708 = vmatpush.msra.mxu0 0.0
        %709 = vmatpush.msra.mxu0 0.0
        %710 = vmatpush.msra.mxu0 0.0
        %711 = vmatpush.msra.mxu0 %v694
        %712 = vmatpush.msra.mxu0 %v693
        %713 = vmatpush.msra.mxu0 %v692
        %714 = vmatpush.msra.mxu0 %v691
        %715 = vmatmul.f32.gmra.mxu0 %v663
        %v716 = vpop.f32.mrf.mxu0
        %v717 = vadd.f32 %v697, %v716
        %718 = vmatmul.f32.gmra.mxu0 %v666
        %v719 = vpop.f32.mrf.mxu0
        %v720 = vadd.f32 %v697, %v719
        %721 = vdwg.mxu0
        %v722 = vmul.f32 %v652, 0.25
        %vm723 = vcmask 130048
        %v725 = vsel %vm723, %v722, 0
        %v728 = vsel %vm723, %v686, 0
        %v731 = vsel %vm723, %v689, 0
        %733 = vmatpush.xpose.msra.mxu0 0.0
        %734 = vmatpush.xpose.msra.mxu0 0.0
        %735 = vmatpush.xpose.msra.mxu0 0.0
        %736 = vmatpush.xpose.msra.mxu0 0.0
        %737 = vmatpush.xpose.msra.mxu0 0.0
        %738 = vmatpush.xpose.msra.mxu0 0.0
        %739 = vmatpush.xpose.msra.mxu0 0.0
        %740 = vmatpush.xpose.msra.mxu0 0.0
        %741 = vmatpush.xpose.msra.mxu0 0.0
        %742 = vmatpush.xpose.msra.mxu0 0.0
        %743 = vmatpush.xpose.msra.mxu0 0.0
        %744 = vmatpush.xpose.msra.mxu0 0.0
        %745 = vmatpush.xpose.msra.mxu0 0.0
        %746 = vmatpush.xpose.msra.mxu0 0.0
        %747 = vmatpush.xpose.msra.mxu0 %v731
        %748 = vmatpush.xpose.msra.mxu0 %v728
        %749 = vmatmul.f32.gmra.mxu0 %v725
        %v750 = vpop.f32.mrf.mxu0
        %v751 = vadd.f32 0.0, %v750
        %752 = vdwg.mxu0
        %v753 = vsel %vm723, %v751, -inf
        %754 = vmax.xlane.f32.xlu0 %v753
        %v755 = vpop.xlane.xlu0 %754
        %v756 = vsub.f32 %v751, %v755
        %v757 = vmul.f32 %v756, 1.442695
        %v758 = vpow.pop %v757
        %v759 = vsel %vm723, %v758, 0.0
        %760 = vadd.xlane.f32.xlu0 %v759
        %v761 = vpop.xlane.xlu0 %760
        %v762 = vrcp.pop %v761
        %v763 = vmul.f32 %v761, %v762
        %v764 = vsub.f32 1.0, %v763
        %v765 = vmul.f32 %v762, %v764
        %v766 = vadd.f32 %v762, %v765
        %vm767 = vweird.f32 %v761
        %vm768 = vweird.f32 %v762
        %vm769 = vmor %vm767, %vm768
        %v770 = vsel %vm769, %v762, %v766
        %v771 = vand.u32 2147483647, %v761
        %vm772 = vcmp.eq.f32.partialorder %v771, 8.507059e+37
        %v773 = vand.u32 %v761, 2147483648
        %v774 = vor.u32 1.1754944e-38, %v773
        %v775 = vsel %vm772, %v774, %v770
        %v776 = vmul.f32 %v758, %v775
        %v778 = vsel %vm723, %v776, 0
        %780 = vmatpush.msra.mxu0 0.0
        %781 = vmatpush.msra.mxu0 0.0
        %782 = vmatpush.msra.mxu0 0.0
        %783 = vmatpush.msra.mxu0 0.0
        %784 = vmatpush.msra.mxu0 0.0
        %785 = vmatpush.msra.mxu0 0.0
        %786 = vmatpush.msra.mxu0 0.0
        %787 = vmatpush.msra.mxu0 0.0
        %788 = vmatpush.msra.mxu0 0.0
        %789 = vmatpush.msra.mxu0 0.0
        %790 = vmatpush.msra.mxu0 0.0
        %791 = vmatpush.msra.mxu0 0.0
        %792 = vmatpush.msra.mxu0 0.0
        %793 = vmatpush.msra.mxu0 0.0
        %794 = vmatpush.msra.mxu0 %v720
        %795 = vmatpush.msra.mxu0 %v717
        %796 = vmatmul.f32.gmra.mxu0 %v778
        %v797 = vpop.f32.mrf.mxu0
        %v798 = vadd.f32 0.0, %v797
        %799 = vdwg.mxu0
        %v800 = vld [vmem:[%s8] sm:$0xff]
        %v801 = vld [vmem:[%s8 + $0x8] sm:$0xff]
        %802 = vrot.lane.b32.xlu0 %v722, 112
        %v803 = vpop.permute.xlu0 %802
        %804 = vrot.lane.b32.xlu0 %v686, 112
        %v805 = vpop.permute.xlu0 %804
        %806 = vrot.lane.b32.xlu0 %v689, 112
        %v807 = vpop.permute.xlu0 %806
        %v808 = vsel %vm723, %v803, 0
        %v810 = vsel %vm723, %v805, 0
        %v812 = vsel %vm723, %v807, 0
        %814 = vmatpush.xpose.msra.mxu0 0.0
        %815 = vmatpush.xpose.msra.mxu0 0.0
        %816 = vmatpush.xpose.msra.mxu0 0.0
        %817 = vmatpush.xpose.msra.mxu0 0.0
        %818 = vmatpush.xpose.msra.mxu0 0.0
        %819 = vmatpush.xpose.msra.mxu0 0.0
        %820 = vmatpush.xpose.msra.mxu0 0.0
        %821 = vmatpush.xpose.msra.mxu0 0.0
        %822 = vmatpush.xpose.msra.mxu0 0.0
        %823 = vmatpush.xpose.msra.mxu0 0.0
        %824 = vmatpush.xpose.msra.mxu0 0.0
        %825 = vmatpush.xpose.msra.mxu0 0.0
        %826 = vmatpush.xpose.msra.mxu0 0.0
        %827 = vmatpush.xpose.msra.mxu0 0.0
        %828 = vmatpush.xpose.msra.mxu0 %v812
        %829 = vmatpush.xpose.msra.mxu0 %v810
        %830 = vmatmul.f32.gmra.mxu0 %v808
        %v831 = vpop.f32.mrf.mxu0
        %v832 = vadd.f32 0.0, %v831
        %833 = vdwg.mxu0
        %v834 = vsel %vm723, %v832, -inf
        %835 = vmax.xlane.f32.xlu0 %v834
        %v836 = vpop.xlane.xlu0 %835
        %v837 = vsub.f32 %v832, %v836
        %v838 = vmul.f32 %v837, 1.442695
        %v839 = vpow.pop %v838
        %v840 = vsel %vm723, %v839, 0.0
        %841 = vadd.xlane.f32.xlu0 %v840
        %v842 = vpop.xlane.xlu0 %841
        %v843 = vrcp.pop %v842
        %v844 = vmul.f32 %v842, %v843
        %v845 = vsub.f32 1.0, %v844
        %v846 = vmul.f32 %v843, %v845
        %v847 = vadd.f32 %v843, %v846
        %vm848 = vweird.f32 %v842
        %vm849 = vweird.f32 %v843
        %vm850 = vmor %vm848, %vm849
        %v851 = vsel %vm850, %v843, %v847
        %v852 = vand.u32 2147483647, %v842
        %vm853 = vcmp.eq.f32.partialorder %v852, 8.507059e+37
        %v854 = vand.u32 %v842, 2147483648
        %v855 = vor.u32 1.1754944e-38, %v854
        %v856 = vsel %vm853, %v855, %v851
        %v857 = vmul.f32 %v839, %v856
        %860 = vrot.lane.b32.xlu0 %v717, 112
        %v861 = vpop.permute.xlu0 %860
        %862 = vrot.lane.b32.xlu0 %v720, 112
        %v863 = vpop.permute.xlu0 %862
        %v867 = vsel %vm723, %v857, 0
        %869 = vmatpush.msra.mxu0 0.0
        %870 = vmatpush.msra.mxu0 0.0
        %871 = vmatpush.msra.mxu0 0.0
        %872 = vmatpush.msra.mxu0 0.0
        %873 = vmatpush.msra.mxu0 0.0
        %874 = vmatpush.msra.mxu0 0.0
        %875 = vmatpush.msra.mxu0 0.0
        %876 = vmatpush.msra.mxu0 0.0
        %877 = vmatpush.msra.mxu0 0.0
        %878 = vmatpush.msra.mxu0 0.0
        %879 = vmatpush.msra.mxu0 0.0
        %880 = vmatpush.msra.mxu0 0.0
        %881 = vmatpush.msra.mxu0 0.0
        %882 = vmatpush.msra.mxu0 0.0
        %883 = vmatpush.msra.mxu0 %v863
        %884 = vmatpush.msra.mxu0 %v861
        %885 = vmatmul.f32.gmra.mxu0 %v867
        %v886 = vpop.f32.mrf.mxu0
        %v887 = vadd.f32 0.0, %v886
        %888 = vdwg.mxu0
        %v889 = vld [vmem:[%s8 + $0x10] sm:$0xff]
        %v890 = vld [vmem:[%s8 + $0x18] sm:$0xff]
        %v892 = vsel %vm723, %v887, 0
        %894 = vmatpush.msra.mxu0 0.0
        %895 = vmatpush.msra.mxu0 0.0
        %896 = vmatpush.msra.mxu0 0.0
        %897 = vmatpush.msra.mxu0 0.0
        %898 = vmatpush.msra.mxu0 0.0
        %899 = vmatpush.msra.mxu0 0.0
        %900 = vmatpush.msra.mxu0 0.0
        %901 = vmatpush.msra.mxu0 0.0
        %902 = vmatpush.msra.mxu0 0.0
        %903 = vmatpush.msra.mxu0 0.0
        %904 = vmatpush.msra.mxu0 0.0
        %905 = vmatpush.msra.mxu0 0.0
        %906 = vmatpush.msra.mxu0 0.0
        %907 = vmatpush.msra.mxu0 0.0
        %908 = vmatpush.msra.mxu0 %v890
        %909 = vmatpush.msra.mxu0 %v889
        %910 = vmatmul.f32.gmra.mxu0 %v892
        %v911 = vpop.f32.mrf.mxu0
        %v912 = vadd.f32 0.0, %v911
        %913 = vdwg.mxu0
        %v915 = vsel %vm723, %v798, 0
        %917 = vmatpush.msra.mxu0 0.0
        %918 = vmatpush.msra.mxu0 0.0
        %919 = vmatpush.msra.mxu0 0.0
        %920 = vmatpush.msra.mxu0 0.0
        %921 = vmatpush.msra.mxu0 0.0
        %922 = vmatpush.msra.mxu0 0.0
        %923 = vmatpush.msra.mxu0 0.0
        %924 = vmatpush.msra.mxu0 0.0
        %925 = vmatpush.msra.mxu0 0.0
        %926 = vmatpush.msra.mxu0 0.0
        %927 = vmatpush.msra.mxu0 0.0
        %928 = vmatpush.msra.mxu0 0.0
        %929 = vmatpush.msra.mxu0 0.0
        %930 = vmatpush.msra.mxu0 0.0
        %931 = vmatpush.msra.mxu0 %v801
        %932 = vmatpush.msra.mxu0 %v800
        %933 = vmatmul.f32.gmra.mxu0 %v915
        %v934 = vpop.f32.mrf.mxu0
        %v935 = vadd.f32 %v912, %v934
        %936 = vdwg.mxu0
        %937 = vrot.lane.b32.xlu0 %v722, 96
        %v938 = vpop.permute.xlu0 %937
        %939 = vrot.lane.b32.xlu0 %v686, 96
        %v940 = vpop.permute.xlu0 %939
        %941 = vrot.lane.b32.xlu0 %v689, 96
        %v942 = vpop.permute.xlu0 %941
        %v943 = vsel %vm723, %v938, 0
        %v945 = vsel %vm723, %v940, 0
        %v947 = vsel %vm723, %v942, 0
        %949 = vmatpush.xpose.msra.mxu0 0.0
        %950 = vmatpush.xpose.msra.mxu0 0.0
        %951 = vmatpush.xpose.msra.mxu0 0.0
        %952 = vmatpush.xpose.msra.mxu0 0.0
        %953 = vmatpush.xpose.msra.mxu0 0.0
        %954 = vmatpush.xpose.msra.mxu0 0.0
        %955 = vmatpush.xpose.msra.mxu0 0.0
        %956 = vmatpush.xpose.msra.mxu0 0.0
        %957 = vmatpush.xpose.msra.mxu0 0.0
        %958 = vmatpush.xpose.msra.mxu0 0.0
        %959 = vmatpush.xpose.msra.mxu0 0.0
        %960 = vmatpush.xpose.msra.mxu0 0.0
        %961 = vmatpush.xpose.msra.mxu0 0.0
        %962 = vmatpush.xpose.msra.mxu0 0.0
        %963 = vmatpush.xpose.msra.mxu0 %v947
        %964 = vmatpush.xpose.msra.mxu0 %v945
        %965 = vmatmul.f32.gmra.mxu0 %v943
        %v966 = vpop.f32.mrf.mxu0
        %v967 = vadd.f32 0.0, %v966
        %968 = vdwg.mxu0
        %v969 = vsel %vm723, %v967, -inf
        %970 = vmax.xlane.f32.xlu0 %v969
        %v971 = vpop.xlane.xlu0 %970
        %v972 = vsub.f32 %v967, %v971
        %v973 = vmul.f32 %v972, 1.442695
        %v974 = vpow.pop %v973
        %v975 = vsel %vm723, %v974, 0.0
        %976 = vadd.xlane.f32.xlu0 %v975
        %v977 = vpop.xlane.xlu0 %976
        %v978 = vrcp.pop %v977
        %v979 = vmul.f32 %v977, %v978
        %v980 = vsub.f32 1.0, %v979
        %v981 = vmul.f32 %v978, %v980
        %v982 = vadd.f32 %v978, %v981
        %vm983 = vweird.f32 %v977
        %vm984 = vweird.f32 %v978
        %vm985 = vmor %vm983, %vm984
        %v986 = vsel %vm985, %v978, %v982
        %v987 = vand.u32 2147483647, %v977
        %vm988 = vcmp.eq.f32.partialorder %v987, 8.507059e+37
        %v989 = vand.u32 %v977, 2147483648
        %v990 = vor.u32 1.1754944e-38, %v989
        %v991 = vsel %vm988, %v990, %v986
        %v992 = vmul.f32 %v974, %v991
        %993 = vrot.lane.b32.xlu0 %v717, 96
        %v994 = vpop.permute.xlu0 %993
        %995 = vrot.lane.b32.xlu0 %v720, 96
        %v996 = vpop.permute.xlu0 %995
        %v1000 = vsel %vm723, %v992, 0
        %1002 = vmatpush.msra.mxu0 0.0
        %1003 = vmatpush.msra.mxu0 0.0
        %1004 = vmatpush.msra.mxu0 0.0
        %1005 = vmatpush.msra.mxu0 0.0
        %1006 = vmatpush.msra.mxu0 0.0
        %1007 = vmatpush.msra.mxu0 0.0
        %1008 = vmatpush.msra.mxu0 0.0
        %1009 = vmatpush.msra.mxu0 0.0
        %1010 = vmatpush.msra.mxu0 0.0
        %1011 = vmatpush.msra.mxu0 0.0
        %1012 = vmatpush.msra.mxu0 0.0
        %1013 = vmatpush.msra.mxu0 0.0
        %1014 = vmatpush.msra.mxu0 0.0
        %1015 = vmatpush.msra.mxu0 0.0
        %1016 = vmatpush.msra.mxu0 %v996
        %1017 = vmatpush.msra.mxu0 %v994
        %1018 = vmatmul.f32.gmra.mxu0 %v1000
        %v1019 = vpop.f32.mrf.mxu0
        %v1020 = vadd.f32 0.0, %v1019
        %1021 = vdwg.mxu0
        %v1022 = vld [vmem:[%s8 + $0x20] sm:$0xff]
        %v1023 = vld [vmem:[%s8 + $0x28] sm:$0xff]
        %v1025 = vsel %vm723, %v1020, 0
        %1027 = vmatpush.msra.mxu0 0.0
        %1028 = vmatpush.msra.mxu0 0.0
        %1029 = vmatpush.msra.mxu0 0.0
        %1030 = vmatpush.msra.mxu0 0.0
        %1031 = vmatpush.msra.mxu0 0.0
        %1032 = vmatpush.msra.mxu0 0.0
        %1033 = vmatpush.msra.mxu0 0.0
        %1034 = vmatpush.msra.mxu0 0.0
        %1035 = vmatpush.msra.mxu0 0.0
        %1036 = vmatpush.msra.mxu0 0.0
        %1037 = vmatpush.msra.mxu0 0.0
        %1038 = vmatpush.msra.mxu0 0.0
        %1039 = vmatpush.msra.mxu0 0.0
        %1040 = vmatpush.msra.mxu0 0.0
        %1041 = vmatpush.msra.mxu0 %v1023
        %1042 = vmatpush.msra.mxu0 %v1022
        %1043 = vmatmul.f32.gmra.mxu0 %v1025
        %v1044 = vpop.f32.mrf.mxu0
        %v1045 = vadd.f32 0.0, %v1044
        %1046 = vdwg.mxu0
        %v1047 = vadd.f32 %v935, %v1045
        %1048 = vrot.lane.b32.xlu0 %v722, 80
        %v1049 = vpop.permute.xlu0 %1048
        %1050 = vrot.lane.b32.xlu0 %v686, 80
        %v1051 = vpop.permute.xlu0 %1050
        %1052 = vrot.lane.b32.xlu0 %v689, 80
        %v1053 = vpop.permute.xlu0 %1052
        %v1054 = vsel %vm723, %v1049, 0
        %v1056 = vsel %vm723, %v1051, 0
        %v1058 = vsel %vm723, %v1053, 0
        %1060 = vmatpush.xpose.msra.mxu0 0.0
        %1061 = vmatpush.xpose.msra.mxu0 0.0
        %1062 = vmatpush.xpose.msra.mxu0 0.0
        %1063 = vmatpush.xpose.msra.mxu0 0.0
        %1064 = vmatpush.xpose.msra.mxu0 0.0
        %1065 = vmatpush.xpose.msra.mxu0 0.0
        %1066 = vmatpush.xpose.msra.mxu0 0.0
        %1067 = vmatpush.xpose.msra.mxu0 0.0
        %1068 = vmatpush.xpose.msra.mxu0 0.0
        %1069 = vmatpush.xpose.msra.mxu0 0.0
        %1070 = vmatpush.xpose.msra.mxu0 0.0
        %1071 = vmatpush.xpose.msra.mxu0 0.0
        %1072 = vmatpush.xpose.msra.mxu0 0.0
        %1073 = vmatpush.xpose.msra.mxu0 0.0
        %1074 = vmatpush.xpose.msra.mxu0 %v1058
        %1075 = vmatpush.xpose.msra.mxu0 %v1056
        %1076 = vmatmul.f32.gmra.mxu0 %v1054
        %v1077 = vpop.f32.mrf.mxu0
        %v1078 = vadd.f32 0.0, %v1077
        %1079 = vdwg.mxu0
        %v1080 = vsel %vm723, %v1078, -inf
        %1081 = vmax.xlane.f32.xlu0 %v1080
        %v1082 = vpop.xlane.xlu0 %1081
        %v1083 = vsub.f32 %v1078, %v1082
        %v1084 = vmul.f32 %v1083, 1.442695
        %v1085 = vpow.pop %v1084
        %v1086 = vsel %vm723, %v1085, 0.0
        %1087 = vadd.xlane.f32.xlu0 %v1086
        %v1088 = vpop.xlane.xlu0 %1087
        %v1089 = vrcp.pop %v1088
        %v1090 = vmul.f32 %v1088, %v1089
        %v1091 = vsub.f32 1.0, %v1090
        %v1092 = vmul.f32 %v1089, %v1091
        %v1093 = vadd.f32 %v1089, %v1092
        %vm1094 = vweird.f32 %v1088
        %vm1095 = vweird.f32 %v1089
        %vm1096 = vmor %vm1094, %vm1095
        %v1097 = vsel %vm1096, %v1089, %v1093
        %v1098 = vand.u32 2147483647, %v1088
        %vm1099 = vcmp.eq.f32.partialorder %v1098, 8.507059e+37
        %v1100 = vand.u32 %v1088, 2147483648
        %v1101 = vor.u32 1.1754944e-38, %v1100
        %v1102 = vsel %vm1099, %v1101, %v1097
        %v1103 = vmul.f32 %v1085, %v1102
        %1104 = vrot.lane.b32.xlu0 %v717, 80
        %v1105 = vpop.permute.xlu0 %1104
        %1106 = vrot.lane.b32.xlu0 %v720, 80
        %v1107 = vpop.permute.xlu0 %1106
        %v1111 = vsel %vm723, %v1103, 0
        %1113 = vmatpush.msra.mxu0 0.0
        %1114 = vmatpush.msra.mxu0 0.0
        %1115 = vmatpush.msra.mxu0 0.0
        %1116 = vmatpush.msra.mxu0 0.0
        %1117 = vmatpush.msra.mxu0 0.0
        %1118 = vmatpush.msra.mxu0 0.0
        %1119 = vmatpush.msra.mxu0 0.0
        %1120 = vmatpush.msra.mxu0 0.0
        %1121 = vmatpush.msra.mxu0 0.0
        %1122 = vmatpush.msra.mxu0 0.0
        %1123 = vmatpush.msra.mxu0 0.0
        %1124 = vmatpush.msra.mxu0 0.0
        %1125 = vmatpush.msra.mxu0 0.0
        %1126 = vmatpush.msra.mxu0 0.0
        %1127 = vmatpush.msra.mxu0 %v1107
        %1128 = vmatpush.msra.mxu0 %v1105
        %1129 = vmatmul.f32.gmra.mxu0 %v1111
        %v1130 = vpop.f32.mrf.mxu0
        %v1131 = vadd.f32 0.0, %v1130
        %1132 = vdwg.mxu0
        %v1133 = vld [vmem:[%s8 + $0x30] sm:$0xff]
        %v1134 = vld [vmem:[%s8 + $0x38] sm:$0xff]
        %v1136 = vsel %vm723, %v1131, 0
        %1138 = vmatpush.msra.mxu0 0.0
        %1139 = vmatpush.msra.mxu0 0.0
        %1140 = vmatpush.msra.mxu0 0.0
        %1141 = vmatpush.msra.mxu0 0.0
        %1142 = vmatpush.msra.mxu0 0.0
        %1143 = vmatpush.msra.mxu0 0.0
        %1144 = vmatpush.msra.mxu0 0.0
        %1145 = vmatpush.msra.mxu0 0.0
        %1146 = vmatpush.msra.mxu0 0.0
        %1147 = vmatpush.msra.mxu0 0.0
        %1148 = vmatpush.msra.mxu0 0.0
        %1149 = vmatpush.msra.mxu0 0.0
        %1150 = vmatpush.msra.mxu0 0.0
        %1151 = vmatpush.msra.mxu0 0.0
        %1152 = vmatpush.msra.mxu0 %v1134
        %1153 = vmatpush.msra.mxu0 %v1133
        %1154 = vmatmul.f32.gmra.mxu0 %v1136
        %v1155 = vpop.f32.mrf.mxu0
        %v1156 = vadd.f32 0.0, %v1155
        %1157 = vdwg.mxu0
        %v1158 = vadd.f32 %v1047, %v1156
        %v1159 = vld [vmem:[%s9] sm:$0x1]
        %v1161 = vperm.slane %v1159, 0
        %v1163 = vadd.f32 %v1158, %v1161
        %v1164 = vadd.f32 %v1163, %v619
        %v1165 = vld [vmem:[%s10] sm:$0x1]
        %v1166 = vld [vmem:[%s11] sm:$0x1]
        %v1167 = vsel %vm630, %v1164, 0.0
        %1168 = vadd.xlane.f32.xlu0 %v1167
        %v1169 = vpop.xlane.xlu0 %1168
        %v1170 = vrcp.pop 32.0
        %v1171 = vmul.f32 32.0, %v1170
        %v1172 = vsub.f32 1.0, %v1171
        %v1173 = vmul.f32 %v1170, %v1172
        %v1174 = vadd.f32 %v1170, %v1173
        %vm1175 = vweird.f32 %v1170
        %v1176 = vsel %vm1175, %v1170, %v1174
        %v1177 = vmul.f32 %v1169, %v1176
        %v1178 = vsub.f32 %v1164, %v1177
        %v1179 = vmul.f32 %v1178, %v1178
        %v1180 = vsel %vm630, %v1179, 0.0
        %1181 = vadd.xlane.f32.xlu0 %v1180
        %v1182 = vpop.xlane.xlu0 %1181
        %v1183 = vmul.f32 %v1182, %v1176
        %v1184 = vadd.f32 %v1183, 1e-05
        %v1185 = vrsqrt.pop %v1184
        %v1186 = vmul.f32 %v1185, %v1184
        %v1187 = vmul.f32 %v1186, %v1185
        %v1188 = vmul.f32 0.5, %v1187
        %v1189 = vsub.f32 1.5, %v1188
        %v1190 = vmul.f32 %v1185, %v1189
        %vm1191 = vweird.f32 %v1184
        %vm1192 = vweird.f32 %v1185
        %vm1193 = vmor %vm1191, %vm1192
        %v1194 = vsel %vm1193, %v1185, %v1190
        %v1195 = vmul.f32 %v1178, %v1194
        %v1197 = vperm.slane %v1165, 0
        %v1199 = vmul.f32 %v1195, %v1197
        %v1201 = vperm.slane %v1166, 0
        %v1203 = vadd.f32 %v1199, %v1201
        %v1204 = vld [vmem:[%s12] sm:$0xff]
        %v1205 = vld [vmem:[%s12 + $0x8] sm:$0xff]
        %v1206 = vld [vmem:[%s12 + $0x10] sm:$0xff]
        %v1207 = vld [vmem:[%s12 + $0x18] sm:$0xff]
        %v1208 = vld [vmem:[%s13] sm:$0x1]
        %v1210 = vperm.slane %v1208, 0
        %v1213 = vsel %vm630, %v1203, 0
        %1215 = vmatpush.msra.mxu0 0.0
        %1216 = vmatpush.msra.mxu0 0.0
        %1217 = vmatpush.msra.mxu0 0.0
        %1218 = vmatpush.msra.mxu0 0.0
        %1219 = vmatpush.msra.mxu0 0.0
        %1220 = vmatpush.msra.mxu0 0.0
        %1221 = vmatpush.msra.mxu0 0.0
        %1222 = vmatpush.msra.mxu0 0.0
        %1223 = vmatpush.msra.mxu0 0.0
        %1224 = vmatpush.msra.mxu0 0.0
        %1225 = vmatpush.msra.mxu0 0.0
        %1226 = vmatpush.msra.mxu0 0.0
        %1227 = vmatpush.msra.mxu0 %v1207
        %1228 = vmatpush.msra.mxu0 %v1206
        %1229 = vmatpush.msra.mxu0 %v1205
        %1230 = vmatpush.msra.mxu0 %v1204
        %1231 = vmatmul.f32.gmra.mxu0 %v1213
        %v1232 = vpop.f32.mrf.mxu0
        %v1233 = vadd.f32 %v1210, %v1232
        %1234 = vdwg.mxu0
        %v1235 = vmax.f32 %v1233, 0.0
        %v1236 = vld [vmem:[%s14] sm:$0xff]
        %v1237 = vld [vmem:[%s14 + $0x8] sm:$0xff]
        %v1238 = vld [vmem:[%s14 + $0x10] sm:$0xff]
        %v1239 = vld [vmem:[%s14 + $0x18] sm:$0xff]
        %v1240 = vld [vmem:[%s14 + $0x20] sm:$0xff]
        %v1241 = vld [vmem:[%s14 + $0x28] sm:$0xff]
        %v1242 = vld [vmem:[%s14 + $0x30] sm:$0xff]
        %v1243 = vld [vmem:[%s14 + $0x38] sm:$0xff]
        %v1244 = vld [vmem:[%s15] sm:$0x1]
        %v1246 = vperm.slane %v1244, 0
        %vm1248 = vcmask 523264
        %v1250 = vsel %vm1248, %v1235, 0
        %1252 = vmatpush.msra.mxu0 0.0
        %1253 = vmatpush.msra.mxu0 0.0
        %1254 = vmatpush.msra.mxu0 0.0
        %1255 = vmatpush.msra.mxu0 0.0
        %1256 = vmatpush.msra.mxu0 0.0
        %1257 = vmatpush.msra.mxu0 0.0
        %1258 = vmatpush.msra.mxu0 0.0
        %1259 = vmatpush.msra.mxu0 0.0
        %1260 = vmatpush.msra.mxu0 %v1243
        %1261 = vmatpush.msra.mxu0 %v1242
        %1262 = vmatpush.msra.mxu0 %v1241
        %1263 = vmatpush.msra.mxu0 %v1240
        %1264 = vmatpush.msra.mxu0 %v1239
        %1265 = vmatpush.msra.mxu0 %v1238
        %1266 = vmatpush.msra.mxu0 %v1237
        %1267 = vmatpush.msra.mxu0 %v1236
        %1268 = vmatmul.f32.gmra.mxu0 %v1250
        %v1269 = vpop.f32.mrf.mxu0
        %v1270 = vadd.f32 %v1246, %v1269
        %1271 = vdwg.mxu0
        %v1272 = vadd.f32 %v1270, %v1203
        %v1273 = vld [vmem:[%s16] sm:$0x1]
        %v1274 = vld [vmem:[%s17] sm:$0x1]
        %v1275 = vsel %vm630, %v1272, 0.0
        %1276 = vadd.xlane.f32.xlu0 %v1275
        %v1277 = vpop.xlane.xlu0 %1276
        %v1278 = vmul.f32 %v1277, %v1176
        %v1279 = vsub.f32 %v1272, %v1278
        %v1280 = vmul.f32 %v1279, %v1279
        %v1281 = vsel %vm630, %v1280, 0.0
        %1282 = vadd.xlane.f32.xlu0 %v1281
        %v1283 = vpop.xlane.xlu0 %1282
        %v1284 = vmul.f32 %v1283, %v1176
        %v1285 = vadd.f32 %v1284, 1e-05
        %v1286 = vrsqrt.pop %v1285
        %v1287 = vmul.f32 %v1286, %v1285
        %v1288 = vmul.f32 %v1287, %v1286
        %v1289 = vmul.f32 0.5, %v1288
        %v1290 = vsub.f32 1.5, %v1289
        %v1291 = vmul.f32 %v1286, %v1290
        %vm1292 = vweird.f32 %v1285
        %vm1293 = vweird.f32 %v1286
        %vm1294 = vmor %vm1292, %vm1293
        %v1295 = vsel %vm1294, %v1286, %v1291
        %v1296 = vmul.f32 %v1279, %v1295
        %v1298 = vperm.slane %v1273, 0
        %v1300 = vmul.f32 %v1296, %v1298
        %v1302 = vperm.slane %v1274, 0
        %v1304 = vadd.f32 %v1300, %v1302
        %1305 = vst.msk [vmem:[%s605] sm:$0xff] %vm630, %v1304
        %s1306 = sand.u32 %s444, 1
        %s1307 = scalar_lea.sflag [#allocation3], %s1306
        %s1308 = sand.u32 %s444, 1
        %s1309 = smul.addr %s1308, 8
        %s1310 = scalar_lea.vmem [#allocation2], %s1309
        // Predicated region
        $region93: #{tpu_custom_call.1} parent=91 // pred_check
          %p1311 = pneg %p454
        $region94: #{tpu_custom_call.1} parent=91 // pred_check_branch
          %1313 = sbr.rel (%p1311) target = $region96
        $region95: #{tpu_custom_call.1} parent=91 // pred_region
          %1315 = vsyncadd %s1307, 0
          %s1316 = smul.addr %s36, 2
          %s1317 = sadd.s32 %s37, %s1316
          %s1318 = smul.addr %s1317, 8
          %s1319 = scalar_lea.hbm %s18, %s1318
          %s1321 = sshll.u32 %s1310, 4
          %s1322 = int_to_ptr.vmem [resolvable:$true] %s1321
          %s1323 = sshll.u32 %s1319, 4
          %s1324 = int_to_ptr.hbm [resolvable:$true] %s1323
          %1326 = dma.vmem_to_hbm [thread:$0]  %s1322, 128, %s1324, %s1307
        $region96: #{tpu_custom_call.1} parent=91 // pred_fallthru
          _
      $region92: #{tpu_custom_call.1} parent=5 // pred_fallthru
        _
      %p1327 = scmp.le.s32.totalorder 2, %s27
      // Predicated region
      $region97: #{tpu_custom_call.1} parent=5 // pred_check
        %p1328 = pneg %p1327
      $region98: #{tpu_custom_call.1} parent=5 // pred_check_branch
        %1330 = sbr.rel (%p1328) target = $region100
      $region99: #{tpu_custom_call.1} parent=5 // pred_region
        %s1331 = ssub.s32 %s27, 2
        // Predicated region
        $region101: #{tpu_custom_call.1} parent=99 // pred_check
          %p1332 = pneg %p460
        $region102: #{tpu_custom_call.1} parent=99 // pred_check_branch
          %1334 = sbr.rel (%p1332) target = $region104
        $region103: #{tpu_custom_call.1} parent=99 // pred_region
          %s1335 = sand.u32 %s445, 1
          %s1336 = scalar_lea.sflag [#allocation3], %s1335
          %s1337 = sand.u32 %s445, 1
          %s1338 = smul.addr %s1337, 8
          %s1339 = scalar_lea.vmem [#allocation2], %s1338
          %1341 = dma.done %s1336, 128
        $region104: #{tpu_custom_call.1} parent=99 // pred_fallthru
          _
      $region100: #{tpu_custom_call.1} parent=5 // pred_fallthru
        _
    $region6: #{tpu_custom_call.1} parent=1 // loop_footer
      %s31 = sadd.s32 1, %s27
    $region7: #{tpu_custom_call.1} parent=1 // loop_footer_branch
      %26 = sbr.rel target = $region3
    $region8: #{tpu_custom_call.1} parent=1 // loop_exit
      _
    %1342 = vsyncpa [#allocation3], 1
    %s1343 = scalar_lea.sflag [#allocation3], 1
    %1344 = vsyncpa %s1343, 1

// kernel: tpu_custom_call.1
$region0: #{tpu_custom_call.1}
  #allocation0 [shape = 'u32[]', space=smem, size = 0x4, offset = 0x4, fixed_abs, tag = 'smem constant byte address 0x4 - core index']
  #allocation1 [shape = 'u32[72,128]{1,0:T(1,128)}', space=vmem, size = 0x9000, scoped, tag = 'internal scratch']
  %s0 = inlined_call_operand.vmem [shape: f32[2,16,32], index: 0, kind: input, shape index: {}]
  %s1 = inlined_call_operand.vmem [shape: f32[2,16,32], index: 1, kind: input, shape index: {}]
  %s2 = inlined_call_operand.vmem [shape: f32[32,64], index: 2, kind: input, shape index: {}]
  %s3 = inlined_call_operand.vmem [shape: f32[1,64], index: 3, kind: input, shape index: {}]
  %s4 = inlined_call_operand.vmem [shape: f32[32,64], index: 4, kind: input, shape index: {}]
  %s5 = inlined_call_operand.vmem [shape: f32[1,64], index: 5, kind: input, shape index: {}]
  %s6 = inlined_call_operand.vmem [shape: f32[32,64], index: 6, kind: input, shape index: {}]
  %s7 = inlined_call_operand.vmem [shape: f32[1,64], index: 7, kind: input, shape index: {}]
  %s8 = inlined_call_operand.vmem [shape: f32[64,32], index: 8, kind: input, shape index: {}]
  %s9 = inlined_call_operand.vmem [shape: f32[1,32], index: 9, kind: input, shape index: {}]
  %s10 = inlined_call_operand.vmem [shape: f32[1,32], index: 10, kind: input, shape index: {}]
  %s11 = inlined_call_operand.vmem [shape: f32[1,32], index: 11, kind: input, shape index: {}]
  %s12 = inlined_call_operand.vmem [shape: f32[32,64], index: 12, kind: input, shape index: {}]
  %s13 = inlined_call_operand.vmem [shape: f32[1,64], index: 13, kind: input, shape index: {}]
  %s14 = inlined_call_operand.vmem [shape: f32[64,32], index: 14, kind: input, shape index: {}]
  %s15 = inlined_call_operand.vmem [shape: f32[1,32], index: 15, kind: input, shape index: {}]
  %s16 = inlined_call_operand.vmem [shape: f32[1,32], index: 16, kind: input, shape index: {}]
  %s17 = inlined_call_operand.vmem [shape: f32[1,32], index: 17, kind: input, shape index: {}]
  %s18 = inlined_call_operand.hbm [shape: f32[2,16,32], index: 18, kind: output, shape index: {}]
  %s19 = sld [smem:[#allocation0]]
  $region105: #{tpu_custom_call.1} parent=0
    _
  %s21 = ssub.s32 1, %s19
  %s22 = scalar_select 0, %s21, %s19
  $region1: #{tpu_custom_call.1} parent=0
    #allocation2 [shape = 'u8[8192]{0}', space=vmem, size = 0x2000, scoped, tag = 'output window, operand 0']
    #allocation3 [shape = 's32[2]{0}', space=sflag, size = 0x8, scoped, tag = 'scoped memory for tpu_custom_call.1']
    %23 = vsyncpa [#allocation3], 0
    %s24 = scalar_lea.sflag [#allocation3], 1
    %25 = vsyncpa %s24, 0
    loop: start=0, step=1, limit=6
    $region2: #{tpu_custom_call.1} parent=1 // loop_pre_header
      _
    $region3: #{tpu_custom_call.1} parent=1 // loop_header
      %s27 = sphi 0, %s31
      %p28 = scmp.ge.s32.totalorder %s27, 6
      %s34 = sphi 0, %s46
      %s35 = sphi 0, %s42
      %s36 = sphi 0, %s34
      %s37 = sphi 0, %s35
      %s38 = sphi 0, %s36
      %s39 = sphi 0, %s37
      %s51 = sphi 0, %s53
      %s54 = sphi 0, %s51
      %s55 = sphi 0, %s54
      %s71 = sphi 0, %s55
      %s77 = sphi 0, %s79
      %s80 = sphi 0, %s77
      %s81 = sphi 0, %s80
      %s97 = sphi 0, %s81
      %s101 = sphi 0, %s101
      %s103 = sphi 0, %s101
      %s104 = sphi 0, %s103
      %s118 = sphi 0, %s104
      %s122 = sphi 0, %s122
      %s124 = sphi 0, %s122
      %s125 = sphi 0, %s124
      %s139 = sphi 0, %s125
      %s143 = sphi 0, %s143
      %s145 = sphi 0, %s143
      %s146 = sphi 0, %s145
      %s160 = sphi 0, %s146
      %s164 = sphi 0, %s164
      %s166 = sphi 0, %s164
      %s167 = sphi 0, %s166
      %s181 = sphi 0, %s167
      %s185 = sphi 0, %s185
      %s187 = sphi 0, %s185
      %s188 = sphi 0, %s187
      %s202 = sphi 0, %s188
      %s206 = sphi 0, %s206
      %s208 = sphi 0, %s206
      %s209 = sphi 0, %s208
      %s223 = sphi 0, %s209
      %s227 = sphi 0, %s227
      %s229 = sphi 0, %s227
      %s230 = sphi 0, %s229
      %s244 = sphi 0, %s230
      %s248 = sphi 0, %s248
      %s250 = sphi 0, %s248
      %s251 = sphi 0, %s250
      %s265 = sphi 0, %s251
      %s269 = sphi 0, %s269
      %s271 = sphi 0, %s269
      %s272 = sphi 0, %s271
      %s286 = sphi 0, %s272
      %s290 = sphi 0, %s290
      %s292 = sphi 0, %s290
      %s293 = sphi 0, %s292
      %s307 = sphi 0, %s293
      %s311 = sphi 0, %s311
      %s313 = sphi 0, %s311
      %s314 = sphi 0, %s313
      %s328 = sphi 0, %s314
      %s332 = sphi 0, %s332
      %s334 = sphi 0, %s332
      %s335 = sphi 0, %s334
      %s349 = sphi 0, %s335
      %s353 = sphi 0, %s353
      %s355 = sphi 0, %s353
      %s356 = sphi 0, %s355
      %s370 = sphi 0, %s356
      %s374 = sphi 0, %s374
      %s376 = sphi 0, %s374
      %s377 = sphi 0, %s376
      %s391 = sphi 0, %s377
      %s395 = sphi 0, %s395
      %s397 = sphi 0, %s395
      %s398 = sphi 0, %s397
      %s412 = sphi 0, %s398
      %s416 = sphi 0, %s416
      %s418 = sphi 0, %s416
      %s419 = sphi 0, %s418
      %s433 = sphi 0, %s419
      %s441 = sphi 0, %s443
      %s444 = sphi 0, %s441
      %s445 = sphi 0, %s444
      %s461 = sphi 0, %s445
    $region4: #{tpu_custom_call.1} parent=1 // loop_header_branch
      %30 = sbr.rel (%p28) target = $region8
    $region5: #{tpu_custom_call.1} parent=1 // loop_body
      %s32 = ssub.s32 %s27, 1
      %s33 = ssub.s32 %s27, 2
      %s40 = sadd.s32 1, %s35
      %p41 = scmp.ge.s32.totalorder %s40, 2
      %s42 = scalar_select %p41, 0, %s40
      %s43 = sadd.s32 1, %s34
      %s44 = scalar_select %p41, %s43, %s34
      %p45 = scmp.ge.s32.totalorder %s44, 2
      %s46 = scalar_select %p45, 0, %s44
      %s47 = ssub.s32 %s34, %s46
      %s48 = ssub.s32 %s35, %s42
      %s49 = sor.u32 %s47, %s48
      %p50 = scmp.eq.s32.totalorder %s49, 0
      %s52 = sadd.s32 %s51, 1
      %s53 = scalar_select %p50, %s51, %s52
      %p56 = pneg %p50
      %p57 = scmp.eq.s32.totalorder %s27, 3
      %p58 = por %p56, %p57
      %p59 = scmp.ne.s32.totalorder %s51, %s54
      %p60 = scmp.eq.s32.totalorder %s27, 0
      %p61 = por %p59, %p60
      %p62 = scmp.ne.s32.totalorder %s51, %s54
      %p63 = scmp.eq.s32.totalorder %s32, 3
      %p64 = por %p62, %p63
      %p65 = scmp.ne.s32.totalorder %s54, %s55
      %p66 = scmp.eq.s32.totalorder %s32, 0
      %p67 = por %p65, %p66
      %p68 = scmp.ne.s32.totalorder %s54, %s55
      %p69 = scmp.eq.s32.totalorder %s33, 3
      %p70 = por %p68, %p69
      %p72 = scmp.ne.s32.totalorder %s55, %s71
      %p73 = scmp.eq.s32.totalorder %s33, 0
      %p74 = por %p72, %p73
      %s75 = ssub.s32 %s34, %s46
      %p76 = scmp.eq.s32.totalorder %s75, 0
      %s78 = sadd.s32 %s77, 1
      %s79 = scalar_select %p76, %s77, %s78
      %p82 = pneg %p76
      %p83 = scmp.eq.s32.totalorder %s27, 3
      %p84 = por %p82, %p83
      %p85 = scmp.ne.s32.totalorder %s77, %s80
      %p86 = scmp.eq.s32.totalorder %s27, 0
      %p87 = por %p85, %p86
      %p88 = scmp.ne.s32.totalorder %s77, %s80
      %p89 = scmp.eq.s32.totalorder %s32, 3
      %p90 = por %p88, %p89
      %p91 = scmp.ne.s32.totalorder %s80, %s81
      %p92 = scmp.eq.s32.totalorder %s32, 0
      %p93 = por %p91, %p92
      %p94 = scmp.ne.s32.totalorder %s80, %s81
      %p95 = scmp.eq.s32.totalorder %s33, 3
      %p96 = por %p94, %p95
      %p98 = scmp.ne.s32.totalorder %s81, %s97
      %p99 = scmp.eq.s32.totalorder %s33, 0
      %p100 = por %p98, %p99
      %s102 = sadd.s32 %s101, 1
      %p105 = scmp.eq.s32.totalorder %s27, 3
      %p106 = scmp.ne.s32.totalorder %s101, %s103
      %p107 = scmp.eq.s32.totalorder %s27, 0
      %p108 = por %p106, %p107
      %p109 = scmp.ne.s32.totalorder %s101, %s103
      %p110 = scmp.eq.s32.totalorder %s32, 3
      %p111 = por %p109, %p110
      %p112 = scmp.ne.s32.totalorder %s103, %s104
      %p113 = scmp.eq.s32.totalorder %s32, 0
      %p114 = por %p112, %p113
      %p115 = scmp.ne.s32.totalorder %s103, %s104
      %p116 = scmp.eq.s32.totalorder %s33, 3
      %p117 = por %p115, %p116
      %p119 = scmp.ne.s32.totalorder %s104, %s118
      %p120 = scmp.eq.s32.totalorder %s33, 0
      %p121 = por %p119, %p120
      %s123 = sadd.s32 %s122, 1
      %p126 = scmp.eq.s32.totalorder %s27, 3
      %p127 = scmp.ne.s32.totalorder %s122, %s124
      %p128 = scmp.eq.s32.totalorder %s27, 0
      %p129 = por %p127, %p128
      %p130 = scmp.ne.s32.totalorder %s122, %s124
      %p131 = scmp.eq.s32.totalorder %s32, 3
      %p132 = por %p130, %p131
      %p133 = scmp.ne.s32.totalorder %s124, %s125
      %p134 = scmp.eq.s32.totalorder %s32, 0
      %p135 = por %p133, %p134
      %p136 = scmp.ne.s32.totalorder %s124, %s125
      %p137 = scmp.eq.s32.totalorder %s33, 3
      %p138 = por %p136, %p137
      %p140 = scmp.ne.s32.totalorder %s125, %s139
      %p141 = scmp.eq.s32.totalorder %s33, 0
      %p142 = por %p140, %p141
      %s144 = sadd.s32 %s143, 1
      %p147 = scmp.eq.s32.totalorder %s27, 3
      %p148 = scmp.ne.s32.totalorder %s143, %s145
      %p149 = scmp.eq.s32.totalorder %s27, 0
      %p150 = por %p148, %p149
      %p151 = scmp.ne.s32.totalorder %s143, %s145
      %p152 = scmp.eq.s32.totalorder %s32, 3
      %p153 = por %p151, %p152
      %p154 = scmp.ne.s32.totalorder %s145, %s146
      %p155 = scmp.eq.s32.totalorder %s32, 0
      %p156 = por %p154, %p155
      %p157 = scmp.ne.s32.totalorder %s145, %s146
      %p158 = scmp.eq.s32.totalorder %s33, 3
      %p159 = por %p157, %p158
      %p161 = scmp.ne.s32.totalorder %s146, %s160
      %p162 = scmp.eq.s32.totalorder %s33, 0
      %p163 = por %p161, %p162
      %s165 = sadd.s32 %s164, 1
      %p168 = scmp.eq.s32.totalorder %s27, 3
      %p169 = scmp.ne.s32.totalorder %s164, %s166
      %p170 = scmp.eq.s32.totalorder %s27, 0
      %p171 = por %p169, %p170
      %p172 = scmp.ne.s32.totalorder %s164, %s166
      %p173 = scmp.eq.s32.totalorder %s32, 3
      %p174 = por %p172, %p173
      %p175 = scmp.ne.s32.totalorder %s166, %s167
      %p176 = scmp.eq.s32.totalorder %s32, 0
      %p177 = por %p175, %p176
      %p178 = scmp.ne.s32.totalorder %s166, %s167
      %p179 = scmp.eq.s32.totalorder %s33, 3
      %p180 = por %p178, %p179
      %p182 = scmp.ne.s32.totalorder %s167, %s181
      %p183 = scmp.eq.s32.totalorder %s33, 0
      %p184 = por %p182, %p183
      %s186 = sadd.s32 %s185, 1
      %p189 = scmp.eq.s32.totalorder %s27, 3
      %p190 = scmp.ne.s32.totalorder %s185, %s187
      %p191 = scmp.eq.s32.totalorder %s27, 0
      %p192 = por %p190, %p191
      %p193 = scmp.ne.s32.totalorder %s185, %s187
      %p194 = scmp.eq.s32.totalorder %s32, 3
      %p195 = por %p193, %p194
      %p196 = scmp.ne.s32.totalorder %s187, %s188
      %p197 = scmp.eq.s32.totalorder %s32, 0
      %p198 = por %p196, %p197
      %p199 = scmp.ne.s32.totalorder %s187, %s188
      %p200 = scmp.eq.s32.totalorder %s33, 3
      %p201 = por %p199, %p200
      %p203 = scmp.ne.s32.totalorder %s188, %s202
      %p204 = scmp.eq.s32.totalorder %s33, 0
      %p205 = por %p203, %p204
      %s207 = sadd.s32 %s206, 1
      %p210 = scmp.eq.s32.totalorder %s27, 3
      %p211 = scmp.ne.s32.totalorder %s206, %s208
      %p212 = scmp.eq.s32.totalorder %s27, 0
      %p213 = por %p211, %p212
      %p214 = scmp.ne.s32.totalorder %s206, %s208
      %p215 = scmp.eq.s32.totalorder %s32, 3
      %p216 = por %p214, %p215
      %p217 = scmp.ne.s32.totalorder %s208, %s209
      %p218 = scmp.eq.s32.totalorder %s32, 0
      %p219 = por %p217, %p218
      %p220 = scmp.ne.s32.totalorder %s208, %s209
      %p221 = scmp.eq.s32.totalorder %s33, 3
      %p222 = por %p220, %p221
      %p224 = scmp.ne.s32.totalorder %s209, %s223
      %p225 = scmp.eq.s32.totalorder %s33, 0
      %p226 = por %p224, %p225
      %s228 = sadd.s32 %s227, 1
      %p231 = scmp.eq.s32.totalorder %s27, 3
      %p232 = scmp.ne.s32.totalorder %s227, %s229
      %p233 = scmp.eq.s32.totalorder %s27, 0
      %p234 = por %p232, %p233
      %p235 = scmp.ne.s32.totalorder %s227, %s229
      %p236 = scmp.eq.s32.totalorder %s32, 3
      %p237 = por %p235, %p236
      %p238 = scmp.ne.s32.totalorder %s229, %s230
      %p239 = scmp.eq.s32.totalorder %s32, 0
      %p240 = por %p238, %p239
      %p241 = scmp.ne.s32.totalorder %s229, %s230
      %p242 = scmp.eq.s32.totalorder %s33, 3
      %p243 = por %p241, %p242
      %p245 = scmp.ne.s32.totalorder %s230, %s244
      %p246 = scmp.eq.s32.totalorder %s33, 0
      %p247 = por %p245, %p246
      %s249 = sadd.s32 %s248, 1
      %p252 = scmp.eq.s32.totalorder %s27, 3
      %p253 = scmp.ne.s32.totalorder %s248, %s250
      %p254 = scmp.eq.s32.totalorder %s27, 0
      %p255 = por %p253, %p254
      %p256 = scmp.ne.s32.totalorder %s248, %s250
      %p257 = scmp.eq.s32.totalorder %s32, 3
      %p258 = por %p256, %p257
      %p259 = scmp.ne.s32.totalorder %s250, %s251
      %p260 = scmp.eq.s32.totalorder %s32, 0
      %p261 = por %p259, %p260
      %p262 = scmp.ne.s32.totalorder %s250, %s251
      %p263 = scmp.eq.s32.totalorder %s33, 3
      %p264 = por %p262, %p263
      %p266 = scmp.ne.s32.totalorder %s251, %s265
      %p267 = scmp.eq.s32.totalorder %s33, 0
      %p268 = por %p266, %p267
      %s270 = sadd.s32 %s269, 1
      %p273 = scmp.eq.s32.totalorder %s27, 3
      %p274 = scmp.ne.s32.totalorder %s269, %s271
      %p275 = scmp.eq.s32.totalorder %s27, 0
      %p276 = por %p274, %p275
      %p277 = scmp.ne.s32.totalorder %s269, %s271
      %p278 = scmp.eq.s32.totalorder %s32, 3
      %p279 = por %p277, %p278
      %p280 = scmp.ne.s32.totalorder %s271, %s272
      %p281 = scmp.eq.s32.totalorder %s32, 0
      %p282 = por %p280, %p281
      %p283 = scmp.ne.s32.totalorder %s271, %s272
      %p284 = scmp.eq.s32.totalorder %s33, 3
      %p285 = por %p283, %p284
      %p287 = scmp.ne.s32.totalorder %s272, %s286
      %p288 = scmp.eq.s32.totalorder %s33, 0
      %p289 = por %p287, %p288
      %s291 = sadd.s32 %s290, 1
      %p294 = scmp.eq.s32.totalorder %s27, 3
      %p295 = scmp.ne.s32.totalorder %s290, %s292
      %p296 = scmp.eq.s32.totalorder %s27, 0
      %p297 = por %p295, %p296
      %p298 = scmp.ne.s32.totalorder %s290, %s292
      %p299 = scmp.eq.s32.totalorder %s32, 3
      %p300 = por %p298, %p299
      %p301 = scmp.ne.s32.totalorder %s292, %s293
      %p302 = scmp.eq.s32.totalorder %s32, 0
      %p303 = por %p301, %p302
      %p304 = scmp.ne.s32.totalorder %s292, %s293
      %p305 = scmp.eq.s32.totalorder %s33, 3
      %p306 = por %p304, %p305
      %p308 = scmp.ne.s32.totalorder %s293, %s307
      %p309 = scmp.eq.s32.totalorder %s33, 0
      %p310 = por %p308, %p309
      %s312 = sadd.s32 %s311, 1
      %p315 = scmp.eq.s32.totalorder %s27, 3
      %p316 = scmp.ne.s32.totalorder %s311, %s313
      %p317 = scmp.eq.s32.totalorder %s27, 0
      %p318 = por %p316, %p317
      %p319 = scmp.ne.s32.totalorder %s311, %s313
      %p320 = scmp.eq.s32.totalorder %s32, 3
      %p321 = por %p319, %p320
      %p322 = scmp.ne.s32.totalorder %s313, %s314
      %p323 = scmp.eq.s32.totalorder %s32, 0
      %p324 = por %p322, %p323
      %p325 = scmp.ne.s32.totalorder %s313, %s314
      %p326 = scmp.eq.s32.totalorder %s33, 3
      %p327 = por %p325, %p326
      %p329 = scmp.ne.s32.totalorder %s314, %s328
      %p330 = scmp.eq.s32.totalorder %s33, 0
      %p331 = por %p329, %p330
      %s333 = sadd.s32 %s332, 1
      %p336 = scmp.eq.s32.totalorder %s27, 3
      %p337 = scmp.ne.s32.totalorder %s332, %s334
      %p338 = scmp.eq.s32.totalorder %s27, 0
      %p339 = por %p337, %p338
      %p340 = scmp.ne.s32.totalorder %s332, %s334
      %p341 = scmp.eq.s32.totalorder %s32, 3
      %p342 = por %p340, %p341
      %p343 = scmp.ne.s32.totalorder %s334, %s335
      %p344 = scmp.eq.s32.totalorder %s32, 0
      %p345 = por %p343, %p344
      %p346 = scmp.ne.s32.totalorder %s334, %s335
      %p347 = scmp.eq.s32.totalorder %s33, 3
      %p348 = por %p346, %p347
      %p350 = scmp.ne.s32.totalorder %s335, %s349
      %p351 = scmp.eq.s32.totalorder %s33, 0
      %p352 = por %p350, %p351
      %s354 = sadd.s32 %s353, 1
      %p357 = scmp.eq.s32.totalorder %s27, 3
      %p358 = scmp.ne.s32.totalorder %s353, %s355
      %p359 = scmp.eq.s32.totalorder %s27, 0
      %p360 = por %p358, %p359
      %p361 = scmp.ne.s32.totalorder %s353, %s355
      %p362 = scmp.eq.s32.totalorder %s32, 3
      %p363 = por %p361, %p362
      %p364 = scmp.ne.s32.totalorder %s355, %s356
      %p365 = scmp.eq.s32.totalorder %s32, 0
      %p366 = por %p364, %p365
      %p367 = scmp.ne.s32.totalorder %s355, %s356
      %p368 = scmp.eq.s32.totalorder %s33, 3
      %p369 = por %p367, %p368
      %p371 = scmp.ne.s32.totalorder %s356, %s370
      %p372 = scmp.eq.s32.totalorder %s33, 0
      %p373 = por %p371, %p372
      %s375 = sadd.s32 %s374, 1
      %p378 = scmp.eq.s32.totalorder %s27, 3
      %p379 = scmp.ne.s32.totalorder %s374, %s376
      %p380 = scmp.eq.s32.totalorder %s27, 0
      %p381 = por %p379, %p380
      %p382 = scmp.ne.s32.totalorder %s374, %s376
      %p383 = scmp.eq.s32.totalorder %s32, 3
      %p384 = por %p382, %p383
      %p385 = scmp.ne.s32.totalorder %s376, %s377
      %p386 = scmp.eq.s32.totalorder %s32, 0
      %p387 = por %p385, %p386
      %p388 = scmp.ne.s32.totalorder %s376, %s377
      %p389 = scmp.eq.s32.totalorder %s33, 3
      %p390 = por %p388, %p389
      %p392 = scmp.ne.s32.totalorder %s377, %s391
      %p393 = scmp.eq.s32.totalorder %s33, 0
      %p394 = por %p392, %p393
      %s396 = sadd.s32 %s395, 1
      %p399 = scmp.eq.s32.totalorder %s27, 3
      %p400 = scmp.ne.s32.totalorder %s395, %s397
      %p401 = scmp.eq.s32.totalorder %s27, 0
      %p402 = por %p400, %p401
      %p403 = scmp.ne.s32.totalorder %s395, %s397
      %p404 = scmp.eq.s32.totalorder %s32, 3
      %p405 = por %p403, %p404
      %p406 = scmp.ne.s32.totalorder %s397, %s398
      %p407 = scmp.eq.s32.totalorder %s32, 0
      %p408 = por %p406, %p407
      %p409 = scmp.ne.s32.totalorder %s397, %s398
      %p410 = scmp.eq.s32.totalorder %s33, 3
      %p411 = por %p409, %p410
      %p413 = scmp.ne.s32.totalorder %s398, %s412
      %p414 = scmp.eq.s32.totalorder %s33, 0
      %p415 = por %p413, %p414
      %s417 = sadd.s32 %s416, 1
      %p420 = scmp.eq.s32.totalorder %s27, 3
      %p421 = scmp.ne.s32.totalorder %s416, %s418
      %p422 = scmp.eq.s32.totalorder %s27, 0
      %p423 = por %p421, %p422
      %p424 = scmp.ne.s32.totalorder %s416, %s418
      %p425 = scmp.eq.s32.totalorder %s32, 3
      %p426 = por %p424, %p425
      %p427 = scmp.ne.s32.totalorder %s418, %s419
      %p428 = scmp.eq.s32.totalorder %s32, 0
      %p429 = por %p427, %p428
      %p430 = scmp.ne.s32.totalorder %s418, %s419
      %p431 = scmp.eq.s32.totalorder %s33, 3
      %p432 = por %p430, %p431
      %p434 = scmp.ne.s32.totalorder %s419, %s433
      %p435 = scmp.eq.s32.totalorder %s33, 0
      %p436 = por %p434, %p435
      %s437 = ssub.s32 %s34, %s46
      %s438 = ssub.s32 %s35, %s42
      %s439 = sor.u32 %s437, %s438
      %p440 = scmp.eq.s32.totalorder %s439, 0
      %s442 = sadd.s32 %s441, 1
      %s443 = scalar_select %p440, %s441, %s442
      %p446 = pneg %p440
      %p447 = scmp.eq.s32.totalorder %s27, 3
      %p448 = por %p446, %p447
      %p449 = scmp.ne.s32.totalorder %s441, %s444
      %p450 = scmp.eq.s32.totalorder %s27, 0
      %p451 = por %p449, %p450
      %p452 = scmp.ne.s32.totalorder %s441, %s444
      %p453 = scmp.eq.s32.totalorder %s32, 3
      %p454 = por %p452, %p453
      %p455 = scmp.ne.s32.totalorder %s444, %s445
      %p456 = scmp.eq.s32.totalorder %s32, 0
      %p457 = por %p455, %p456
      %p458 = scmp.ne.s32.totalorder %s444, %s445
      %p459 = scmp.eq.s32.totalorder %s33, 3
      %p460 = por %p458, %p459
      %p462 = scmp.ne.s32.totalorder %s445, %s461
      %p463 = scmp.eq.s32.totalorder %s33, 0
      %p464 = por %p462, %p463
      %p465 = scmp.le.s32.totalorder 1, %s27
      %p466 = scmp.lt.s32.totalorder %s27, 5
      %p467 = pnand %p465, %p466
      %p468 = pneg %p467
      // Predicated region
      $region9: #{tpu_custom_call.1} parent=5 // pred_check
        _
      $region10: #{tpu_custom_call.1} parent=5 // pred_check_branch
        %470 = sbr.rel (%p467) target = $region12
      $region11: #{tpu_custom_call.1} parent=5 // pred_region
        %s471 = ssub.s32 %s27, 1
        // Predicated region
        $region13: #{tpu_custom_call.1} parent=11 // pred_check
          %p472 = pneg %p114
        $region14: #{tpu_custom_call.1} parent=11 // pred_check_branch
          %474 = sbr.rel (%p472) target = $region16
        $region15: #{tpu_custom_call.1} parent=11 // pred_region
          _
        $region16: #{tpu_custom_call.1} parent=11 // pred_fallthru
          _
        // Predicated region
        $region17: #{tpu_custom_call.1} parent=11 // pred_check
          %p475 = pneg %p135
        $region18: #{tpu_custom_call.1} parent=11 // pred_check_branch
          %477 = sbr.rel (%p475) target = $region20
        $region19: #{tpu_custom_call.1} parent=11 // pred_region
          _
        $region20: #{tpu_custom_call.1} parent=11 // pred_fallthru
          _
        // Predicated region
        $region21: #{tpu_custom_call.1} parent=11 // pred_check
          %p478 = pneg %p156
        $region22: #{tpu_custom_call.1} parent=11 // pred_check_branch
          %480 = sbr.rel (%p478) target = $region24
        $region23: #{tpu_custom_call.1} parent=11 // pred_region
          _
        $region24: #{tpu_custom_call.1} parent=11 // pred_fallthru
          _
        // Predicated region
        $region25: #{tpu_custom_call.1} parent=11 // pred_check
          %p481 = pneg %p177
        $region26: #{tpu_custom_call.1} parent=11 // pred_check_branch
          %483 = sbr.rel (%p481) target = $region28
        $region27: #{tpu_custom_call.1} parent=11 // pred_region
          _
        $region28: #{tpu_custom_call.1} parent=11 // pred_fallthru
          _
        // Predicated region
        $region29: #{tpu_custom_call.1} parent=11 // pred_check
          %p484 = pneg %p198
        $region30: #{tpu_custom_call.1} parent=11 // pred_check_branch
          %486 = sbr.rel (%p484) target = $region32
        $region31: #{tpu_custom_call.1} parent=11 // pred_region
          _
        $region32: #{tpu_custom_call.1} parent=11 // pred_fallthru
          _
        // Predicated region
        $region33: #{tpu_custom_call.1} parent=11 // pred_check
          %p487 = pneg %p219
        $region34: #{tpu_custom_call.1} parent=11 // pred_check_branch
          %489 = sbr.rel (%p487) target = $region36
        $region35: #{tpu_custom_call.1} parent=11 // pred_region
          _
        $region36: #{tpu_custom_call.1} parent=11 // pred_fallthru
          _
        // Predicated region
        $region37: #{tpu_custom_call.1} parent=11 // pred_check
          %p490 = pneg %p240
        $region38: #{tpu_custom_call.1} parent=11 // pred_check_branch
          %492 = sbr.rel (%p490) target = $region40
        $region39: #{tpu_custom_call.1} parent=11 // pred_region
          _
        $region40: #{tpu_custom_call.1} parent=11 // pred_fallthru
          _
        // Predicated region
        $region41: #{tpu_custom_call.1} parent=11 // pred_check
          %p493 = pneg %p261
        $region42: #{tpu_custom_call.1} parent=11 // pred_check_branch
          %495 = sbr.rel (%p493) target = $region44
        $region43: #{tpu_custom_call.1} parent=11 // pred_region
          _
        $region44: #{tpu_custom_call.1} parent=11 // pred_fallthru
          _
        // Predicated region
        $region45: #{tpu_custom_call.1} parent=11 // pred_check
          %p496 = pneg %p282
        $region46: #{tpu_custom_call.1} parent=11 // pred_check_branch
          %498 = sbr.rel (%p496) target = $region48
        $region47: #{tpu_custom_call.1} parent=11 // pred_region
          _
        $region48: #{tpu_custom_call.1} parent=11 // pred_fallthru
          _
        // Predicated region
        $region49: #{tpu_custom_call.1} parent=11 // pred_check
          %p499 = pneg %p303
        $region50: #{tpu_custom_call.1} parent=11 // pred_check_branch
          %501 = sbr.rel (%p499) target = $region52
        $region51: #{tpu_custom_call.1} parent=11 // pred_region
          _
        $region52: #{tpu_custom_call.1} parent=11 // pred_fallthru
          _
        // Predicated region
        $region53: #{tpu_custom_call.1} parent=11 // pred_check
          %p502 = pneg %p324
        $region54: #{tpu_custom_call.1} parent=11 // pred_check_branch
          %504 = sbr.rel (%p502) target = $region56
        $region55: #{tpu_custom_call.1} parent=11 // pred_region
          _
        $region56: #{tpu_custom_call.1} parent=11 // pred_fallthru
          _
        // Predicated region
        $region57: #{tpu_custom_call.1} parent=11 // pred_check
          %p505 = pneg %p345
        $region58: #{tpu_custom_call.1} parent=11 // pred_check_branch
          %507 = sbr.rel (%p505) target = $region60
        $region59: #{tpu_custom_call.1} parent=11 // pred_region
          _
        $region60: #{tpu_custom_call.1} parent=11 // pred_fallthru
          _
        // Predicated region
        $region61: #{tpu_custom_call.1} parent=11 // pred_check
          %p508 = pneg %p366
        $region62: #{tpu_custom_call.1} parent=11 // pred_check_branch
          %510 = sbr.rel (%p508) target = $region64
        $region63: #{tpu_custom_call.1} parent=11 // pred_region
          _
        $region64: #{tpu_custom_call.1} parent=11 // pred_fallthru
          _
        // Predicated region
        $region65: #{tpu_custom_call.1} parent=11 // pred_check
          %p511 = pneg %p387
        $region66: #{tpu_custom_call.1} parent=11 // pred_check_branch
          %513 = sbr.rel (%p511) target = $region68
        $region67: #{tpu_custom_call.1} parent=11 // pred_region
          _
        $region68: #{tpu_custom_call.1} parent=11 // pred_fallthru
          _
        // Predicated region
        $region69: #{tpu_custom_call.1} parent=11 // pred_check
          %p514 = pneg %p408
        $region70: #{tpu_custom_call.1} parent=11 // pred_check_branch
          %516 = sbr.rel (%p514) target = $region72
        $region71: #{tpu_custom_call.1} parent=11 // pred_region
          _
        $region72: #{tpu_custom_call.1} parent=11 // pred_fallthru
          _
        // Predicated region
        $region73: #{tpu_custom_call.1} parent=11 // pred_check
          %p517 = pneg %p429
        $region74: #{tpu_custom_call.1} parent=11 // pred_check_branch
          %519 = sbr.rel (%p517) target = $region76
        $region75: #{tpu_custom_call.1} parent=11 // pred_region
          _
        $region76: #{tpu_custom_call.1} parent=11 // pred_fallthru
          _
      $region12: #{tpu_custom_call.1} parent=5 // pred_fallthru
        _
      %p520 = scmp.lt.s32.totalorder %s27, 4
      // Predicated region
      $region77: #{tpu_custom_call.1} parent=5 // pred_check
        %p521 = pneg %p520
      $region78: #{tpu_custom_call.1} parent=5 // pred_check_branch
        %523 = sbr.rel (%p521) target = $region80
      $region79: #{tpu_custom_call.1} parent=5 // pred_region
        // Predicated region
        $region81: #{tpu_custom_call.1} parent=79 // pred_check
          %p524 = pneg %p61
        $region82: #{tpu_custom_call.1} parent=79 // pred_check_branch
          %526 = sbr.rel (%p524) target = $region84
        $region83: #{tpu_custom_call.1} parent=79 // pred_region
          %p527 = scmp.lt.s32.totalorder %s34, 1
          %s528 = scalar_select %p527, %s34, 1
          %p529 = scmp.lt.s32.totalorder %s35, 1
          %s530 = scalar_select %p529, %s35, 1
          %s531 = smul.addr %s528, 2
          %s532 = sadd.s32 %s530, %s531
          %s533 = smul.addr %s532, 8
          %s534 = scalar_lea.vmem %s0, %s533
        $region84: #{tpu_custom_call.1} parent=79 // pred_fallthru
          _
        // Predicated region
        $region85: #{tpu_custom_call.1} parent=79 // pred_check
          %p535 = pneg %p87
        $region86: #{tpu_custom_call.1} parent=79 // pred_check_branch
          %537 = sbr.rel (%p535) target = $region88
        $region87: #{tpu_custom_call.1} parent=79 // pred_region
          %p538 = scmp.lt.s32.totalorder %s34, 1
          %s539 = scalar_select %p538, %s34, 1
          %s540 = smul.addr %s539, 2
          %s541 = smul.addr %s540, 8
          %s542 = scalar_lea.vmem %s1, %s541
        $region88: #{tpu_custom_call.1} parent=79 // pred_fallthru
          _
      $region80: #{tpu_custom_call.1} parent=5 // pred_fallthru
        _
      %p543 = scmp.le.s32.totalorder 1, %s27
      %p544 = scmp.lt.s32.totalorder %s27, 5
      %p545 = pnand %p543, %p544
      %p546 = pneg %p545
      // Predicated region
      $region89: #{tpu_custom_call.1} parent=5 // pred_check
        _
      $region90: #{tpu_custom_call.1} parent=5 // pred_check_branch
        %548 = sbr.rel (%p545) target = $region92
      $region91: #{tpu_custom_call.1} parent=5 // pred_region
        %s549 = ssub.s32 %s27, 1
        %p550 = scmp.lt.s32.totalorder %s36, 1
        %s551 = scalar_select %p550, %s36, 1
        %p552 = scmp.lt.s32.totalorder %s37, 1
        %s553 = scalar_select %p552, %s37, 1
        %s554 = smul.addr %s551, 2
        %s555 = sadd.s32 %s553, %s554
        %s556 = smul.addr %s555, 8
        %s557 = scalar_lea.vmem %s0, %s556
        %p558 = pneg %p67
        %p559 = pneg %p64
        %p560 = scmp.lt.s32.totalorder %s36, 1
        %s561 = scalar_select %p560, %s36, 1
        %s562 = smul.addr %s561, 2
        %s563 = smul.addr %s562, 8
        %s564 = scalar_lea.vmem %s1, %s563
        %p565 = pneg %p93
        %p566 = pneg %p90
        %p567 = pneg %p114
        %p568 = pneg %p111
        %p569 = pneg %p135
        %p570 = pneg %p132
        %p571 = pneg %p156
        %p572 = pneg %p153
        %p573 = pneg %p177
        %p574 = pneg %p174
        %p575 = pneg %p198
        %p576 = pneg %p195
        %p577 = pneg %p219
        %p578 = pneg %p216
        %p579 = pneg %p240
        %p580 = pneg %p237
        %p581 = pneg %p261
        %p582 = pneg %p258
        %p583 = pneg %p282
        %p584 = pneg %p279
        %p585 = pneg %p303
        %p586 = pneg %p300
        %p587 = pneg %p324
        %p588 = pneg %p321
        %p589 = pneg %p345
        %p590 = pneg %p342
        %p591 = pneg %p366
        %p592 = pneg %p363
        %p593 = pneg %p387
        %p594 = pneg %p384
        %p595 = pneg %p408
        %p596 = pneg %p405
        %p597 = pneg %p429
        %p598 = pneg %p426
        %p599 = pneg %p457
        %p600 = pneg %p454
        %s601 = sand.u32 %s444, 1
        %s602 = scalar_lea.sflag [#allocation3], %s601
        %s603 = sand.u32 %s444, 1
        %s604 = smul.addr %s603, 8
        %s605 = scalar_lea.vmem [#allocation2], %s604
        %p606 = scmp.lt.s32.totalorder %s36, 1
        %s607 = scalar_select %p606, %s36, 1
        %p608 = scmp.lt.s32.totalorder %s37, 1
        %s609 = scalar_select %p608, %s37, 1
        %s610 = smul.addr %s607, 2
        %s611 = sadd.s32 %s609, %s610
        %s612 = smul.addr %s611, 8
        %s613 = scalar_lea.vmem %s0, %s612
        %p614 = scmp.lt.s32.totalorder %s36, 1
        %s615 = scalar_select %p614, %s36, 1
        %s616 = smul.addr %s615, 2
        %s617 = smul.addr %s616, 8
        %s618 = scalar_lea.vmem %s1, %s617
        %v619 = vld [vmem:[%s613] sm:$0xff]
        %v620 = vld [vmem:[%s618] sm:$0xff]
        %v621 = vld [vmem:[%s618 + $0x8] sm:$0xff]
        %v622 = vld [vmem:[%s2] sm:$0xff]
        %v623 = vld [vmem:[%s2 + $0x8] sm:$0xff]
        %v624 = vld [vmem:[%s2 + $0x10] sm:$0xff]
        %v625 = vld [vmem:[%s2 + $0x18] sm:$0xff]
        %v626 = vld [vmem:[%s3] sm:$0x1]
        %v628 = vperm.slane %v626, 0
        %vm630 = vcmask 261120
        %v632 = vsel %vm630, %v619, 0
        %634 = vmatpush.msra.mxu0 0.0
        %635 = vmatpush.msra.mxu0 0.0
        %636 = vmatpush.msra.mxu0 0.0
        %637 = vmatpush.msra.mxu0 0.0
        %638 = vmatpush.msra.mxu0 0.0
        %639 = vmatpush.msra.mxu0 0.0
        %640 = vmatpush.msra.mxu0 0.0
        %641 = vmatpush.msra.mxu0 0.0
        %642 = vmatpush.msra.mxu0 0.0
        %643 = vmatpush.msra.mxu0 0.0
        %644 = vmatpush.msra.mxu0 0.0
        %645 = vmatpush.msra.mxu0 0.0
        %646 = vmatpush.msra.mxu0 %v625
        %647 = vmatpush.msra.mxu0 %v624
        %648 = vmatpush.msra.mxu0 %v623
        %649 = vmatpush.msra.mxu0 %v622
        %650 = vmatmul.f32.gmra.mxu0 %v632
        %v651 = vpop.f32.mrf.mxu0
        %v652 = vadd.f32 %v628, %v651
        %653 = vdwg.mxu0
        %v654 = vld [vmem:[%s4] sm:$0xff]
        %v655 = vld [vmem:[%s4 + $0x8] sm:$0xff]
        %v656 = vld [vmem:[%s4 + $0x10] sm:$0xff]
        %v657 = vld [vmem:[%s4 + $0x18] sm:$0xff]
        %v658 = vld [vmem:[%s5] sm:$0x1]
        %v660 = vperm.slane %v658, 0
        %v663 = vsel %vm630, %v620, 0
        %v666 = vsel %vm630, %v621, 0
        %668 = vmatpush.msra.mxu0 0.0
        %669 = vmatpush.msra.mxu0 0.0
        %670 = vmatpush.msra.mxu0 0.0
        %671 = vmatpush.msra.mxu0 0.0
        %672 = vmatpush.msra.mxu0 0.0
        %673 = vmatpush.msra.mxu0 0.0
        %674 = vmatpush.msra.mxu0 0.0
        %675 = vmatpush.msra.mxu0 0.0
        %676 = vmatpush.msra.mxu0 0.0
        %677 = vmatpush.msra.mxu0 0.0
        %678 = vmatpush.msra.mxu0 0.0
        %679 = vmatpush.msra.mxu0 0.0
        %680 = vmatpush.msra.mxu0 %v657
        %681 = vmatpush.msra.mxu0 %v656
        %682 = vmatpush.msra.mxu0 %v655
        %683 = vmatpush.msra.mxu0 %v654
        %684 = vmatmul.f32.gmra.mxu0 %v663
        %v685 = vpop.f32.mrf.mxu0
        %v686 = vadd.f32 %v660, %v685
        %687 = vmatmul.f32.gmra.mxu0 %v666
        %v688 = vpop.f32.mrf.mxu0
        %v689 = vadd.f32 %v660, %v688
        %690 = vdwg.mxu0
        %v691 = vld [vmem:[%s6] sm:$0xff]
        %v692 = vld [vmem:[%s6 + $0x8] sm:$0xff]
        %v693 = vld [vmem:[%s6 + $0x10] sm:$0xff]
        %v694 = vld [vmem:[%s6 + $0x18] sm:$0xff]
        %v695 = vld [vmem:[%s7] sm:$0x1]
        %v697 = vperm.slane %v695, 0
        %699 = vmatpush.msra.mxu0 0.0
        %700 = vmatpush.msra.mxu0 0.0
        %701 = vmatpush.msra.mxu0 0.0
        %702 = vmatpush.msra.mxu0 0.0
        %703 = vmatpush.msra.mxu0 0.0
        %704 = vmatpush.msra.mxu0 0.0
        %705 = vmatpush.msra.mxu0 0.0
        %706 = vmatpush.msra.mxu0 0.0
        %707 = vmatpush.msra.mxu0 0.0
        %708 = vmatpush.msra.mxu0 0.0
        %709 = vmatpush.msra.mxu0 0.0
        %710 = vmatpush.msra.mxu0 0.0
        %711 = vmatpush.msra.mxu0 %v694
        %712 = vmatpush.msra.mxu0 %v693
        %713 = vmatpush.msra.mxu0 %v692
        %714 = vmatpush.msra.mxu0 %v691
        %715 = vmatmul.f32.gmra.mxu0 %v663
        %v716 = vpop.f32.mrf.mxu0
        %v717 = vadd.f32 %v697, %v716
        %718 = vmatmul.f32.gmra.mxu0 %v666
        %v719 = vpop.f32.mrf.mxu0
        %v720 = vadd.f32 %v697, %v719
        %721 = vdwg.mxu0
        %v722 = vmul.f32 %v652, 0.25
        %vm723 = vcmask 130048
        %v725 = vsel %vm723, %v722, 0
        %v728 = vsel %vm723, %v686, 0
        %v731 = vsel %vm723, %v689, 0
        %733 = vmatpush.xpose.msra.mxu0 0.0
        %734 = vmatpush.xpose.msra.mxu0 0.0
        %735 = vmatpush.xpose.msra.mxu0 0.0
        %736 = vmatpush.xpose.msra.mxu0 0.0
        %737 = vmatpush.xpose.msra.mxu0 0.0
        %738 = vmatpush.xpose.msra.mxu0 0.0
        %739 = vmatpush.xpose.msra.mxu0 0.0
        %740 = vmatpush.xpose.msra.mxu0 0.0
        %741 = vmatpush.xpose.msra.mxu0 0.0
        %742 = vmatpush.xpose.msra.mxu0 0.0
        %743 = vmatpush.xpose.msra.mxu0 0.0
        %744 = vmatpush.xpose.msra.mxu0 0.0
        %745 = vmatpush.xpose.msra.mxu0 0.0
        %746 = vmatpush.xpose.msra.mxu0 0.0
        %747 = vmatpush.xpose.msra.mxu0 %v731
        %748 = vmatpush.xpose.msra.mxu0 %v728
        %749 = vmatmul.f32.gmra.mxu0 %v725
        %v750 = vpop.f32.mrf.mxu0
        %v751 = vadd.f32 0.0, %v750
        %752 = vdwg.mxu0
        %v753 = vsel %vm723, %v751, -inf
        %754 = vmax.xlane.f32.xlu0 %v753
        %v755 = vpop.xlane.xlu0 %754
        %v756 = vsub.f32 %v751, %v755
        %v757 = vmul.f32 %v756, 1.442695
        %v758 = vpow.pop %v757
        %v759 = vsel %vm723, %v758, 0.0
        %760 = vadd.xlane.f32.xlu0 %v759
        %v761 = vpop.xlane.xlu0 %760
        %v762 = vrcp.pop %v761
        %v763 = vmul.f32 %v761, %v762
        %v764 = vsub.f32 1.0, %v763
        %v765 = vmul.f32 %v762, %v764
        %v766 = vadd.f32 %v762, %v765
        %vm767 = vweird.f32 %v761
        %vm768 = vweird.f32 %v762
        %vm769 = vmor %vm767, %vm768
        %v770 = vsel %vm769, %v762, %v766
        %v771 = vand.u32 2147483647, %v761
        %vm772 = vcmp.eq.f32.partialorder %v771, 8.507059e+37
        %v773 = vand.u32 %v761, 2147483648
        %v774 = vor.u32 1.1754944e-38, %v773
        %v775 = vsel %vm772, %v774, %v770
        %v776 = vmul.f32 %v758, %v775
        %v778 = vsel %vm723, %v776, 0
        %780 = vmatpush.msra.mxu0 0.0
        %781 = vmatpush.msra.mxu0 0.0
        %782 = vmatpush.msra.mxu0 0.0
        %783 = vmatpush.msra.mxu0 0.0
        %784 = vmatpush.msra.mxu0 0.0
        %785 = vmatpush.msra.mxu0 0.0
        %786 = vmatpush.msra.mxu0 0.0
        %787 = vmatpush.msra.mxu0 0.0
        %788 = vmatpush.msra.mxu0 0.0
        %789 = vmatpush.msra.mxu0 0.0
        %790 = vmatpush.msra.mxu0 0.0
        %791 = vmatpush.msra.mxu0 0.0
        %792 = vmatpush.msra.mxu0 0.0
        %793 = vmatpush.msra.mxu0 0.0
        %794 = vmatpush.msra.mxu0 %v720
        %795 = vmatpush.msra.mxu0 %v717
        %796 = vmatmul.f32.gmra.mxu0 %v778
        %v797 = vpop.f32.mrf.mxu0
        %v798 = vadd.f32 0.0, %v797
        %799 = vdwg.mxu0
        %v800 = vld [vmem:[%s8] sm:$0xff]
        %v801 = vld [vmem:[%s8 + $0x8] sm:$0xff]
        %802 = vrot.lane.b32.xlu0 %v722, 112
        %v803 = vpop.permute.xlu0 %802
        %804 = vrot.lane.b32.xlu0 %v686, 112
        %v805 = vpop.permute.xlu0 %804
        %806 = vrot.lane.b32.xlu0 %v689, 112
        %v807 = vpop.permute.xlu0 %806
        %v808 = vsel %vm723, %v803, 0
        %v810 = vsel %vm723, %v805, 0
        %v812 = vsel %vm723, %v807, 0
        %814 = vmatpush.xpose.msra.mxu0 0.0
        %815 = vmatpush.xpose.msra.mxu0 0.0
        %816 = vmatpush.xpose.msra.mxu0 0.0
        %817 = vmatpush.xpose.msra.mxu0 0.0
        %818 = vmatpush.xpose.msra.mxu0 0.0
        %819 = vmatpush.xpose.msra.mxu0 0.0
        %820 = vmatpush.xpose.msra.mxu0 0.0
        %821 = vmatpush.xpose.msra.mxu0 0.0
        %822 = vmatpush.xpose.msra.mxu0 0.0
        %823 = vmatpush.xpose.msra.mxu0 0.0
        %824 = vmatpush.xpose.msra.mxu0 0.0
        %825 = vmatpush.xpose.msra.mxu0 0.0
        %826 = vmatpush.xpose.msra.mxu0 0.0
        %827 = vmatpush.xpose.msra.mxu0 0.0
        %828 = vmatpush.xpose.msra.mxu0 %v812
        %829 = vmatpush.xpose.msra.mxu0 %v810
        %830 = vmatmul.f32.gmra.mxu0 %v808
        %v831 = vpop.f32.mrf.mxu0
        %v832 = vadd.f32 0.0, %v831
        %833 = vdwg.mxu0
        %v834 = vsel %vm723, %v832, -inf
        %835 = vmax.xlane.f32.xlu0 %v834
        %v836 = vpop.xlane.xlu0 %835
        %v837 = vsub.f32 %v832, %v836
        %v838 = vmul.f32 %v837, 1.442695
        %v839 = vpow.pop %v838
        %v840 = vsel %vm723, %v839, 0.0
        %841 = vadd.xlane.f32.xlu0 %v840
        %v842 = vpop.xlane.xlu0 %841
        %v843 = vrcp.pop %v842
        %v844 = vmul.f32 %v842, %v843
        %v845 = vsub.f32 1.0, %v844
        %v846 = vmul.f32 %v843, %v845
        %v847 = vadd.f32 %v843, %v846
        %vm848 = vweird.f32 %v842
        %vm849 = vweird.f32 %v843
        %vm850 = vmor %vm848, %vm849
        %v851 = vsel %vm850, %v843, %v847
        %v852 = vand.u32 2147483647, %v842
        %vm853 = vcmp.eq.f32.partialorder %v852, 8.507059e+37
        %v854 = vand.u32 %v842, 2147483648
        %v855 = vor.u32 1.1754944e-38, %v854
        %v856 = vsel %vm853, %v855, %v851
        %v857 = vmul.f32 %v839, %v856
        %860 = vrot.lane.b32.xlu0 %v717, 112
        %v861 = vpop.permute.xlu0 %860
        %862 = vrot.lane.b32.xlu0 %v720, 112
        %v863 = vpop.permute.xlu0 %862
        %v867 = vsel %vm723, %v857, 0
        %869 = vmatpush.msra.mxu0 0.0
        %870 = vmatpush.msra.mxu0 0.0
        %871 = vmatpush.msra.mxu0 0.0
        %872 = vmatpush.msra.mxu0 0.0
        %873 = vmatpush.msra.mxu0 0.0
        %874 = vmatpush.msra.mxu0 0.0
        %875 = vmatpush.msra.mxu0 0.0
        %876 = vmatpush.msra.mxu0 0.0
        %877 = vmatpush.msra.mxu0 0.0
        %878 = vmatpush.msra.mxu0 0.0
        %879 = vmatpush.msra.mxu0 0.0
        %880 = vmatpush.msra.mxu0 0.0
        %881 = vmatpush.msra.mxu0 0.0
        %882 = vmatpush.msra.mxu0 0.0
        %883 = vmatpush.msra.mxu0 %v863
        %884 = vmatpush.msra.mxu0 %v861
        %885 = vmatmul.f32.gmra.mxu0 %v867
        %v886 = vpop.f32.mrf.mxu0
        %v887 = vadd.f32 0.0, %v886
        %888 = vdwg.mxu0
        %v889 = vld [vmem:[%s8 + $0x10] sm:$0xff]
        %v890 = vld [vmem:[%s8 + $0x18] sm:$0xff]
        %v892 = vsel %vm723, %v887, 0
        %894 = vmatpush.msra.mxu0 0.0
        %895 = vmatpush.msra.mxu0 0.0
        %896 = vmatpush.msra.mxu0 0.0
        %897 = vmatpush.msra.mxu0 0.0
        %898 = vmatpush.msra.mxu0 0.0
        %899 = vmatpush.msra.mxu0 0.0
        %900 = vmatpush.msra.mxu0 0.0
        %901 = vmatpush.msra.mxu0 0.0
        %902 = vmatpush.msra.mxu0 0.0
        %903 = vmatpush.msra.mxu0 0.0
        %904 = vmatpush.msra.mxu0 0.0
        %905 = vmatpush.msra.mxu0 0.0
        %906 = vmatpush.msra.mxu0 0.0
        %907 = vmatpush.msra.mxu0 0.0
        %908 = vmatpush.msra.mxu0 %v890
        %909 = vmatpush.msra.mxu0 %v889
        %910 = vmatmul.f32.gmra.mxu0 %v892
        %v911 = vpop.f32.mrf.mxu0
        %v912 = vadd.f32 0.0, %v911
        %913 = vdwg.mxu0
        %v915 = vsel %vm723, %v798, 0
        %917 = vmatpush.msra.mxu0 0.0
        %918 = vmatpush.msra.mxu0 0.0
        %919 = vmatpush.msra.mxu0 0.0
        %920 = vmatpush.msra.mxu0 0.0
        %921 = vmatpush.msra.mxu0 0.0
        %922 = vmatpush.msra.mxu0 0.0
        %923 = vmatpush.msra.mxu0 0.0
        %924 = vmatpush.msra.mxu0 0.0
        %925 = vmatpush.msra.mxu0 0.0
        %926 = vmatpush.msra.mxu0 0.0
        %927 = vmatpush.msra.mxu0 0.0
        %928 = vmatpush.msra.mxu0 0.0
        %929 = vmatpush.msra.mxu0 0.0
        %930 = vmatpush.msra.mxu0 0.0
        %931 = vmatpush.msra.mxu0 %v801
        %932 = vmatpush.msra.mxu0 %v800
        %933 = vmatmul.f32.gmra.mxu0 %v915
        %v934 = vpop.f32.mrf.mxu0
        %v935 = vadd.f32 %v912, %v934
        %936 = vdwg.mxu0
        %937 = vrot.lane.b32.xlu0 %v722, 96
        %v938 = vpop.permute.xlu0 %937
        %939 = vrot.lane.b32.xlu0 %v686, 96
        %v940 = vpop.permute.xlu0 %939
        %941 = vrot.lane.b32.xlu0 %v689, 96
        %v942 = vpop.permute.xlu0 %941
        %v943 = vsel %vm723, %v938, 0
        %v945 = vsel %vm723, %v940, 0
        %v947 = vsel %vm723, %v942, 0
        %949 = vmatpush.xpose.msra.mxu0 0.0
        %950 = vmatpush.xpose.msra.mxu0 0.0
        %951 = vmatpush.xpose.msra.mxu0 0.0
        %952 = vmatpush.xpose.msra.mxu0 0.0
        %953 = vmatpush.xpose.msra.mxu0 0.0
        %954 = vmatpush.xpose.msra.mxu0 0.0
        %955 = vmatpush.xpose.msra.mxu0 0.0
        %956 = vmatpush.xpose.msra.mxu0 0.0
        %957 = vmatpush.xpose.msra.mxu0 0.0
        %958 = vmatpush.xpose.msra.mxu0 0.0
        %959 = vmatpush.xpose.msra.mxu0 0.0
        %960 = vmatpush.xpose.msra.mxu0 0.0
        %961 = vmatpush.xpose.msra.mxu0 0.0
        %962 = vmatpush.xpose.msra.mxu0 0.0
        %963 = vmatpush.xpose.msra.mxu0 %v947
        %964 = vmatpush.xpose.msra.mxu0 %v945
        %965 = vmatmul.f32.gmra.mxu0 %v943
        %v966 = vpop.f32.mrf.mxu0
        %v967 = vadd.f32 0.0, %v966
        %968 = vdwg.mxu0
        %v969 = vsel %vm723, %v967, -inf
        %970 = vmax.xlane.f32.xlu0 %v969
        %v971 = vpop.xlane.xlu0 %970
        %v972 = vsub.f32 %v967, %v971
        %v973 = vmul.f32 %v972, 1.442695
        %v974 = vpow.pop %v973
        %v975 = vsel %vm723, %v974, 0.0
        %976 = vadd.xlane.f32.xlu0 %v975
        %v977 = vpop.xlane.xlu0 %976
        %v978 = vrcp.pop %v977
        %v979 = vmul.f32 %v977, %v978
        %v980 = vsub.f32 1.0, %v979
        %v981 = vmul.f32 %v978, %v980
        %v982 = vadd.f32 %v978, %v981
        %vm983 = vweird.f32 %v977
        %vm984 = vweird.f32 %v978
        %vm985 = vmor %vm983, %vm984
        %v986 = vsel %vm985, %v978, %v982
        %v987 = vand.u32 2147483647, %v977
        %vm988 = vcmp.eq.f32.partialorder %v987, 8.507059e+37
        %v989 = vand.u32 %v977, 2147483648
        %v990 = vor.u32 1.1754944e-38, %v989
        %v991 = vsel %vm988, %v990, %v986
        %v992 = vmul.f32 %v974, %v991
        %993 = vrot.lane.b32.xlu0 %v717, 96
        %v994 = vpop.permute.xlu0 %993
        %995 = vrot.lane.b32.xlu0 %v720, 96
        %v996 = vpop.permute.xlu0 %995
        %v1000 = vsel %vm723, %v992, 0
        %1002 = vmatpush.msra.mxu0 0.0
        %1003 = vmatpush.msra.mxu0 0.0
        %1004 = vmatpush.msra.mxu0 0.0
        %1005 = vmatpush.msra.mxu0 0.0
        %1006 = vmatpush.msra.mxu0 0.0
        %1007 = vmatpush.msra.mxu0 0.0
        %1008 = vmatpush.msra.mxu0 0.0
        %1009 = vmatpush.msra.mxu0 0.0
        %1010 = vmatpush.msra.mxu0 0.0
        %1011 = vmatpush.msra.mxu0 0.0
        %1012 = vmatpush.msra.mxu0 0.0
        %1013 = vmatpush.msra.mxu0 0.0
        %1014 = vmatpush.msra.mxu0 0.0
        %1015 = vmatpush.msra.mxu0 0.0
        %1016 = vmatpush.msra.mxu0 %v996
        %1017 = vmatpush.msra.mxu0 %v994
        %1018 = vmatmul.f32.gmra.mxu0 %v1000
        %v1019 = vpop.f32.mrf.mxu0
        %v1020 = vadd.f32 0.0, %v1019
        %1021 = vdwg.mxu0
        %v1022 = vld [vmem:[%s8 + $0x20] sm:$0xff]
        %v1023 = vld [vmem:[%s8 + $0x28] sm:$0xff]
        %v1025 = vsel %vm723, %v1020, 0
        %1027 = vmatpush.msra.mxu0 0.0
        %1028 = vmatpush.msra.mxu0 0.0
        %1029 = vmatpush.msra.mxu0 0.0
        %1030 = vmatpush.msra.mxu0 0.0
        %1031 = vmatpush.msra.mxu0 0.0
        %1032 = vmatpush.msra.mxu0 0.0
        %1033 = vmatpush.msra.mxu0 0.0
        %1034 = vmatpush.msra.mxu0 0.0
        %1035 = vmatpush.msra.mxu0 0.0
        %1036 = vmatpush.msra.mxu0 0.0
        %1037 = vmatpush.msra.mxu0 0.0
        %1038 = vmatpush.msra.mxu0 0.0
        %1039 = vmatpush.msra.mxu0 0.0
        %1040 = vmatpush.msra.mxu0 0.0
        %1041 = vmatpush.msra.mxu0 %v1023
        %1042 = vmatpush.msra.mxu0 %v1022
        %1043 = vmatmul.f32.gmra.mxu0 %v1025
        %v1044 = vpop.f32.mrf.mxu0
        %v1045 = vadd.f32 0.0, %v1044
        %1046 = vdwg.mxu0
        %v1047 = vadd.f32 %v935, %v1045
        %1048 = vrot.lane.b32.xlu0 %v722, 80
        %v1049 = vpop.permute.xlu0 %1048
        %1050 = vrot.lane.b32.xlu0 %v686, 80
        %v1051 = vpop.permute.xlu0 %1050
        %1052 = vrot.lane.b32.xlu0 %v689, 80
        %v1053 = vpop.permute.xlu0 %1052
        %v1054 = vsel %vm723, %v1049, 0
        %v1056 = vsel %vm723, %v1051, 0
        %v1058 = vsel %vm723, %v1053, 0
        %1060 = vmatpush.xpose.msra.mxu0 0.0
        %1061 = vmatpush.xpose.msra.mxu0 0.0
        %1062 = vmatpush.xpose.msra.mxu0 0.0
        %1063 = vmatpush.xpose.msra.mxu0 0.0
        %1064 = vmatpush.xpose.msra.mxu0 0.0
        %1065 = vmatpush.xpose.msra.mxu0 0.0
        %1066 = vmatpush.xpose.msra.mxu0 0.0
        %1067 = vmatpush.xpose.msra.mxu0 0.0
        %1068 = vmatpush.xpose.msra.mxu0 0.0
        %1069 = vmatpush.xpose.msra.mxu0 0.0
        %1070 = vmatpush.xpose.msra.mxu0 0.0
        %1071 = vmatpush.xpose.msra.mxu0 0.0
        %1072 = vmatpush.xpose.msra.mxu0 0.0
        %1073 = vmatpush.xpose.msra.mxu0 0.0
        %1074 = vmatpush.xpose.msra.mxu0 %v1058
        %1075 = vmatpush.xpose.msra.mxu0 %v1056
        %1076 = vmatmul.f32.gmra.mxu0 %v1054
        %v1077 = vpop.f32.mrf.mxu0
        %v1078 = vadd.f32 0.0, %v1077
        %1079 = vdwg.mxu0
        %v1080 = vsel %vm723, %v1078, -inf
        %1081 = vmax.xlane.f32.xlu0 %v1080
        %v1082 = vpop.xlane.xlu0 %1081
        %v1083 = vsub.f32 %v1078, %v1082
        %v1084 = vmul.f32 %v1083, 1.442695
        %v1085 = vpow.pop %v1084
        %v1086 = vsel %vm723, %v1085, 0.0
        %1087 = vadd.xlane.f32.xlu0 %v1086
        %v1088 = vpop.xlane.xlu0 %1087
        %v1089 = vrcp.pop %v1088
        %v1090 = vmul.f32 %v1088, %v1089
        %v1091 = vsub.f32 1.0, %v1090
        %v1092 = vmul.f32 %v1089, %v1091
        %v1093 = vadd.f32 %v1089, %v1092
        %vm1094 = vweird.f32 %v1088
        %vm1095 = vweird.f32 %v1089
        %vm1096 = vmor %vm1094, %vm1095
        %v1097 = vsel %vm1096, %v1089, %v1093
        %v1098 = vand.u32 2147483647, %v1088
        %vm1099 = vcmp.eq.f32.partialorder %v1098, 8.507059e+37
        %v1100 = vand.u32 %v1088, 2147483648
        %v1101 = vor.u32 1.1754944e-38, %v1100
        %v1102 = vsel %vm1099, %v1101, %v1097
        %v1103 = vmul.f32 %v1085, %v1102
        %1104 = vrot.lane.b32.xlu0 %v717, 80
        %v1105 = vpop.permute.xlu0 %1104
        %1106 = vrot.lane.b32.xlu0 %v720, 80
        %v1107 = vpop.permute.xlu0 %1106
        %v1111 = vsel %vm723, %v1103, 0
        %1113 = vmatpush.msra.mxu0 0.0
        %1114 = vmatpush.msra.mxu0 0.0
        %1115 = vmatpush.msra.mxu0 0.0
        %1116 = vmatpush.msra.mxu0 0.0
        %1117 = vmatpush.msra.mxu0 0.0
        %1118 = vmatpush.msra.mxu0 0.0
        %1119 = vmatpush.msra.mxu0 0.0
        %1120 = vmatpush.msra.mxu0 0.0
        %1121 = vmatpush.msra.mxu0 0.0
        %1122 = vmatpush.msra.mxu0 0.0
        %1123 = vmatpush.msra.mxu0 0.0
        %1124 = vmatpush.msra.mxu0 0.0
        %1125 = vmatpush.msra.mxu0 0.0
        %1126 = vmatpush.msra.mxu0 0.0
        %1127 = vmatpush.msra.mxu0 %v1107
        %1128 = vmatpush.msra.mxu0 %v1105
        %1129 = vmatmul.f32.gmra.mxu0 %v1111
        %v1130 = vpop.f32.mrf.mxu0
        %v1131 = vadd.f32 0.0, %v1130
        %1132 = vdwg.mxu0
        %v1133 = vld [vmem:[%s8 + $0x30] sm:$0xff]
        %v1134 = vld [vmem:[%s8 + $0x38] sm:$0xff]
        %v1136 = vsel %vm723, %v1131, 0
        %1138 = vmatpush.msra.mxu0 0.0
        %1139 = vmatpush.msra.mxu0 0.0
        %1140 = vmatpush.msra.mxu0 0.0
        %1141 = vmatpush.msra.mxu0 0.0
        %1142 = vmatpush.msra.mxu0 0.0
        %1143 = vmatpush.msra.mxu0 0.0
        %1144 = vmatpush.msra.mxu0 0.0
        %1145 = vmatpush.msra.mxu0 0.0
        %1146 = vmatpush.msra.mxu0 0.0
        %1147 = vmatpush.msra.mxu0 0.0
        %1148 = vmatpush.msra.mxu0 0.0
        %1149 = vmatpush.msra.mxu0 0.0
        %1150 = vmatpush.msra.mxu0 0.0
        %1151 = vmatpush.msra.mxu0 0.0
        %1152 = vmatpush.msra.mxu0 %v1134
        %1153 = vmatpush.msra.mxu0 %v1133
        %1154 = vmatmul.f32.gmra.mxu0 %v1136
        %v1155 = vpop.f32.mrf.mxu0
        %v1156 = vadd.f32 0.0, %v1155
        %1157 = vdwg.mxu0
        %v1158 = vadd.f32 %v1047, %v1156
        %v1159 = vld [vmem:[%s9] sm:$0x1]
        %v1161 = vperm.slane %v1159, 0
        %v1163 = vadd.f32 %v1158, %v1161
        %v1164 = vadd.f32 %v1163, %v619
        %v1165 = vld [vmem:[%s10] sm:$0x1]
        %v1166 = vld [vmem:[%s11] sm:$0x1]
        %v1167 = vsel %vm630, %v1164, 0.0
        %1168 = vadd.xlane.f32.xlu0 %v1167
        %v1169 = vpop.xlane.xlu0 %1168
        %v1170 = vrcp.pop 32.0
        %v1171 = vmul.f32 32.0, %v1170
        %v1172 = vsub.f32 1.0, %v1171
        %v1173 = vmul.f32 %v1170, %v1172
        %v1174 = vadd.f32 %v1170, %v1173
        %vm1175 = vweird.f32 %v1170
        %v1176 = vsel %vm1175, %v1170, %v1174
        %v1177 = vmul.f32 %v1169, %v1176
        %v1178 = vsub.f32 %v1164, %v1177
        %v1179 = vmul.f32 %v1178, %v1178
        %v1180 = vsel %vm630, %v1179, 0.0
        %1181 = vadd.xlane.f32.xlu0 %v1180
        %v1182 = vpop.xlane.xlu0 %1181
        %v1183 = vmul.f32 %v1182, %v1176
        %v1184 = vadd.f32 %v1183, 1e-05
        %v1185 = vrsqrt.pop %v1184
        %v1186 = vmul.f32 %v1185, %v1184
        %v1187 = vmul.f32 %v1186, %v1185
        %v1188 = vmul.f32 0.5, %v1187
        %v1189 = vsub.f32 1.5, %v1188
        %v1190 = vmul.f32 %v1185, %v1189
        %vm1191 = vweird.f32 %v1184
        %vm1192 = vweird.f32 %v1185
        %vm1193 = vmor %vm1191, %vm1192
        %v1194 = vsel %vm1193, %v1185, %v1190
        %v1195 = vmul.f32 %v1178, %v1194
        %v1197 = vperm.slane %v1165, 0
        %v1199 = vmul.f32 %v1195, %v1197
        %v1201 = vperm.slane %v1166, 0
        %v1203 = vadd.f32 %v1199, %v1201
        %v1204 = vld [vmem:[%s12] sm:$0xff]
        %v1205 = vld [vmem:[%s12 + $0x8] sm:$0xff]
        %v1206 = vld [vmem:[%s12 + $0x10] sm:$0xff]
        %v1207 = vld [vmem:[%s12 + $0x18] sm:$0xff]
        %v1208 = vld [vmem:[%s13] sm:$0x1]
        %v1210 = vperm.slane %v1208, 0
        %v1213 = vsel %vm630, %v1203, 0
        %1215 = vmatpush.msra.mxu0 0.0
        %1216 = vmatpush.msra.mxu0 0.0
        %1217 = vmatpush.msra.mxu0 0.0
        %1218 = vmatpush.msra.mxu0 0.0
        %1219 = vmatpush.msra.mxu0 0.0
        %1220 = vmatpush.msra.mxu0 0.0
        %1221 = vmatpush.msra.mxu0 0.0
        %1222 = vmatpush.msra.mxu0 0.0
        %1223 = vmatpush.msra.mxu0 0.0
        %1224 = vmatpush.msra.mxu0 0.0
        %1225 = vmatpush.msra.mxu0 0.0
        %1226 = vmatpush.msra.mxu0 0.0
        %1227 = vmatpush.msra.mxu0 %v1207
        %1228 = vmatpush.msra.mxu0 %v1206
        %1229 = vmatpush.msra.mxu0 %v1205
        %1230 = vmatpush.msra.mxu0 %v1204
        %1231 = vmatmul.f32.gmra.mxu0 %v1213
        %v1232 = vpop.f32.mrf.mxu0
        %v1233 = vadd.f32 %v1210, %v1232
        %1234 = vdwg.mxu0
        %v1235 = vmax.f32 %v1233, 0.0
        %v1236 = vld [vmem:[%s14] sm:$0xff]
        %v1237 = vld [vmem:[%s14 + $0x8] sm:$0xff]
        %v1238 = vld [vmem:[%s14 + $0x10] sm:$0xff]
        %v1239 = vld [vmem:[%s14 + $0x18] sm:$0xff]
        %v1240 = vld [vmem:[%s14 + $0x20] sm:$0xff]
        %v1241 = vld [vmem:[%s14 + $0x28] sm:$0xff]
        %v1242 = vld [vmem:[%s14 + $0x30] sm:$0xff]
        %v1243 = vld [vmem:[%s14 + $0x38] sm:$0xff]
        %v1244 = vld [vmem:[%s15] sm:$0x1]
        %v1246 = vperm.slane %v1244, 0
        %vm1248 = vcmask 523264
        %v1250 = vsel %vm1248, %v1235, 0
        %1252 = vmatpush.msra.mxu0 0.0
        %1253 = vmatpush.msra.mxu0 0.0
        %1254 = vmatpush.msra.mxu0 0.0
        %1255 = vmatpush.msra.mxu0 0.0
        %1256 = vmatpush.msra.mxu0 0.0
        %1257 = vmatpush.msra.mxu0 0.0
        %1258 = vmatpush.msra.mxu0 0.0
        %1259 = vmatpush.msra.mxu0 0.0
        %1260 = vmatpush.msra.mxu0 %v1243
        %1261 = vmatpush.msra.mxu0 %v1242
        %1262 = vmatpush.msra.mxu0 %v1241
        %1263 = vmatpush.msra.mxu0 %v1240
        %1264 = vmatpush.msra.mxu0 %v1239
        %1265 = vmatpush.msra.mxu0 %v1238
        %1266 = vmatpush.msra.mxu0 %v1237
        %1267 = vmatpush.msra.mxu0 %v1236
        %1268 = vmatmul.f32.gmra.mxu0 %v1250
        %v1269 = vpop.f32.mrf.mxu0
        %v1270 = vadd.f32 %v1246, %v1269
        %1271 = vdwg.mxu0
        %v1272 = vadd.f32 %v1270, %v1203
        %v1273 = vld [vmem:[%s16] sm:$0x1]
        %v1274 = vld [vmem:[%s17] sm:$0x1]
        %v1275 = vsel %vm630, %v1272, 0.0
        %1276 = vadd.xlane.f32.xlu0 %v1275
        %v1277 = vpop.xlane.xlu0 %1276
        %v1278 = vmul.f32 %v1277, %v1176
        %v1279 = vsub.f32 %v1272, %v1278
        %v1280 = vmul.f32 %v1279, %v1279
        %v1281 = vsel %vm630, %v1280, 0.0
        %1282 = vadd.xlane.f32.xlu0 %v1281
        %v1283 = vpop.xlane.xlu0 %1282
        %v1284 = vmul.f32 %v1283, %v1176
        %v1285 = vadd.f32 %v1284, 1e-05
        %v1286 = vrsqrt.pop %v1285
        %v1287 = vmul.f32 %v1286, %v1285
        %v1288 = vmul.f32 %v1287, %v1286
        %v1289 = vmul.f32 0.5, %v1288
        %v1290 = vsub.f32 1.5, %v1289
        %v1291 = vmul.f32 %v1286, %v1290
        %vm1292 = vweird.f32 %v1285
        %vm1293 = vweird.f32 %v1286
        %vm1294 = vmor %vm1292, %vm1293
        %v1295 = vsel %vm1294, %v1286, %v1291
        %v1296 = vmul.f32 %v1279, %v1295
        %v1298 = vperm.slane %v1273, 0
        %v1300 = vmul.f32 %v1296, %v1298
        %v1302 = vperm.slane %v1274, 0
        %v1304 = vadd.f32 %v1300, %v1302
        %1305 = vst.msk [vmem:[%s605] sm:$0xff] %vm630, %v1304
        %s1306 = sand.u32 %s444, 1
        %s1307 = scalar_lea.sflag [#allocation3], %s1306
        %s1308 = sand.u32 %s444, 1
        %s1309 = smul.addr %s1308, 8
        %s1310 = scalar_lea.vmem [#allocation2], %s1309
        // Predicated region
        $region93: #{tpu_custom_call.1} parent=91 // pred_check
          %p1311 = pneg %p454
        $region94: #{tpu_custom_call.1} parent=91 // pred_check_branch
          %1313 = sbr.rel (%p1311) target = $region96
        $region95: #{tpu_custom_call.1} parent=91 // pred_region
          %1315 = vsyncadd %s1307, 0
          %s1316 = smul.addr %s36, 2
          %s1317 = sadd.s32 %s37, %s1316
          %s1318 = smul.addr %s1317, 8
          %s1319 = scalar_lea.hbm %s18, %s1318
          %s1321 = sshll.u32 %s1310, 4
          %s1322 = int_to_ptr.vmem [resolvable:$true] %s1321
          %s1323 = sshll.u32 %s1319, 4
          %s1324 = int_to_ptr.hbm [resolvable:$true] %s1323
          %1326 = dma.vmem_to_hbm [thread:$0]  %s1322, 128, %s1324, %s1307
        $region96: #{tpu_custom_call.1} parent=91 // pred_fallthru
          _
      $region92: #{tpu_custom_call.1} parent=5 // pred_fallthru
        _
      %p1327 = scmp.le.s32.totalorder 2, %s27
      // Predicated region
      $region97: #{tpu_custom_call.1} parent=5 // pred_check
        %p1328 = pneg %p1327
      $region98: #{tpu_custom_call.1} parent=5 // pred_check_branch
        %1330 = sbr.rel (%p1328) target = $region100
      $region99: #{tpu_custom_call.1} parent=5 // pred_region
        %s1331 = ssub.s32 %s27, 2
        // Predicated region
        $region101: #{tpu_custom_call.1} parent=99 // pred_check
          %p1332 = pneg %p460
        $region102: #{tpu_custom_call.1} parent=99 // pred_check_branch
          %1334 = sbr.rel (%p1332) target = $region104
        $region103: #{tpu_custom_call.1} parent=99 // pred_region
          %s1335 = sand.u32 %s445, 1
          %s1336 = scalar_lea.sflag [#allocation3], %s1335
          %s1337 = sand.u32 %s445, 1
          %s1338 = smul.addr %s1337, 8
          %s1339 = scalar_lea.vmem [#allocation2], %s1338
          %1341 = dma.done %s1336, 128
        $region104: #{tpu_custom_call.1} parent=99 // pred_fallthru
          _
      $region100: #{tpu_custom_call.1} parent=5 // pred_fallthru
        _
    $region6: #{tpu_custom_call.1} parent=1 // loop_footer
      %s31 = sadd.s32 1, %s27
    $region7: #{tpu_custom_call.1} parent=1 // loop_footer_branch
      %26 = sbr.rel target = $region3
    $region8: #{tpu_custom_call.1} parent=1 // loop_exit
      _
    %1342 = vsyncpa [#allocation3], 1
    %s1343 = scalar_lea.sflag [#allocation3], 1
    %1344 = vsyncpa %s1343, 1

</llo_original>
